<compile_context>
chip_gen: v7x
topology: tpu7x:2x2x1
jax: 0.10.0
libtpu: 0.0.40
codegen_flags: <defaults>
</compile_context>

<pallas_src>
import functools

import jax
import jax.numpy as jnp
import numpy as np
from jax.experimental import pallas as pl
from jax.experimental.pallas import tpu as pltpu


# ------------------------------ fused kernel -------------------------------

def _gat_s_fused_kernel(h_ref, pre1w_ref, pre1b_ref, pre2w_ref, pre2b_ref,
                        wfold_ref, ae_ref, ecat_ref, smat_ref, dmatt_ref,
                        dmat_ref, adj_ref,
                        post1w_ref, post1b_ref, post2w_ref, post2b_ref,
                        o_ref, *, num_layers, num_heads, n_nodes, head_dim):
    f32 = jnp.float32
    mm = functools.partial(jnp.dot, preferred_element_type=jnp.float32)

    # ---- pre-processing MLP ------------------------------------------------
    h = mm(h_ref[...], pre1w_ref[...]) + pre1b_ref[...]
    h = mm(h, pre2w_ref[...]) + pre2b_ref[...]

    # graph structure / edge features (VMEM-resident for the whole forward)
    adj = adj_ref[...]        # (N, N)  adj[i, j] = 1 iff edge j -> i
    ecat = ecat_ref[...]      # (E, EF) concatenated raw edge features
    smat = smat_ref[...]      # (E, N)  one-hot source node per edge
    dmatt = dmatt_ref[...]    # (E, N)  one-hot destination node per edge
    dmat = dmat_ref[...]      # (N, E)  = dmatt.T, scatter edges -> dst rows
    neg_inf = f32(-1e30)
    inv_mean = f32(1.0 / (num_heads * n_nodes * head_dim))

    # ---- GAT layers, heads merged with a scalar mean -------------------------
    for li in range(num_layers):
        # folded node projections: [ rowsum(Wz) | Wz@a_src | Wz@a_dst ] per head
        hz = mm(h, wfold_ref[li])                        # (N, 3*num_heads)
        zsum_all = hz[:, 0:num_heads]                    # (N, nh)  sum_d z[:, d]
        s_src_all = hz[:, num_heads:2 * num_heads]       # (N, nh)  z . a_src
        s_dst_all = hz[:, 2 * num_heads:3 * num_heads]   # (N, nh)  z . a_dst
        # folded edge-feature attention term (independent of h)
        s_e_all = mm(ecat, ae_ref[li])                   # (E, nh)
        # gather node terms onto edges with the MXU (replaces XLA gather glue)
        a_edge = mm(smat, s_src_all) + mm(dmatt, s_dst_all) + s_e_all   # (E, nh)
        e_edge = jnp.where(a_edge > 0, a_edge, f32(0.01) * a_edge)      # leaky_relu

        acc = jnp.zeros((1, 1), f32)
        for hd in range(num_heads):
            # dense (N_dst, N_src) scores via MXU scatter: dmat @ (e * smat)
            e_dense = mm(dmat, e_edge[:, hd:hd + 1] * smat)             # (N, N)
            masked = jnp.where(adj > 0, e_dense, neg_inf)
            m = jnp.max(masked, axis=-1, keepdims=True)
            p = jnp.exp(masked - m)                      # non-edges underflow to 0
            denom = jnp.sum(p, axis=-1, keepdims=True)
            alpha = p / denom                            # per-dst softmax (N, N)
            # merge='mean' is a scalar:
            #   sum_{i,d}(alpha @ z)[i,d] = sum_i (alpha @ rowsum(z))[i]
            head_vec = mm(alpha, zsum_all[:, hd:hd + 1])                # (N, 1)
            acc = acc + jnp.sum(head_vec, axis=0, keepdims=True)        # (1, 1)
        x = acc * inv_mean                               # scalar mean over (heads,N,D)
        x = jnp.where(x > 0, x, jnp.exp(x) - f32(1.0))   # F.elu
        h = h + x                                        # scalar-broadcast skip

    # ---- post-processing MLP -------------------------------------------------
    h = mm(h, post1w_ref[...]) + post1b_ref[...]
    o_ref[...] = mm(h, post2w_ref[...]) + post2b_ref[...]


@functools.partial(jax.jit, static_argnames=('num_heads', 'head_dim'))
def gat_s_forward(folded, h, ecat, smat, dmatt, dmat, adj, *, num_heads, head_dim):
    """Whole GAT_s forward in a single Pallas call (everything fits in VMEM)."""
    N = h.shape[0]
    out_dim = folded['post2_w'].shape[1]
    num_layers = folded['wfold'].shape[0]
    kernel = functools.partial(_gat_s_fused_kernel,
                               num_layers=int(num_layers), num_heads=num_heads,
                               n_nodes=int(N), head_dim=head_dim)
    vmem = pl.BlockSpec(memory_space=pltpu.MemorySpace.VMEM)
    return pl.pallas_call(
        kernel,
        out_shape=jax.ShapeDtypeStruct((N, out_dim), jnp.float32),
        in_specs=[vmem] * 16,
        out_specs=vmem,
    )(h, folded['pre1_w'], folded['pre1_b'], folded['pre2_w'], folded['pre2_b'],
      folded['wfold'], folded['ae'], ecat, smat, dmatt, dmat, adj,
      folded['post1_w'], folded['post1_b'], folded['post2_w'], folded['post2_b'])


# ------------------------------- params / fold -------------------------------

def init_params(key, in_dim, hidden_dim, out_dim, num_heads, num_layers, efeat_dims):
    keys = iter(jax.random.split(key, 256))

    def w(shape):
        return jax.random.normal(next(keys), shape, jnp.float32) * 0.1

    D = hidden_dim
    return {
        'pre1_w': w((in_dim, hidden_dim)), 'pre1_b': w((hidden_dim,)),
        'pre2_w': w((hidden_dim, hidden_dim)), 'pre2_b': w((hidden_dim,)),
        'post1_w': w((hidden_dim, hidden_dim)), 'post1_b': w((hidden_dim,)),
        'post2_w': w((hidden_dim, out_dim)), 'post2_b': w((out_dim,)),
        'layers': [
            [
                {
                    'w_nfeat': w((hidden_dim, D)),
                    'w_rel': w((efeat_dims['relation'], D)),
                    'w_score': w((efeat_dims['score'], D)),
                    'w_ts': w((efeat_dims['timestamp'], D)),
                    'attn_w': w((5 * D, 1)),   # [a_src | a_dst | a_e]
                }
                for _ in range(num_heads)
            ]
            for _ in range(num_layers)
        ],
    }


def fold_params(params, head_dim):
    """One-time algebraic folding of attention projections (hoisted out of forward)."""
    D = head_dim
    f = {
        'pre1_w': params['pre1_w'], 'pre1_b': params['pre1_b'].reshape(1, -1),
        'pre2_w': params['pre2_w'], 'pre2_b': params['pre2_b'].reshape(1, -1),
        'post1_w': params['post1_w'], 'post1_b': params['post1_b'].reshape(1, -1),
        'post2_w': params['post2_w'], 'post2_b': params['post2_b'].reshape(1, -1),
    }
    wfold_layers, ae_layers = [], []
    for heads in params['layers']:
        wz, ws, wd, ae = [], [], [], []
        for p in heads:
            a_src = p['attn_w'][:D]
            a_dst = p['attn_w'][D:2 * D]
            a_e = p['attn_w'][2 * D:]
            wz.append(jnp.sum(p['w_nfeat'], axis=1, keepdims=True))   # (H,1) rowsum(Wz)
            ws.append(p['w_nfeat'] @ a_src)                           # (H,1)
            wd.append(p['w_nfeat'] @ a_dst)                           # (H,1)
            ae.append(jnp.concatenate([p['w_rel'] @ a_e[:D],
                                       p['w_score'] @ a_e[D:2 * D],
                                       p['w_ts'] @ a_e[2 * D:]], axis=0))  # (EF,1)
        wfold_layers.append(jnp.concatenate(wz + ws + wd, axis=1))    # (H, 3*nheads)
        ae_layers.append(jnp.concatenate(ae, axis=1))                 # (EF, nheads)
    f['wfold'] = jnp.stack(wfold_layers)   # (L, H, 3*nheads)
    f['ae'] = jnp.stack(ae_layers)         # (L, EF, nheads)
    return f


# ------------------------- pure-JAX reference check -------------------------

def ref_forward(params, h, edata, src, dst, N):
    dot = functools.partial(jnp.dot, precision=jax.lax.Precision.HIGHEST)
    h = dot(h, params['pre1_w']) + params['pre1_b']
    h = dot(h, params['pre2_w']) + params['pre2_b']
    for heads in params['layers']:
        outs = []
        for p in heads:
            z = dot(h, p['w_nfeat'])
            efa = jnp.concatenate([dot(edata['relation'], p['w_rel']),
                                   dot(edata['score'], p['w_score']),
                                   dot(edata['timestamp'], p['w_ts'])], axis=-1)
            z2 = jnp.concatenate([z[src], z[dst], efa], axis=-1)
            a = dot(z2, p['attn_w'])[:, 0]
            e = jnp.where(a > 0, a, 0.01 * a)
            m = jax.ops.segment_max(e, dst, num_segments=N)
            pe = jnp.exp(e - m[dst])
            denom = jax.ops.segment_sum(pe, dst, num_segments=N)
            alpha = pe / denom[dst]
            outs.append(jax.ops.segment_sum(alpha[:, None] * z[src], dst, num_segments=N))
        h = h + jax.nn.elu(jnp.mean(jnp.stack(outs)))
    h = dot(h, params['post1_w']) + params['post1_b']
    h = dot(h, params['post2_w']) + params['post2_b']
    return h


# ----------------------------------- main -----------------------------------

if __name__ == "__main__":
    # small, TPU-friendly synthetic problem
    N = 16          # nodes
    in_dim = 16
    hidden_dim = 32
    out_dim = 8
    num_heads = 2
    num_layers = 3
    efeat_dims = {'relation': 4, 'score': 2, 'timestamp': 2}   # all_dims[...] sizes

    # deterministic simple graph: node i receives edges from (i-1)%N and (i-3)%N
    dst_np = np.repeat(np.arange(N), 2)
    src_np = np.concatenate([[(i - 1) % N, (i - 3) % N] for i in range(N)])
    E = dst_np.shape[0]
    src = jnp.asarray(src_np, jnp.int32)
    dst = jnp.asarray(dst_np, jnp.int32)

    # static graph structure -> built ONCE (one-hot gather/scatter + adjacency)
    eidx = jnp.arange(E)
    smat = jnp.zeros((E, N), jnp.float32).at[eidx, src].set(1.0)    # src one-hot
    dmatt = jnp.zeros((E, N), jnp.float32).at[eidx, dst].set(1.0)   # dst one-hot
    dmat = dmatt.T                                                  # (N, E) scatter
    adj = jnp.zeros((N, N), jnp.float32).at[dst, src].set(1.0)      # adj[i,j]=1 iff j->i

    key = jax.random.PRNGKey(0)
    k_h, k_r, k_s, k_t, k_p = jax.random.split(key, 5)
    h = jax.random.normal(k_h, (N, in_dim), jnp.float32)
    edata = {
        'relation': jax.random.normal(k_r, (E, efeat_dims['relation']), jnp.float32) * 0.5,
        'score': jax.random.normal(k_s, (E, efeat_dims['score']), jnp.float32) * 0.5,
        'timestamp': jax.random.normal(k_t, (E, efeat_dims['timestamp']), jnp.float32) * 0.5,
    }
    ecat = jnp.concatenate([edata['relation'], edata['score'], edata['timestamp']], axis=-1)

    params = init_params(k_p, in_dim, hidden_dim, out_dim, num_heads, num_layers, efeat_dims)
    folded = fold_params(params, head_dim=hidden_dim)   # one-time weight folding

    out = gat_s_forward(folded, h, ecat, smat, dmatt, dmat, adj,
                        num_heads=num_heads, head_dim=hidden_dim)
    out = jax.block_until_ready(out)
    assert out.shape == (N, out_dim) and out.dtype == jnp.float32

    ref = jax.block_until_ready(ref_forward(params, h, edata, src, dst, N))
    np.testing.assert_allclose(np.asarray(out), np.asarray(ref), rtol=1e-2, atol=1e-2)

    print("KERNEL_OK")
</pallas_src>

<mosaic_0001>
module attributes {stable_mosaic.version = 11 : i64} {
  func.func @_gat_s_fused_kernel(%arg0: memref<16x16xf32, #tpu.memory_space<vmem>>, %arg1: memref<16x32xf32, #tpu.memory_space<vmem>>, %arg2: memref<1x32xf32, #tpu.memory_space<vmem>>, %arg3: memref<32x32xf32, #tpu.memory_space<vmem>>, %arg4: memref<1x32xf32, #tpu.memory_space<vmem>>, %arg5: memref<3x32x6xf32, #tpu.memory_space<vmem>>, %arg6: memref<3x8x2xf32, #tpu.memory_space<vmem>>, %arg7: memref<32x8xf32, #tpu.memory_space<vmem>>, %arg8: memref<32x16xf32, #tpu.memory_space<vmem>>, %arg9: memref<32x16xf32, #tpu.memory_space<vmem>>, %arg10: memref<16x32xf32, #tpu.memory_space<vmem>>, %arg11: memref<16x16xf32, #tpu.memory_space<vmem>>, %arg12: memref<32x32xf32, #tpu.memory_space<vmem>>, %arg13: memref<1x32xf32, #tpu.memory_space<vmem>>, %arg14: memref<32x8xf32, #tpu.memory_space<vmem>>, %arg15: memref<1x8xf32, #tpu.memory_space<vmem>>, %arg16: memref<16x8xf32, #tpu.memory_space<vmem>>) attributes {dimension_semantics = [], scalar_prefetch = 0 : i64, scratch_operands = 0 : i64, tpu.core_type = #tpu.core_type<tc>} {
    %c0 = arith.constant 0 : index
    %c0_0 = arith.constant 0 : index
    %0 = vector.load %arg0[%c0, %c0_0] : memref<16x16xf32, #tpu.memory_space<vmem>>, vector<16x16xf32>
    %c0_1 = arith.constant 0 : index
    %c0_2 = arith.constant 0 : index
    %1 = vector.load %arg1[%c0_1, %c0_2] : memref<16x32xf32, #tpu.memory_space<vmem>>, vector<16x32xf32>
    %cst = arith.constant dense<0.000000e+00> : vector<16x32xf32>
    %2 = tpu.matmul %0, %1, %cst {dimension_numbers = #tpu.dot_dimension_numbers<[1], [0], [0], [1], [0, 0, 1, 1], [], []>} : vector<16x16xf32>, vector<16x32xf32>, vector<16x32xf32> -> vector<16x32xf32>
    %c0_3 = arith.constant 0 : index
    %c0_4 = arith.constant 0 : index
    %3 = vector.load %arg2[%c0_3, %c0_4] : memref<1x32xf32, #tpu.memory_space<vmem>>, vector<1x32xf32>
    %4 = vector.broadcast %3 : vector<1x32xf32> to vector<16x32xf32>
    %5 = arith.addf %2, %4 : vector<16x32xf32>
    %c0_5 = arith.constant 0 : index
    %c0_6 = arith.constant 0 : index
    %6 = vector.load %arg3[%c0_5, %c0_6] : memref<32x32xf32, #tpu.memory_space<vmem>>, vector<32x32xf32>
    %cst_7 = arith.constant dense<0.000000e+00> : vector<16x32xf32>
    %7 = tpu.matmul %5, %6, %cst_7 {dimension_numbers = #tpu.dot_dimension_numbers<[1], [0], [0], [1], [0, 0, 1, 1], [], []>} : vector<16x32xf32>, vector<32x32xf32>, vector<16x32xf32> -> vector<16x32xf32>
    %c0_8 = arith.constant 0 : index
    %c0_9 = arith.constant 0 : index
    %8 = vector.load %arg4[%c0_8, %c0_9] : memref<1x32xf32, #tpu.memory_space<vmem>>, vector<1x32xf32>
    %9 = vector.broadcast %8 : vector<1x32xf32> to vector<16x32xf32>
    %10 = arith.addf %7, %9 : vector<16x32xf32>
    %c0_10 = arith.constant 0 : index
    %c0_11 = arith.constant 0 : index
    %11 = vector.load %arg11[%c0_10, %c0_11] : memref<16x16xf32, #tpu.memory_space<vmem>>, vector<16x16xf32>
    %c0_12 = arith.constant 0 : index
    %c0_13 = arith.constant 0 : index
    %12 = vector.load %arg7[%c0_12, %c0_13] : memref<32x8xf32, #tpu.memory_space<vmem>>, vector<32x8xf32>
    %c0_14 = arith.constant 0 : index
    %c0_15 = arith.constant 0 : index
    %13 = vector.load %arg8[%c0_14, %c0_15] : memref<32x16xf32, #tpu.memory_space<vmem>>, vector<32x16xf32>
    %c0_16 = arith.constant 0 : index
    %c0_17 = arith.constant 0 : index
    %14 = vector.load %arg9[%c0_16, %c0_17] : memref<32x16xf32, #tpu.memory_space<vmem>>, vector<32x16xf32>
    %c0_18 = arith.constant 0 : index
    %c0_19 = arith.constant 0 : index
    %15 = vector.load %arg10[%c0_18, %c0_19] : memref<16x32xf32, #tpu.memory_space<vmem>>, vector<16x32xf32>
    %c0_20 = arith.constant 0 : index
    %c0_21 = arith.constant 0 : index
    %c0_22 = arith.constant 0 : index
    %16 = vector.load %arg5[%c0_20, %c0_21, %c0_22] : memref<3x32x6xf32, #tpu.memory_space<vmem>>, vector<1x32x6xf32>
    %17 = vector.shape_cast %16 : vector<1x32x6xf32> to vector<32x6xf32>
    %cst_23 = arith.constant dense<0.000000e+00> : vector<16x6xf32>
    %18 = tpu.matmul %10, %17, %cst_23 {dimension_numbers = #tpu.dot_dimension_numbers<[1], [0], [0], [1], [0, 0, 1, 1], [], []>} : vector<16x32xf32>, vector<32x6xf32>, vector<16x6xf32> -> vector<16x6xf32>
    %19 = vector.extract_strided_slice %18 {offsets = [0, 0], sizes = [16, 2], strides = [1, 1]} : vector<16x6xf32> to vector<16x2xf32>
    %20 = vector.extract_strided_slice %18 {offsets = [0, 2], sizes = [16, 2], strides = [1, 1]} : vector<16x6xf32> to vector<16x2xf32>
    %21 = vector.extract_strided_slice %18 {offsets = [0, 4], sizes = [16, 2], strides = [1, 1]} : vector<16x6xf32> to vector<16x2xf32>
    %c0_24 = arith.constant 0 : index
    %c0_25 = arith.constant 0 : index
    %c0_26 = arith.constant 0 : index
    %22 = vector.load %arg6[%c0_24, %c0_25, %c0_26] : memref<3x8x2xf32, #tpu.memory_space<vmem>>, vector<1x8x2xf32>
    %23 = vector.shape_cast %22 : vector<1x8x2xf32> to vector<8x2xf32>
    %cst_27 = arith.constant dense<0.000000e+00> : vector<32x2xf32>
    %24 = tpu.matmul %12, %23, %cst_27 {dimension_numbers = #tpu.dot_dimension_numbers<[1], [0], [0], [1], [0, 0, 1, 1], [], []>} : vector<32x8xf32>, vector<8x2xf32>, vector<32x2xf32> -> vector<32x2xf32>
    %cst_28 = arith.constant dense<0.000000e+00> : vector<32x2xf32>
    %25 = tpu.matmul %13, %20, %cst_28 {dimension_numbers = #tpu.dot_dimension_numbers<[1], [0], [0], [1], [0, 0, 1, 1], [], []>} : vector<32x16xf32>, vector<16x2xf32>, vector<32x2xf32> -> vector<32x2xf32>
    %cst_29 = arith.constant dense<0.000000e+00> : vector<32x2xf32>
    %26 = tpu.matmul %14, %21, %cst_29 {dimension_numbers = #tpu.dot_dimension_numbers<[1], [0], [0], [1], [0, 0, 1, 1], [], []>} : vector<32x16xf32>, vector<16x2xf32>, vector<32x2xf32> -> vector<32x2xf32>
    %27 = arith.addf %25, %26 : vector<32x2xf32>
    %28 = arith.addf %27, %24 : vector<32x2xf32>
    %cst_30 = arith.constant 0.000000e+00 : f32
    %29 = vector.broadcast %cst_30 : f32 to vector<32x2xf32>
    %30 = arith.cmpf ogt, %28, %29 : vector<32x2xf32>
    %cst_31 = arith.constant 0.00999999977 : f32
    %31 = vector.broadcast %cst_31 : f32 to vector<32x2xf32>
    %32 = arith.mulf %31, %28 : vector<32x2xf32>
    %33 = arith.select %30, %28, %32 : vector<32x2xi1>, vector<32x2xf32>
    %cst_32 = arith.constant 0.000000e+00 : f32
    %34 = vector.broadcast %cst_32 : f32 to vector<1x1xf32>
    %35 = vector.extract_strided_slice %33 {offsets = [0, 0], sizes = [32, 1], strides = [1, 1]} : vector<32x2xf32> to vector<32x1xf32>
    %36 = vector.broadcast %35 : vector<32x1xf32> to vector<32x16xf32>
    %37 = arith.mulf %36, %13 : vector<32x16xf32>
    %cst_33 = arith.constant dense<0.000000e+00> : vector<16x16xf32>
    %38 = tpu.matmul %15, %37, %cst_33 {dimension_numbers = #tpu.dot_dimension_numbers<[1], [0], [0], [1], [0, 0, 1, 1], [], []>} : vector<16x32xf32>, vector<32x16xf32>, vector<16x16xf32> -> vector<16x16xf32>
    %cst_34 = arith.constant 0.000000e+00 : f32
    %39 = vector.broadcast %cst_34 : f32 to vector<16x16xf32>
    %40 = arith.cmpf ogt, %11, %39 : vector<16x16xf32>
    %cst_35 = arith.constant -1.000000e+30 : f32
    %41 = vector.broadcast %cst_35 : f32 to vector<16x16xf32>
    %42 = arith.select %40, %38, %41 : vector<16x16xi1>, vector<16x16xf32>
    %cst_36 = arith.constant dense<0xFF800000> : vector<16xf32>
    %43 = vector.multi_reduction <maximumf>, %42, %cst_36 [1] : vector<16x16xf32> to vector<16xf32>
    %44 = vector.shape_cast %43 : vector<16xf32> to vector<16x1xf32>
    %45 = vector.broadcast %44 : vector<16x1xf32> to vector<16x16xf32>
    %46 = arith.subf %42, %45 : vector<16x16xf32>
    %47 = math.exp %46 : vector<16x16xf32>
    %cst_37 = arith.constant dense<0.000000e+00> : vector<16xf32>
    %48 = vector.multi_reduction <add>, %47, %cst_37 [1] : vector<16x16xf32> to vector<16xf32>
    %49 = vector.shape_cast %48 : vector<16xf32> to vector<16x1xf32>
    %50 = vector.broadcast %49 : vector<16x1xf32> to vector<16x16xf32>
    %51 = arith.divf %47, %50 : vector<16x16xf32>
    %52 = vector.extract_strided_slice %19 {offsets = [0, 0], sizes = [16, 1], strides = [1, 1]} : vector<16x2xf32> to vector<16x1xf32>
    %cst_38 = arith.constant dense<0.000000e+00> : vector<16x1xf32>
    %53 = tpu.matmul %51, %52, %cst_38 {dimension_numbers = #tpu.dot_dimension_numbers<[1], [0], [0], [1], [0, 0, 1, 1], [], []>} : vector<16x16xf32>, vector<16x1xf32>, vector<16x1xf32> -> vector<16x1xf32>
    %cst_39 = arith.constant dense<0.000000e+00> : vector<1xf32>
    %54 = vector.multi_reduction <add>, %53, %cst_39 [0] : vector<16x1xf32> to vector<1xf32>
    %55 = vector.shape_cast %54 : vector<1xf32> to vector<1x1xf32>
    %56 = arith.addf %34, %55 : vector<1x1xf32>
    %57 = vector.extract_strided_slice %33 {offsets = [0, 1], sizes = [32, 1], strides = [1, 1]} : vector<32x2xf32> to vector<32x1xf32>
    %58 = vector.broadcast %57 : vector<32x1xf32> to vector<32x16xf32>
    %59 = arith.mulf %58, %13 : vector<32x16xf32>
    %cst_40 = arith.constant dense<0.000000e+00> : vector<16x16xf32>
    %60 = tpu.matmul %15, %59, %cst_40 {dimension_numbers = #tpu.dot_dimension_numbers<[1], [0], [0], [1], [0, 0, 1, 1], [], []>} : vector<16x32xf32>, vector<32x16xf32>, vector<16x16xf32> -> vector<16x16xf32>
    %cst_41 = arith.constant 0.000000e+00 : f32
    %61 = vector.broadcast %cst_41 : f32 to vector<16x16xf32>
    %62 = arith.cmpf ogt, %11, %61 : vector<16x16xf32>
    %cst_42 = arith.constant -1.000000e+30 : f32
    %63 = vector.broadcast %cst_42 : f32 to vector<16x16xf32>
    %64 = arith.select %62, %60, %63 : vector<16x16xi1>, vector<16x16xf32>
    %cst_43 = arith.constant dense<0xFF800000> : vector<16xf32>
    %65 = vector.multi_reduction <maximumf>, %64, %cst_43 [1] : vector<16x16xf32> to vector<16xf32>
    %66 = vector.shape_cast %65 : vector<16xf32> to vector<16x1xf32>
    %67 = vector.broadcast %66 : vector<16x1xf32> to vector<16x16xf32>
    %68 = arith.subf %64, %67 : vector<16x16xf32>
    %69 = math.exp %68 : vector<16x16xf32>
    %cst_44 = arith.constant dense<0.000000e+00> : vector<16xf32>
    %70 = vector.multi_reduction <add>, %69, %cst_44 [1] : vector<16x16xf32> to vector<16xf32>
    %71 = vector.shape_cast %70 : vector<16xf32> to vector<16x1xf32>
    %72 = vector.broadcast %71 : vector<16x1xf32> to vector<16x16xf32>
    %73 = arith.divf %69, %72 : vector<16x16xf32>
    %74 = vector.extract_strided_slice %19 {offsets = [0, 1], sizes = [16, 1], strides = [1, 1]} : vector<16x2xf32> to vector<16x1xf32>
    %cst_45 = arith.constant dense<0.000000e+00> : vector<16x1xf32>
    %75 = tpu.matmul %73, %74, %cst_45 {dimension_numbers = #tpu.dot_dimension_numbers<[1], [0], [0], [1], [0, 0, 1, 1], [], []>} : vector<16x16xf32>, vector<16x1xf32>, vector<16x1xf32> -> vector<16x1xf32>
    %cst_46 = arith.constant dense<0.000000e+00> : vector<1xf32>
    %76 = vector.multi_reduction <add>, %75, %cst_46 [0] : vector<16x1xf32> to vector<1xf32>
    %77 = vector.shape_cast %76 : vector<1xf32> to vector<1x1xf32>
    %78 = arith.addf %56, %77 : vector<1x1xf32>
    %cst_47 = arith.constant 9.765625E-4 : f32
    %79 = vector.broadcast %cst_47 : f32 to vector<1x1xf32>
    %80 = arith.mulf %78, %79 : vector<1x1xf32>
    %cst_48 = arith.constant 0.000000e+00 : f32
    %81 = vector.broadcast %cst_48 : f32 to vector<1x1xf32>
    %82 = arith.cmpf ogt, %80, %81 : vector<1x1xf32>
    %83 = math.exp %80 : vector<1x1xf32>
    %cst_49 = arith.constant 1.000000e+00 : f32
    %84 = vector.broadcast %cst_49 : f32 to vector<1x1xf32>
    %85 = arith.subf %83, %84 : vector<1x1xf32>
    %86 = arith.select %82, %80, %85 : vector<1x1xi1>, vector<1x1xf32>
    %87 = vector.broadcast %86 : vector<1x1xf32> to vector<16x32xf32>
    %88 = arith.addf %10, %87 : vector<16x32xf32>
    %c1 = arith.constant 1 : index
    %c0_50 = arith.constant 0 : index
    %c0_51 = arith.constant 0 : index
    %89 = vector.load %arg5[%c1, %c0_50, %c0_51] : memref<3x32x6xf32, #tpu.memory_space<vmem>>, vector<1x32x6xf32>
    %90 = vector.shape_cast %89 : vector<1x32x6xf32> to vector<32x6xf32>
    %cst_52 = arith.constant dense<0.000000e+00> : vector<16x6xf32>
    %91 = tpu.matmul %88, %90, %cst_52 {dimension_numbers = #tpu.dot_dimension_numbers<[1], [0], [0], [1], [0, 0, 1, 1], [], []>} : vector<16x32xf32>, vector<32x6xf32>, vector<16x6xf32> -> vector<16x6xf32>
    %92 = vector.extract_strided_slice %91 {offsets = [0, 0], sizes = [16, 2], strides = [1, 1]} : vector<16x6xf32> to vector<16x2xf32>
    %93 = vector.extract_strided_slice %91 {offsets = [0, 2], sizes = [16, 2], strides = [1, 1]} : vector<16x6xf32> to vector<16x2xf32>
    %94 = vector.extract_strided_slice %91 {offsets = [0, 4], sizes = [16, 2], strides = [1, 1]} : vector<16x6xf32> to vector<16x2xf32>
    %c1_53 = arith.constant 1 : index
    %c0_54 = arith.constant 0 : index
    %c0_55 = arith.constant 0 : index
    %95 = vector.load %arg6[%c1_53, %c0_54, %c0_55] : memref<3x8x2xf32, #tpu.memory_space<vmem>>, vector<1x8x2xf32>
    %96 = vector.shape_cast %95 : vector<1x8x2xf32> to vector<8x2xf32>
    %cst_56 = arith.constant dense<0.000000e+00> : vector<32x2xf32>
    %97 = tpu.matmul %12, %96, %cst_56 {dimension_numbers = #tpu.dot_dimension_numbers<[1], [0], [0], [1], [0, 0, 1, 1], [], []>} : vector<32x8xf32>, vector<8x2xf32>, vector<32x2xf32> -> vector<32x2xf32>
    %cst_57 = arith.constant dense<0.000000e+00> : vector<32x2xf32>
    %98 = tpu.matmul %13, %93, %cst_57 {dimension_numbers = #tpu.dot_dimension_numbers<[1], [0], [0], [1], [0, 0, 1, 1], [], []>} : vector<32x16xf32>, vector<16x2xf32>, vector<32x2xf32> -> vector<32x2xf32>
    %cst_58 = arith.constant dense<0.000000e+00> : vector<32x2xf32>
    %99 = tpu.matmul %14, %94, %cst_58 {dimension_numbers = #tpu.dot_dimension_numbers<[1], [0], [0], [1], [0, 0, 1, 1], [], []>} : vector<32x16xf32>, vector<16x2xf32>, vector<32x2xf32> -> vector<32x2xf32>
    %100 = arith.addf %98, %99 : vector<32x2xf32>
    %101 = arith.addf %100, %97 : vector<32x2xf32>
    %cst_59 = arith.constant 0.000000e+00 : f32
    %102 = vector.broadcast %cst_59 : f32 to vector<32x2xf32>
    %103 = arith.cmpf ogt, %101, %102 : vector<32x2xf32>
    %cst_60 = arith.constant 0.00999999977 : f32
    %104 = vector.broadcast %cst_60 : f32 to vector<32x2xf32>
    %105 = arith.mulf %104, %101 : vector<32x2xf32>
    %106 = arith.select %103, %101, %105 : vector<32x2xi1>, vector<32x2xf32>
    %cst_61 = arith.constant 0.000000e+00 : f32
    %107 = vector.broadcast %cst_61 : f32 to vector<1x1xf32>
    %108 = vector.extract_strided_slice %106 {offsets = [0, 0], sizes = [32, 1], strides = [1, 1]} : vector<32x2xf32> to vector<32x1xf32>
    %109 = vector.broadcast %108 : vector<32x1xf32> to vector<32x16xf32>
    %110 = arith.mulf %109, %13 : vector<32x16xf32>
    %cst_62 = arith.constant dense<0.000000e+00> : vector<16x16xf32>
    %111 = tpu.matmul %15, %110, %cst_62 {dimension_numbers = #tpu.dot_dimension_numbers<[1], [0], [0], [1], [0, 0, 1, 1], [], []>} : vector<16x32xf32>, vector<32x16xf32>, vector<16x16xf32> -> vector<16x16xf32>
    %cst_63 = arith.constant 0.000000e+00 : f32
    %112 = vector.broadcast %cst_63 : f32 to vector<16x16xf32>
    %113 = arith.cmpf ogt, %11, %112 : vector<16x16xf32>
    %cst_64 = arith.constant -1.000000e+30 : f32
    %114 = vector.broadcast %cst_64 : f32 to vector<16x16xf32>
    %115 = arith.select %113, %111, %114 : vector<16x16xi1>, vector<16x16xf32>
    %cst_65 = arith.constant dense<0xFF800000> : vector<16xf32>
    %116 = vector.multi_reduction <maximumf>, %115, %cst_65 [1] : vector<16x16xf32> to vector<16xf32>
    %117 = vector.shape_cast %116 : vector<16xf32> to vector<16x1xf32>
    %118 = vector.broadcast %117 : vector<16x1xf32> to vector<16x16xf32>
    %119 = arith.subf %115, %118 : vector<16x16xf32>
    %120 = math.exp %119 : vector<16x16xf32>
    %cst_66 = arith.constant dense<0.000000e+00> : vector<16xf32>
    %121 = vector.multi_reduction <add>, %120, %cst_66 [1] : vector<16x16xf32> to vector<16xf32>
    %122 = vector.shape_cast %121 : vector<16xf32> to vector<16x1xf32>
    %123 = vector.broadcast %122 : vector<16x1xf32> to vector<16x16xf32>
    %124 = arith.divf %120, %123 : vector<16x16xf32>
    %125 = vector.extract_strided_slice %92 {offsets = [0, 0], sizes = [16, 1], strides = [1, 1]} : vector<16x2xf32> to vector<16x1xf32>
    %cst_67 = arith.constant dense<0.000000e+00> : vector<16x1xf32>
    %126 = tpu.matmul %124, %125, %cst_67 {dimension_numbers = #tpu.dot_dimension_numbers<[1], [0], [0], [1], [0, 0, 1, 1], [], []>} : vector<16x16xf32>, vector<16x1xf32>, vector<16x1xf32> -> vector<16x1xf32>
    %cst_68 = arith.constant dense<0.000000e+00> : vector<1xf32>
    %127 = vector.multi_reduction <add>, %126, %cst_68 [0] : vector<16x1xf32> to vector<1xf32>
    %128 = vector.shape_cast %127 : vector<1xf32> to vector<1x1xf32>
    %129 = arith.addf %107, %128 : vector<1x1xf32>
    %130 = vector.extract_strided_slice %106 {offsets = [0, 1], sizes = [32, 1], strides = [1, 1]} : vector<32x2xf32> to vector<32x1xf32>
    %131 = vector.broadcast %130 : vector<32x1xf32> to vector<32x16xf32>
    %132 = arith.mulf %131, %13 : vector<32x16xf32>
    %cst_69 = arith.constant dense<0.000000e+00> : vector<16x16xf32>
    %133 = tpu.matmul %15, %132, %cst_69 {dimension_numbers = #tpu.dot_dimension_numbers<[1], [0], [0], [1], [0, 0, 1, 1], [], []>} : vector<16x32xf32>, vector<32x16xf32>, vector<16x16xf32> -> vector<16x16xf32>
    %cst_70 = arith.constant 0.000000e+00 : f32
    %134 = vector.broadcast %cst_70 : f32 to vector<16x16xf32>
    %135 = arith.cmpf ogt, %11, %134 : vector<16x16xf32>
    %cst_71 = arith.constant -1.000000e+30 : f32
    %136 = vector.broadcast %cst_71 : f32 to vector<16x16xf32>
    %137 = arith.select %135, %133, %136 : vector<16x16xi1>, vector<16x16xf32>
    %cst_72 = arith.constant dense<0xFF800000> : vector<16xf32>
    %138 = vector.multi_reduction <maximumf>, %137, %cst_72 [1] : vector<16x16xf32> to vector<16xf32>
    %139 = vector.shape_cast %138 : vector<16xf32> to vector<16x1xf32>
    %140 = vector.broadcast %139 : vector<16x1xf32> to vector<16x16xf32>
    %141 = arith.subf %137, %140 : vector<16x16xf32>
    %142 = math.exp %141 : vector<16x16xf32>
    %cst_73 = arith.constant dense<0.000000e+00> : vector<16xf32>
    %143 = vector.multi_reduction <add>, %142, %cst_73 [1] : vector<16x16xf32> to vector<16xf32>
    %144 = vector.shape_cast %143 : vector<16xf32> to vector<16x1xf32>
    %145 = vector.broadcast %144 : vector<16x1xf32> to vector<16x16xf32>
    %146 = arith.divf %142, %145 : vector<16x16xf32>
    %147 = vector.extract_strided_slice %92 {offsets = [0, 1], sizes = [16, 1], strides = [1, 1]} : vector<16x2xf32> to vector<16x1xf32>
    %cst_74 = arith.constant dense<0.000000e+00> : vector<16x1xf32>
    %148 = tpu.matmul %146, %147, %cst_74 {dimension_numbers = #tpu.dot_dimension_numbers<[1], [0], [0], [1], [0, 0, 1, 1], [], []>} : vector<16x16xf32>, vector<16x1xf32>, vector<16x1xf32> -> vector<16x1xf32>
    %cst_75 = arith.constant dense<0.000000e+00> : vector<1xf32>
    %149 = vector.multi_reduction <add>, %148, %cst_75 [0] : vector<16x1xf32> to vector<1xf32>
    %150 = vector.shape_cast %149 : vector<1xf32> to vector<1x1xf32>
    %151 = arith.addf %129, %150 : vector<1x1xf32>
    %cst_76 = arith.constant 9.765625E-4 : f32
    %152 = vector.broadcast %cst_76 : f32 to vector<1x1xf32>
    %153 = arith.mulf %151, %152 : vector<1x1xf32>
    %cst_77 = arith.constant 0.000000e+00 : f32
    %154 = vector.broadcast %cst_77 : f32 to vector<1x1xf32>
    %155 = arith.cmpf ogt, %153, %154 : vector<1x1xf32>
    %156 = math.exp %153 : vector<1x1xf32>
    %cst_78 = arith.constant 1.000000e+00 : f32
    %157 = vector.broadcast %cst_78 : f32 to vector<1x1xf32>
    %158 = arith.subf %156, %157 : vector<1x1xf32>
    %159 = arith.select %155, %153, %158 : vector<1x1xi1>, vector<1x1xf32>
    %160 = vector.broadcast %159 : vector<1x1xf32> to vector<16x32xf32>
    %161 = arith.addf %88, %160 : vector<16x32xf32>
    %c2 = arith.constant 2 : index
    %c0_79 = arith.constant 0 : index
    %c0_80 = arith.constant 0 : index
    %162 = vector.load %arg5[%c2, %c0_79, %c0_80] : memref<3x32x6xf32, #tpu.memory_space<vmem>>, vector<1x32x6xf32>
    %163 = vector.shape_cast %162 : vector<1x32x6xf32> to vector<32x6xf32>
    %cst_81 = arith.constant dense<0.000000e+00> : vector<16x6xf32>
    %164 = tpu.matmul %161, %163, %cst_81 {dimension_numbers = #tpu.dot_dimension_numbers<[1], [0], [0], [1], [0, 0, 1, 1], [], []>} : vector<16x32xf32>, vector<32x6xf32>, vector<16x6xf32> -> vector<16x6xf32>
    %165 = vector.extract_strided_slice %164 {offsets = [0, 0], sizes = [16, 2], strides = [1, 1]} : vector<16x6xf32> to vector<16x2xf32>
    %166 = vector.extract_strided_slice %164 {offsets = [0, 2], sizes = [16, 2], strides = [1, 1]} : vector<16x6xf32> to vector<16x2xf32>
    %167 = vector.extract_strided_slice %164 {offsets = [0, 4], sizes = [16, 2], strides = [1, 1]} : vector<16x6xf32> to vector<16x2xf32>
    %c2_82 = arith.constant 2 : index
    %c0_83 = arith.constant 0 : index
    %c0_84 = arith.constant 0 : index
    %168 = vector.load %arg6[%c2_82, %c0_83, %c0_84] : memref<3x8x2xf32, #tpu.memory_space<vmem>>, vector<1x8x2xf32>
    %169 = vector.shape_cast %168 : vector<1x8x2xf32> to vector<8x2xf32>
    %cst_85 = arith.constant dense<0.000000e+00> : vector<32x2xf32>
    %170 = tpu.matmul %12, %169, %cst_85 {dimension_numbers = #tpu.dot_dimension_numbers<[1], [0], [0], [1], [0, 0, 1, 1], [], []>} : vector<32x8xf32>, vector<8x2xf32>, vector<32x2xf32> -> vector<32x2xf32>
    %cst_86 = arith.constant dense<0.000000e+00> : vector<32x2xf32>
    %171 = tpu.matmul %13, %166, %cst_86 {dimension_numbers = #tpu.dot_dimension_numbers<[1], [0], [0], [1], [0, 0, 1, 1], [], []>} : vector<32x16xf32>, vector<16x2xf32>, vector<32x2xf32> -> vector<32x2xf32>
    %cst_87 = arith.constant dense<0.000000e+00> : vector<32x2xf32>
    %172 = tpu.matmul %14, %167, %cst_87 {dimension_numbers = #tpu.dot_dimension_numbers<[1], [0], [0], [1], [0, 0, 1, 1], [], []>} : vector<32x16xf32>, vector<16x2xf32>, vector<32x2xf32> -> vector<32x2xf32>
    %173 = arith.addf %171, %172 : vector<32x2xf32>
    %174 = arith.addf %173, %170 : vector<32x2xf32>
    %cst_88 = arith.constant 0.000000e+00 : f32
    %175 = vector.broadcast %cst_88 : f32 to vector<32x2xf32>
    %176 = arith.cmpf ogt, %174, %175 : vector<32x2xf32>
    %cst_89 = arith.constant 0.00999999977 : f32
    %177 = vector.broadcast %cst_89 : f32 to vector<32x2xf32>
    %178 = arith.mulf %177, %174 : vector<32x2xf32>
    %179 = arith.select %176, %174, %178 : vector<32x2xi1>, vector<32x2xf32>
    %cst_90 = arith.constant 0.000000e+00 : f32
    %180 = vector.broadcast %cst_90 : f32 to vector<1x1xf32>
    %181 = vector.extract_strided_slice %179 {offsets = [0, 0], sizes = [32, 1], strides = [1, 1]} : vector<32x2xf32> to vector<32x1xf32>
    %182 = vector.broadcast %181 : vector<32x1xf32> to vector<32x16xf32>
    %183 = arith.mulf %182, %13 : vector<32x16xf32>
    %cst_91 = arith.constant dense<0.000000e+00> : vector<16x16xf32>
    %184 = tpu.matmul %15, %183, %cst_91 {dimension_numbers = #tpu.dot_dimension_numbers<[1], [0], [0], [1], [0, 0, 1, 1], [], []>} : vector<16x32xf32>, vector<32x16xf32>, vector<16x16xf32> -> vector<16x16xf32>
    %cst_92 = arith.constant 0.000000e+00 : f32
    %185 = vector.broadcast %cst_92 : f32 to vector<16x16xf32>
    %186 = arith.cmpf ogt, %11, %185 : vector<16x16xf32>
    %cst_93 = arith.constant -1.000000e+30 : f32
    %187 = vector.broadcast %cst_93 : f32 to vector<16x16xf32>
    %188 = arith.select %186, %184, %187 : vector<16x16xi1>, vector<16x16xf32>
    %cst_94 = arith.constant dense<0xFF800000> : vector<16xf32>
    %189 = vector.multi_reduction <maximumf>, %188, %cst_94 [1] : vector<16x16xf32> to vector<16xf32>
    %190 = vector.shape_cast %189 : vector<16xf32> to vector<16x1xf32>
    %191 = vector.broadcast %190 : vector<16x1xf32> to vector<16x16xf32>
    %192 = arith.subf %188, %191 : vector<16x16xf32>
    %193 = math.exp %192 : vector<16x16xf32>
    %cst_95 = arith.constant dense<0.000000e+00> : vector<16xf32>
    %194 = vector.multi_reduction <add>, %193, %cst_95 [1] : vector<16x16xf32> to vector<16xf32>
    %195 = vector.shape_cast %194 : vector<16xf32> to vector<16x1xf32>
    %196 = vector.broadcast %195 : vector<16x1xf32> to vector<16x16xf32>
    %197 = arith.divf %193, %196 : vector<16x16xf32>
    %198 = vector.extract_strided_slice %165 {offsets = [0, 0], sizes = [16, 1], strides = [1, 1]} : vector<16x2xf32> to vector<16x1xf32>
    %cst_96 = arith.constant dense<0.000000e+00> : vector<16x1xf32>
    %199 = tpu.matmul %197, %198, %cst_96 {dimension_numbers = #tpu.dot_dimension_numbers<[1], [0], [0], [1], [0, 0, 1, 1], [], []>} : vector<16x16xf32>, vector<16x1xf32>, vector<16x1xf32> -> vector<16x1xf32>
    %cst_97 = arith.constant dense<0.000000e+00> : vector<1xf32>
    %200 = vector.multi_reduction <add>, %199, %cst_97 [0] : vector<16x1xf32> to vector<1xf32>
    %201 = vector.shape_cast %200 : vector<1xf32> to vector<1x1xf32>
    %202 = arith.addf %180, %201 : vector<1x1xf32>
    %203 = vector.extract_strided_slice %179 {offsets = [0, 1], sizes = [32, 1], strides = [1, 1]} : vector<32x2xf32> to vector<32x1xf32>
    %204 = vector.broadcast %203 : vector<32x1xf32> to vector<32x16xf32>
    %205 = arith.mulf %204, %13 : vector<32x16xf32>
    %cst_98 = arith.constant dense<0.000000e+00> : vector<16x16xf32>
    %206 = tpu.matmul %15, %205, %cst_98 {dimension_numbers = #tpu.dot_dimension_numbers<[1], [0], [0], [1], [0, 0, 1, 1], [], []>} : vector<16x32xf32>, vector<32x16xf32>, vector<16x16xf32> -> vector<16x16xf32>
    %cst_99 = arith.constant 0.000000e+00 : f32
    %207 = vector.broadcast %cst_99 : f32 to vector<16x16xf32>
    %208 = arith.cmpf ogt, %11, %207 : vector<16x16xf32>
    %cst_100 = arith.constant -1.000000e+30 : f32
    %209 = vector.broadcast %cst_100 : f32 to vector<16x16xf32>
    %210 = arith.select %208, %206, %209 : vector<16x16xi1>, vector<16x16xf32>
    %cst_101 = arith.constant dense<0xFF800000> : vector<16xf32>
    %211 = vector.multi_reduction <maximumf>, %210, %cst_101 [1] : vector<16x16xf32> to vector<16xf32>
    %212 = vector.shape_cast %211 : vector<16xf32> to vector<16x1xf32>
    %213 = vector.broadcast %212 : vector<16x1xf32> to vector<16x16xf32>
    %214 = arith.subf %210, %213 : vector<16x16xf32>
    %215 = math.exp %214 : vector<16x16xf32>
    %cst_102 = arith.constant dense<0.000000e+00> : vector<16xf32>
    %216 = vector.multi_reduction <add>, %215, %cst_102 [1] : vector<16x16xf32> to vector<16xf32>
    %217 = vector.shape_cast %216 : vector<16xf32> to vector<16x1xf32>
    %218 = vector.broadcast %217 : vector<16x1xf32> to vector<16x16xf32>
    %219 = arith.divf %215, %218 : vector<16x16xf32>
    %220 = vector.extract_strided_slice %165 {offsets = [0, 1], sizes = [16, 1], strides = [1, 1]} : vector<16x2xf32> to vector<16x1xf32>
    %cst_103 = arith.constant dense<0.000000e+00> : vector<16x1xf32>
    %221 = tpu.matmul %219, %220, %cst_103 {dimension_numbers = #tpu.dot_dimension_numbers<[1], [0], [0], [1], [0, 0, 1, 1], [], []>} : vector<16x16xf32>, vector<16x1xf32>, vector<16x1xf32> -> vector<16x1xf32>
    %cst_104 = arith.constant dense<0.000000e+00> : vector<1xf32>
    %222 = vector.multi_reduction <add>, %221, %cst_104 [0] : vector<16x1xf32> to vector<1xf32>
    %223 = vector.shape_cast %222 : vector<1xf32> to vector<1x1xf32>
    %224 = arith.addf %202, %223 : vector<1x1xf32>
    %cst_105 = arith.constant 9.765625E-4 : f32
    %225 = vector.broadcast %cst_105 : f32 to vector<1x1xf32>
    %226 = arith.mulf %224, %225 : vector<1x1xf32>
    %cst_106 = arith.constant 0.000000e+00 : f32
    %227 = vector.broadcast %cst_106 : f32 to vector<1x1xf32>
    %228 = arith.cmpf ogt, %226, %227 : vector<1x1xf32>
    %229 = math.exp %226 : vector<1x1xf32>
    %cst_107 = arith.constant 1.000000e+00 : f32
    %230 = vector.broadcast %cst_107 : f32 to vector<1x1xf32>
    %231 = arith.subf %229, %230 : vector<1x1xf32>
    %232 = arith.select %228, %226, %231 : vector<1x1xi1>, vector<1x1xf32>
    %233 = vector.broadcast %232 : vector<1x1xf32> to vector<16x32xf32>
    %234 = arith.addf %161, %233 : vector<16x32xf32>
    %c0_108 = arith.constant 0 : index
    %c0_109 = arith.constant 0 : index
    %235 = vector.load %arg12[%c0_108, %c0_109] : memref<32x32xf32, #tpu.memory_space<vmem>>, vector<32x32xf32>
    %cst_110 = arith.constant dense<0.000000e+00> : vector<16x32xf32>
    %236 = tpu.matmul %234, %235, %cst_110 {dimension_numbers = #tpu.dot_dimension_numbers<[1], [0], [0], [1], [0, 0, 1, 1], [], []>} : vector<16x32xf32>, vector<32x32xf32>, vector<16x32xf32> -> vector<16x32xf32>
    %c0_111 = arith.constant 0 : index
    %c0_112 = arith.constant 0 : index
    %237 = vector.load %arg13[%c0_111, %c0_112] : memref<1x32xf32, #tpu.memory_space<vmem>>, vector<1x32xf32>
    %238 = vector.broadcast %237 : vector<1x32xf32> to vector<16x32xf32>
    %239 = arith.addf %236, %238 : vector<16x32xf32>
    %c0_113 = arith.constant 0 : index
    %c0_114 = arith.constant 0 : index
    %240 = vector.load %arg14[%c0_113, %c0_114] : memref<32x8xf32, #tpu.memory_space<vmem>>, vector<32x8xf32>
    %cst_115 = arith.constant dense<0.000000e+00> : vector<16x8xf32>
    %241 = tpu.matmul %239, %240, %cst_115 {dimension_numbers = #tpu.dot_dimension_numbers<[1], [0], [0], [1], [0, 0, 1, 1], [], []>} : vector<16x32xf32>, vector<32x8xf32>, vector<16x8xf32> -> vector<16x8xf32>
    %c0_116 = arith.constant 0 : index
    %c0_117 = arith.constant 0 : index
    %242 = vector.load %arg15[%c0_116, %c0_117] : memref<1x8xf32, #tpu.memory_space<vmem>>, vector<1x8xf32>
    %243 = vector.broadcast %242 : vector<1x8xf32> to vector<16x8xf32>
    %244 = arith.addf %241, %243 : vector<16x8xf32>
    %c0_118 = arith.constant 0 : index
    %c0_119 = arith.constant 0 : index
    %245 = vector.load %arg16[%c0_118, %c0_119] : memref<16x8xf32, #tpu.memory_space<vmem>>, vector<16x8xf32>
    tpu.vector_store %arg16[%c0_118, %c0_119], %244 {strides = array<i32>} : memref<16x8xf32, #tpu.memory_space<vmem>>, vector<16x8xf32>,
    return
  }
}

</mosaic_0001>

<llo_original>
// kernel: gat_s_forward.1
$region0: #{gat_s_forward.1}
  #allocation0 [shape = 'u32[]', space=smem, size = 0x4, offset = 0x4, fixed_abs, tag = 'smem constant byte address 0x4 - core index']
  #allocation1 [shape = 'u32[144,128]{1,0:T(1,128)}', space=vmem, size = 0x12000, scoped, tag = 'internal scratch']
  %s0 = inlined_call_operand.vmem [shape: f32[16,16], index: 0, kind: input, shape index: {}]
  %s1 = inlined_call_operand.vmem [shape: f32[16,32], index: 1, kind: input, shape index: {}]
  %s2 = inlined_call_operand.vmem [shape: f32[1,32], index: 2, kind: input, shape index: {}]
  %s3 = inlined_call_operand.vmem [shape: f32[32,32], index: 3, kind: input, shape index: {}]
  %s4 = inlined_call_operand.vmem [shape: f32[1,32], index: 4, kind: input, shape index: {}]
  %s5 = inlined_call_operand.vmem [shape: f32[3,32,6], index: 5, kind: input, shape index: {}]
  %s6 = inlined_call_operand.vmem [shape: f32[3,8,2], index: 6, kind: input, shape index: {}]
  %s7 = inlined_call_operand.vmem [shape: f32[32,8], index: 7, kind: input, shape index: {}]
  %s8 = inlined_call_operand.vmem [shape: f32[32,16], index: 8, kind: input, shape index: {}]
  %s9 = inlined_call_operand.vmem [shape: f32[32,16], index: 9, kind: input, shape index: {}]
  %s10 = inlined_call_operand.vmem [shape: f32[16,32], index: 10, kind: input, shape index: {}]
  %s11 = inlined_call_operand.vmem [shape: f32[16,16], index: 11, kind: input, shape index: {}]
  %s12 = inlined_call_operand.vmem [shape: f32[32,32], index: 12, kind: input, shape index: {}]
  %s13 = inlined_call_operand.vmem [shape: f32[1,32], index: 13, kind: input, shape index: {}]
  %s14 = inlined_call_operand.vmem [shape: f32[32,8], index: 14, kind: input, shape index: {}]
  %s15 = inlined_call_operand.vmem [shape: f32[1,8], index: 15, kind: input, shape index: {}]
  %s16 = inlined_call_operand.vmem [shape: f32[16,8], index: 16, kind: output, shape index: {}]
  %s17 = sld [smem:[#allocation0]]
  $region74: #{gat_s_forward.1} parent=0
    _
  %s19 = ssub.s32 1, %s17
  %s20 = scalar_select 0, %s19, %s17
  // Predicated region
  $region2: #{gat_s_forward.1} parent=0 // pred_check
    _
  $region3: #{gat_s_forward.1} parent=0 // pred_check_branch
    %22 = sbr.rel (0) target = $region5
  $region4: #{gat_s_forward.1} parent=0 // pred_region
    _
  $region5: #{gat_s_forward.1} parent=0 // pred_fallthru
    _
  // Predicated region
  $region6: #{gat_s_forward.1} parent=0 // pred_check
    _
  $region7: #{gat_s_forward.1} parent=0 // pred_check_branch
    %24 = sbr.rel (0) target = $region9
  $region8: #{gat_s_forward.1} parent=0 // pred_region
    _
  $region9: #{gat_s_forward.1} parent=0 // pred_fallthru
    _
  // Predicated region
  $region10: #{gat_s_forward.1} parent=0 // pred_check
    _
  $region11: #{gat_s_forward.1} parent=0 // pred_check_branch
    %26 = sbr.rel (0) target = $region13
  $region12: #{gat_s_forward.1} parent=0 // pred_region
    _
  $region13: #{gat_s_forward.1} parent=0 // pred_fallthru
    _
  // Predicated region
  $region14: #{gat_s_forward.1} parent=0 // pred_check
    _
  $region15: #{gat_s_forward.1} parent=0 // pred_check_branch
    %28 = sbr.rel (0) target = $region17
  $region16: #{gat_s_forward.1} parent=0 // pred_region
    _
  $region17: #{gat_s_forward.1} parent=0 // pred_fallthru
    _
  // Predicated region
  $region18: #{gat_s_forward.1} parent=0 // pred_check
    _
  $region19: #{gat_s_forward.1} parent=0 // pred_check_branch
    %30 = sbr.rel (0) target = $region21
  $region20: #{gat_s_forward.1} parent=0 // pred_region
    _
  $region21: #{gat_s_forward.1} parent=0 // pred_fallthru
    _
  // Predicated region
  $region22: #{gat_s_forward.1} parent=0 // pred_check
    _
  $region23: #{gat_s_forward.1} parent=0 // pred_check_branch
    %32 = sbr.rel (0) target = $region25
  $region24: #{gat_s_forward.1} parent=0 // pred_region
    _
  $region25: #{gat_s_forward.1} parent=0 // pred_fallthru
    _
  // Predicated region
  $region26: #{gat_s_forward.1} parent=0 // pred_check
    _
  $region27: #{gat_s_forward.1} parent=0 // pred_check_branch
    %34 = sbr.rel (0) target = $region29
  $region28: #{gat_s_forward.1} parent=0 // pred_region
    _
  $region29: #{gat_s_forward.1} parent=0 // pred_fallthru
    _
  // Predicated region
  $region30: #{gat_s_forward.1} parent=0 // pred_check
    _
  $region31: #{gat_s_forward.1} parent=0 // pred_check_branch
    %36 = sbr.rel (0) target = $region33
  $region32: #{gat_s_forward.1} parent=0 // pred_region
    _
  $region33: #{gat_s_forward.1} parent=0 // pred_fallthru
    _
  // Predicated region
  $region34: #{gat_s_forward.1} parent=0 // pred_check
    _
  $region35: #{gat_s_forward.1} parent=0 // pred_check_branch
    %38 = sbr.rel (0) target = $region37
  $region36: #{gat_s_forward.1} parent=0 // pred_region
    _
  $region37: #{gat_s_forward.1} parent=0 // pred_fallthru
    _
  // Predicated region
  $region38: #{gat_s_forward.1} parent=0 // pred_check
    _
  $region39: #{gat_s_forward.1} parent=0 // pred_check_branch
    %40 = sbr.rel (0) target = $region41
  $region40: #{gat_s_forward.1} parent=0 // pred_region
    _
  $region41: #{gat_s_forward.1} parent=0 // pred_fallthru
    _
  // Predicated region
  $region42: #{gat_s_forward.1} parent=0 // pred_check
    _
  $region43: #{gat_s_forward.1} parent=0 // pred_check_branch
    %42 = sbr.rel (0) target = $region45
  $region44: #{gat_s_forward.1} parent=0 // pred_region
    _
  $region45: #{gat_s_forward.1} parent=0 // pred_fallthru
    _
  // Predicated region
  $region46: #{gat_s_forward.1} parent=0 // pred_check
    _
  $region47: #{gat_s_forward.1} parent=0 // pred_check_branch
    %44 = sbr.rel (0) target = $region49
  $region48: #{gat_s_forward.1} parent=0 // pred_region
    _
  $region49: #{gat_s_forward.1} parent=0 // pred_fallthru
    _
  // Predicated region
  $region50: #{gat_s_forward.1} parent=0 // pred_check
    _
  $region51: #{gat_s_forward.1} parent=0 // pred_check_branch
    %46 = sbr.rel (0) target = $region53
  $region52: #{gat_s_forward.1} parent=0 // pred_region
    _
  $region53: #{gat_s_forward.1} parent=0 // pred_fallthru
    _
  // Predicated region
  $region54: #{gat_s_forward.1} parent=0 // pred_check
    _
  $region55: #{gat_s_forward.1} parent=0 // pred_check_branch
    %48 = sbr.rel (0) target = $region57
  $region56: #{gat_s_forward.1} parent=0 // pred_region
    _
  $region57: #{gat_s_forward.1} parent=0 // pred_fallthru
    _
  // Predicated region
  $region58: #{gat_s_forward.1} parent=0 // pred_check
    _
  $region59: #{gat_s_forward.1} parent=0 // pred_check_branch
    %50 = sbr.rel (0) target = $region61
  $region60: #{gat_s_forward.1} parent=0 // pred_region
    _
  $region61: #{gat_s_forward.1} parent=0 // pred_fallthru
    _
  // Predicated region
  $region62: #{gat_s_forward.1} parent=0 // pred_check
    _
  $region63: #{gat_s_forward.1} parent=0 // pred_check_branch
    %52 = sbr.rel (0) target = $region65
  $region64: #{gat_s_forward.1} parent=0 // pred_region
    _
  $region65: #{gat_s_forward.1} parent=0 // pred_fallthru
    _
  %v53 = vld [vmem:[%s0] sm:$0xff]
  %v54 = vld [vmem:[%s0 + $0x8] sm:$0xff]
  %v55 = vld [vmem:[%s1] sm:$0xff]
  %v56 = vld [vmem:[%s1 + $0x8] sm:$0xff]
  %v57 = vld [vmem:[%s2] sm:$0x1]
  %v59 = vlaneseq
  %v60 = vshrl.u32 %v59, 7
  %v61 = vsub.s32 0, %v60
  %v62 = vrot.slane %v57, %v61
  %vm64 = vcmask 130048
  %v66 = vsel %vm64, %v53, 0
  %v69 = vsel %vm64, %v54, 0
  %71 = vmatprep.subr.mxu0 0.0
  %72 = vmatpush1.msra.mxu0 %v55
  %73 = vmatprep.subr.mxu0 0.0
  %74 = vmatpush1.msra.mxu0 %v56
  %75 = vmatprep.subr.mxu0 0.0
  %76 = vmatpush1.msra.mxu0 0.0
  %77 = vmatprep.subr.mxu0 0.0
  %78 = vmatpush1.msra.mxu0 0.0
  %79 = vmatprep.subr.mxu0 0.0
  %80 = vmatpush1.msra.mxu0 0.0
  %81 = vmatprep.subr.mxu0 0.0
  %82 = vmatpush1.msra.mxu0 0.0
  %83 = vmatprep.subr.mxu0 0.0
  %84 = vmatpush1.msra.mxu0 0.0
  %85 = vmatprep.subr.mxu0 0.0
  %86 = vmatpush1.msra.mxu0 0.0
  %87 = vmatprep.subr.mxu0 0.0
  %88 = vmatpush1.msra.mxu0 0.0
  %89 = vmatprep.subr.mxu0 0.0
  %90 = vmatpush1.msra.mxu0 0.0
  %91 = vmatprep.subr.mxu0 0.0
  %92 = vmatpush1.msra.mxu0 0.0
  %93 = vmatprep.subr.mxu0 0.0
  %94 = vmatpush1.msra.mxu0 0.0
  %95 = vmatprep.subr.mxu0 0.0
  %96 = vmatpush1.msra.mxu0 0.0
  %97 = vmatprep.subr.mxu0 0.0
  %98 = vmatpush1.msra.mxu0 0.0
  %99 = vmatprep.subr.mxu0 0.0
  %100 = vmatpush1.msra.mxu0 0.0
  %101 = vmatprep.subr.mxu0 0.0
  %102 = vmatpush1.msra.mxu0 0.0
  %103 = vmatprep.subr.mxu0 0.0
  %104 = vmatpush1.msra.mxu0 0.0
  %105 = vmatprep.subr.mxu0 0.0
  %106 = vmatpush1.msra.mxu0 0.0
  %107 = vmatprep.subr.mxu0 0.0
  %108 = vmatpush1.msra.mxu0 0.0
  %109 = vmatprep.subr.mxu0 0.0
  %110 = vmatpush1.msra.mxu0 0.0
  %111 = vmatprep.subr.mxu0 0.0
  %112 = vmatpush1.msra.mxu0 0.0
  %113 = vmatprep.subr.mxu0 0.0
  %114 = vmatpush1.msra.mxu0 0.0
  %115 = vmatprep.subr.mxu0 0.0
  %116 = vmatpush1.msra.mxu0 0.0
  %117 = vmatprep.subr.mxu0 0.0
  %118 = vmatpush1.msra.mxu0 0.0
  %119 = vmatprep.subr.mxu0 0.0
  %120 = vmatpush1.msra.mxu0 0.0
  %121 = vmatprep.subr.mxu0 0.0
  %122 = vmatpush1.msra.mxu0 0.0
  %123 = vmatprep.subr.mxu0 0.0
  %124 = vmatpush1.msra.mxu0 0.0
  %125 = vmatprep.subr.mxu0 0.0
  %126 = vmatpush1.msra.mxu0 0.0
  %127 = vmatprep.subr.mxu0 0.0
  %128 = vmatpush1.msra.mxu0 0.0
  %129 = vmatprep.subr.mxu0 0.0
  %130 = vmatpush1.msra.mxu0 0.0
  %131 = vmatprep.subr.mxu0 0.0
  %132 = vmatpush1.msra.mxu0 0.0
  %133 = vmatprep.subr.mxu0 0.0
  %134 = vmatpush1.msra.mxu0 0.0
  %135 = vmatprep.mubr.f32.mxu0 0.0
  %136 = vmatmul.mubr.f32.gmra.mrb[0].mxu0 %v66
  %v137 = vpop.f32.mrb[0].mxu0
  %v138 = vadd.f32 %v62, %v137
  %v139 = vpop.f32.mrb[0].mxu0
  %140 = vmatprep.mubr.f32.mxu0 0.0
  %141 = vmatmul.mubr.f32.gmra.mrb[0].mxu0 %v69
  %v142 = vpop.f32.mrb[0].mxu0
  %v143 = vadd.f32 %v62, %v142
  %v144 = vpop.f32.mrb[0].mxu0
  %145 = vdwg.mxu0
  %v146 = vld [vmem:[%s3] sm:$0xff]
  %v147 = vld [vmem:[%s3 + $0x8] sm:$0xff]
  %v148 = vld [vmem:[%s3 + $0x10] sm:$0xff]
  %v149 = vld [vmem:[%s3 + $0x18] sm:$0xff]
  %v150 = vld [vmem:[%s4] sm:$0x1]
  %v152 = vlaneseq
  %v153 = vshrl.u32 %v152, 7
  %v154 = vsub.s32 0, %v153
  %v155 = vrot.slane %v150, %v154
  %vm157 = vcmask 261120
  %v159 = vsel %vm157, %v138, 0
  %v162 = vsel %vm157, %v143, 0
  %164 = vmatprep.subr.mxu0 0.0
  %165 = vmatpush1.msra.mxu0 %v146
  %166 = vmatprep.subr.mxu0 0.0
  %167 = vmatpush1.msra.mxu0 %v147
  %168 = vmatprep.subr.mxu0 0.0
  %169 = vmatpush1.msra.mxu0 %v148
  %170 = vmatprep.subr.mxu0 0.0
  %171 = vmatpush1.msra.mxu0 %v149
  %172 = vmatprep.subr.mxu0 0.0
  %173 = vmatpush1.msra.mxu0 0.0
  %174 = vmatprep.subr.mxu0 0.0
  %175 = vmatpush1.msra.mxu0 0.0
  %176 = vmatprep.subr.mxu0 0.0
  %177 = vmatpush1.msra.mxu0 0.0
  %178 = vmatprep.subr.mxu0 0.0
  %179 = vmatpush1.msra.mxu0 0.0
  %180 = vmatprep.subr.mxu0 0.0
  %181 = vmatpush1.msra.mxu0 0.0
  %182 = vmatprep.subr.mxu0 0.0
  %183 = vmatpush1.msra.mxu0 0.0
  %184 = vmatprep.subr.mxu0 0.0
  %185 = vmatpush1.msra.mxu0 0.0
  %186 = vmatprep.subr.mxu0 0.0
  %187 = vmatpush1.msra.mxu0 0.0
  %188 = vmatprep.subr.mxu0 0.0
  %189 = vmatpush1.msra.mxu0 0.0
  %190 = vmatprep.subr.mxu0 0.0
  %191 = vmatpush1.msra.mxu0 0.0
  %192 = vmatprep.subr.mxu0 0.0
  %193 = vmatpush1.msra.mxu0 0.0
  %194 = vmatprep.subr.mxu0 0.0
  %195 = vmatpush1.msra.mxu0 0.0
  %196 = vmatprep.subr.mxu0 0.0
  %197 = vmatpush1.msra.mxu0 0.0
  %198 = vmatprep.subr.mxu0 0.0
  %199 = vmatpush1.msra.mxu0 0.0
  %200 = vmatprep.subr.mxu0 0.0
  %201 = vmatpush1.msra.mxu0 0.0
  %202 = vmatprep.subr.mxu0 0.0
  %203 = vmatpush1.msra.mxu0 0.0
  %204 = vmatprep.subr.mxu0 0.0
  %205 = vmatpush1.msra.mxu0 0.0
  %206 = vmatprep.subr.mxu0 0.0
  %207 = vmatpush1.msra.mxu0 0.0
  %208 = vmatprep.subr.mxu0 0.0
  %209 = vmatpush1.msra.mxu0 0.0
  %210 = vmatprep.subr.mxu0 0.0
  %211 = vmatpush1.msra.mxu0 0.0
  %212 = vmatprep.subr.mxu0 0.0
  %213 = vmatpush1.msra.mxu0 0.0
  %214 = vmatprep.subr.mxu0 0.0
  %215 = vmatpush1.msra.mxu0 0.0
  %216 = vmatprep.subr.mxu0 0.0
  %217 = vmatpush1.msra.mxu0 0.0
  %218 = vmatprep.subr.mxu0 0.0
  %219 = vmatpush1.msra.mxu0 0.0
  %220 = vmatprep.subr.mxu0 0.0
  %221 = vmatpush1.msra.mxu0 0.0
  %222 = vmatprep.subr.mxu0 0.0
  %223 = vmatpush1.msra.mxu0 0.0
  %224 = vmatprep.subr.mxu0 0.0
  %225 = vmatpush1.msra.mxu0 0.0
  %226 = vmatprep.subr.mxu0 0.0
  %227 = vmatpush1.msra.mxu0 0.0
  %228 = vmatprep.mubr.f32.mxu0 0.0
  %229 = vmatmul.mubr.f32.gmra.mrb[0].mxu0 %v159
  %v230 = vpop.f32.mrb[0].mxu0
  %v231 = vadd.f32 %v155, %v230
  %v232 = vpop.f32.mrb[0].mxu0
  %233 = vmatprep.mubr.f32.mxu0 0.0
  %234 = vmatmul.mubr.f32.gmra.mrb[0].mxu0 %v162
  %v235 = vpop.f32.mrb[0].mxu0
  %v236 = vadd.f32 %v155, %v235
  %v237 = vpop.f32.mrb[0].mxu0
  %238 = vdwg.mxu0
  %v239 = vld [vmem:[%s11] sm:$0xff]
  %v240 = vld [vmem:[%s11 + $0x8] sm:$0xff]
  %v241 = vld [vmem:[%s7] sm:$0xff]
  %v242 = vld [vmem:[%s7 + $0x8] sm:$0xff]
  %v243 = vld [vmem:[%s7 + $0x10] sm:$0xff]
  %v244 = vld [vmem:[%s7 + $0x18] sm:$0xff]
  %v245 = vld [vmem:[%s8] sm:$0xff]
  %v246 = vld [vmem:[%s8 + $0x8] sm:$0xff]
  %v247 = vld [vmem:[%s8 + $0x10] sm:$0xff]
  %v248 = vld [vmem:[%s8 + $0x18] sm:$0xff]
  %v249 = vld [vmem:[%s9] sm:$0xff]
  %v250 = vld [vmem:[%s9 + $0x8] sm:$0xff]
  %v251 = vld [vmem:[%s9 + $0x10] sm:$0xff]
  %v252 = vld [vmem:[%s9 + $0x18] sm:$0xff]
  %v253 = vld [vmem:[%s10] sm:$0xff]
  %v254 = vld [vmem:[%s10 + $0x8] sm:$0xff]
  %v255 = vld [vmem:[%s5] sm:$0xff]
  %v256 = vld [vmem:[%s5 + $0x8] sm:$0xff]
  %v257 = vld [vmem:[%s5 + $0x10] sm:$0xff]
  %v258 = vld [vmem:[%s5 + $0x18] sm:$0xff]
  %v260 = vsel %vm157, %v231, 0
  %v263 = vsel %vm157, %v236, 0
  %265 = vmatprep.subr.mxu0 0.0
  %266 = vmatpush1.msra.mxu0 %v255
  %267 = vmatprep.subr.mxu0 0.0
  %268 = vmatpush1.msra.mxu0 %v256
  %269 = vmatprep.subr.mxu0 0.0
  %270 = vmatpush1.msra.mxu0 %v257
  %271 = vmatprep.subr.mxu0 0.0
  %272 = vmatpush1.msra.mxu0 %v258
  %273 = vmatprep.subr.mxu0 0.0
  %274 = vmatpush1.msra.mxu0 0.0
  %275 = vmatprep.subr.mxu0 0.0
  %276 = vmatpush1.msra.mxu0 0.0
  %277 = vmatprep.subr.mxu0 0.0
  %278 = vmatpush1.msra.mxu0 0.0
  %279 = vmatprep.subr.mxu0 0.0
  %280 = vmatpush1.msra.mxu0 0.0
  %281 = vmatprep.subr.mxu0 0.0
  %282 = vmatpush1.msra.mxu0 0.0
  %283 = vmatprep.subr.mxu0 0.0
  %284 = vmatpush1.msra.mxu0 0.0
  %285 = vmatprep.subr.mxu0 0.0
  %286 = vmatpush1.msra.mxu0 0.0
  %287 = vmatprep.subr.mxu0 0.0
  %288 = vmatpush1.msra.mxu0 0.0
  %289 = vmatprep.subr.mxu0 0.0
  %290 = vmatpush1.msra.mxu0 0.0
  %291 = vmatprep.subr.mxu0 0.0
  %292 = vmatpush1.msra.mxu0 0.0
  %293 = vmatprep.subr.mxu0 0.0
  %294 = vmatpush1.msra.mxu0 0.0
  %295 = vmatprep.subr.mxu0 0.0
  %296 = vmatpush1.msra.mxu0 0.0
  %297 = vmatprep.subr.mxu0 0.0
  %298 = vmatpush1.msra.mxu0 0.0
  %299 = vmatprep.subr.mxu0 0.0
  %300 = vmatpush1.msra.mxu0 0.0
  %301 = vmatprep.subr.mxu0 0.0
  %302 = vmatpush1.msra.mxu0 0.0
  %303 = vmatprep.subr.mxu0 0.0
  %304 = vmatpush1.msra.mxu0 0.0
  %305 = vmatprep.subr.mxu0 0.0
  %306 = vmatpush1.msra.mxu0 0.0
  %307 = vmatprep.subr.mxu0 0.0
  %308 = vmatpush1.msra.mxu0 0.0
  %309 = vmatprep.subr.mxu0 0.0
  %310 = vmatpush1.msra.mxu0 0.0
  %311 = vmatprep.subr.mxu0 0.0
  %312 = vmatpush1.msra.mxu0 0.0
  %313 = vmatprep.subr.mxu0 0.0
  %314 = vmatpush1.msra.mxu0 0.0
  %315 = vmatprep.subr.mxu0 0.0
  %316 = vmatpush1.msra.mxu0 0.0
  %317 = vmatprep.subr.mxu0 0.0
  %318 = vmatpush1.msra.mxu0 0.0
  %319 = vmatprep.subr.mxu0 0.0
  %320 = vmatpush1.msra.mxu0 0.0
  %321 = vmatprep.subr.mxu0 0.0
  %322 = vmatpush1.msra.mxu0 0.0
  %323 = vmatprep.subr.mxu0 0.0
  %324 = vmatpush1.msra.mxu0 0.0
  %325 = vmatprep.subr.mxu0 0.0
  %326 = vmatpush1.msra.mxu0 0.0
  %327 = vmatprep.subr.mxu0 0.0
  %328 = vmatpush1.msra.mxu0 0.0
  %329 = vmatprep.mubr.f32.mxu0 0.0
  %330 = vmatmul.mubr.f32.gmra.mrb[0].mxu0 %v260
  %v331 = vpop.f32.mrb[0].mxu0
  %v332 = vadd.f32 0.0, %v331
  %v333 = vpop.f32.mrb[0].mxu0
  %334 = vmatprep.mubr.f32.mxu0 0.0
  %335 = vmatmul.mubr.f32.gmra.mrb[0].mxu0 %v263
  %v336 = vpop.f32.mrb[0].mxu0
  %v337 = vadd.f32 0.0, %v336
  %v338 = vpop.f32.mrb[0].mxu0
  %339 = vdwg.mxu0
  %v340 = vld [vmem:[%s6] sm:$0xff]
  %vm341 = vcmask 64512
  %v343 = vsel %vm341, %v241, 0
  %v346 = vsel %vm341, %v242, 0
  %v349 = vsel %vm341, %v243, 0
  %v352 = vsel %vm341, %v244, 0
  %354 = vmatprep.subr.mxu0 0.0
  %355 = vmatpush1.msra.mxu0 %v340
  %356 = vmatprep.subr.mxu0 0.0
  %357 = vmatpush1.msra.mxu0 0.0
  %358 = vmatprep.subr.mxu0 0.0
  %359 = vmatpush1.msra.mxu0 0.0
  %360 = vmatprep.subr.mxu0 0.0
  %361 = vmatpush1.msra.mxu0 0.0
  %362 = vmatprep.subr.mxu0 0.0
  %363 = vmatpush1.msra.mxu0 0.0
  %364 = vmatprep.subr.mxu0 0.0
  %365 = vmatpush1.msra.mxu0 0.0
  %366 = vmatprep.subr.mxu0 0.0
  %367 = vmatpush1.msra.mxu0 0.0
  %368 = vmatprep.subr.mxu0 0.0
  %369 = vmatpush1.msra.mxu0 0.0
  %370 = vmatprep.subr.mxu0 0.0
  %371 = vmatpush1.msra.mxu0 0.0
  %372 = vmatprep.subr.mxu0 0.0
  %373 = vmatpush1.msra.mxu0 0.0
  %374 = vmatprep.subr.mxu0 0.0
  %375 = vmatpush1.msra.mxu0 0.0
  %376 = vmatprep.subr.mxu0 0.0
  %377 = vmatpush1.msra.mxu0 0.0
  %378 = vmatprep.subr.mxu0 0.0
  %379 = vmatpush1.msra.mxu0 0.0
  %380 = vmatprep.subr.mxu0 0.0
  %381 = vmatpush1.msra.mxu0 0.0
  %382 = vmatprep.subr.mxu0 0.0
  %383 = vmatpush1.msra.mxu0 0.0
  %384 = vmatprep.subr.mxu0 0.0
  %385 = vmatpush1.msra.mxu0 0.0
  %386 = vmatprep.subr.mxu0 0.0
  %387 = vmatpush1.msra.mxu0 0.0
  %388 = vmatprep.subr.mxu0 0.0
  %389 = vmatpush1.msra.mxu0 0.0
  %390 = vmatprep.subr.mxu0 0.0
  %391 = vmatpush1.msra.mxu0 0.0
  %392 = vmatprep.subr.mxu0 0.0
  %393 = vmatpush1.msra.mxu0 0.0
  %394 = vmatprep.subr.mxu0 0.0
  %395 = vmatpush1.msra.mxu0 0.0
  %396 = vmatprep.subr.mxu0 0.0
  %397 = vmatpush1.msra.mxu0 0.0
  %398 = vmatprep.subr.mxu0 0.0
  %399 = vmatpush1.msra.mxu0 0.0
  %400 = vmatprep.subr.mxu0 0.0
  %401 = vmatpush1.msra.mxu0 0.0
  %402 = vmatprep.subr.mxu0 0.0
  %403 = vmatpush1.msra.mxu0 0.0
  %404 = vmatprep.subr.mxu0 0.0
  %405 = vmatpush1.msra.mxu0 0.0
  %406 = vmatprep.subr.mxu0 0.0
  %407 = vmatpush1.msra.mxu0 0.0
  %408 = vmatprep.subr.mxu0 0.0
  %409 = vmatpush1.msra.mxu0 0.0
  %410 = vmatprep.subr.mxu0 0.0
  %411 = vmatpush1.msra.mxu0 0.0
  %412 = vmatprep.subr.mxu0 0.0
  %413 = vmatpush1.msra.mxu0 0.0
  %414 = vmatprep.subr.mxu0 0.0
  %415 = vmatpush1.msra.mxu0 0.0
  %416 = vmatprep.subr.mxu0 0.0
  %417 = vmatpush1.msra.mxu0 0.0
  %418 = vmatprep.mubr.f32.mxu0 0.0
  %419 = vmatmul.mubr.f32.gmra.mrb[0].mxu0 %v343
  %v420 = vpop.f32.mrb[0].mxu0
  %v421 = vadd.f32 0.0, %v420
  %v422 = vpop.f32.mrb[0].mxu0
  %423 = vmatprep.mubr.f32.mxu0 0.0
  %424 = vmatmul.mubr.f32.gmra.mrb[0].mxu0 %v346
  %v425 = vpop.f32.mrb[0].mxu0
  %v426 = vadd.f32 0.0, %v425
  %v427 = vpop.f32.mrb[0].mxu0
  %428 = vmatprep.mubr.f32.mxu0 0.0
  %429 = vmatmul.mubr.f32.gmra.mrb[0].mxu0 %v349
  %v430 = vpop.f32.mrb[0].mxu0
  %v431 = vadd.f32 0.0, %v430
  %v432 = vpop.f32.mrb[0].mxu0
  %433 = vmatprep.mubr.f32.mxu0 0.0
  %434 = vmatmul.mubr.f32.gmra.mrb[0].mxu0 %v352
  %v435 = vpop.f32.mrb[0].mxu0
  %v436 = vadd.f32 0.0, %v435
  %v437 = vpop.f32.mrb[0].mxu0
  %438 = vdwg.mxu0
  %441 = vrot.lane.b32.xlu0 %v332, 124
  %v442 = vpop.permute.xlu0 %441
  %443 = vrot.lane.b32.xlu0 %v337, 124
  %v444 = vpop.permute.xlu0 %443
  %v448 = vsel %vm64, %v249, 0
  %v451 = vsel %vm64, %v250, 0
  %v454 = vsel %vm64, %v251, 0
  %v457 = vsel %vm64, %v252, 0
  %459 = vmatprep.subr.mxu0 0.0
  %460 = vmatpush1.msra.mxu0 %v442
  %461 = vmatprep.subr.mxu0 0.0
  %462 = vmatpush1.msra.mxu0 %v444
  %463 = vmatprep.subr.mxu0 0.0
  %464 = vmatpush1.msra.mxu0 0.0
  %465 = vmatprep.subr.mxu0 0.0
  %466 = vmatpush1.msra.mxu0 0.0
  %467 = vmatprep.subr.mxu0 0.0
  %468 = vmatpush1.msra.mxu0 0.0
  %469 = vmatprep.subr.mxu0 0.0
  %470 = vmatpush1.msra.mxu0 0.0
  %471 = vmatprep.subr.mxu0 0.0
  %472 = vmatpush1.msra.mxu0 0.0
  %473 = vmatprep.subr.mxu0 0.0
  %474 = vmatpush1.msra.mxu0 0.0
  %475 = vmatprep.subr.mxu0 0.0
  %476 = vmatpush1.msra.mxu0 0.0
  %477 = vmatprep.subr.mxu0 0.0
  %478 = vmatpush1.msra.mxu0 0.0
  %479 = vmatprep.subr.mxu0 0.0
  %480 = vmatpush1.msra.mxu0 0.0
  %481 = vmatprep.subr.mxu0 0.0
  %482 = vmatpush1.msra.mxu0 0.0
  %483 = vmatprep.subr.mxu0 0.0
  %484 = vmatpush1.msra.mxu0 0.0
  %485 = vmatprep.subr.mxu0 0.0
  %486 = vmatpush1.msra.mxu0 0.0
  %487 = vmatprep.subr.mxu0 0.0
  %488 = vmatpush1.msra.mxu0 0.0
  %489 = vmatprep.subr.mxu0 0.0
  %490 = vmatpush1.msra.mxu0 0.0
  %491 = vmatprep.subr.mxu0 0.0
  %492 = vmatpush1.msra.mxu0 0.0
  %493 = vmatprep.subr.mxu0 0.0
  %494 = vmatpush1.msra.mxu0 0.0
  %495 = vmatprep.subr.mxu0 0.0
  %496 = vmatpush1.msra.mxu0 0.0
  %497 = vmatprep.subr.mxu0 0.0
  %498 = vmatpush1.msra.mxu0 0.0
  %499 = vmatprep.subr.mxu0 0.0
  %500 = vmatpush1.msra.mxu0 0.0
  %501 = vmatprep.subr.mxu0 0.0
  %502 = vmatpush1.msra.mxu0 0.0
  %503 = vmatprep.subr.mxu0 0.0
  %504 = vmatpush1.msra.mxu0 0.0
  %505 = vmatprep.subr.mxu0 0.0
  %506 = vmatpush1.msra.mxu0 0.0
  %507 = vmatprep.subr.mxu0 0.0
  %508 = vmatpush1.msra.mxu0 0.0
  %509 = vmatprep.subr.mxu0 0.0
  %510 = vmatpush1.msra.mxu0 0.0
  %511 = vmatprep.subr.mxu0 0.0
  %512 = vmatpush1.msra.mxu0 0.0
  %513 = vmatprep.subr.mxu0 0.0
  %514 = vmatpush1.msra.mxu0 0.0
  %515 = vmatprep.subr.mxu0 0.0
  %516 = vmatpush1.msra.mxu0 0.0
  %517 = vmatprep.subr.mxu0 0.0
  %518 = vmatpush1.msra.mxu0 0.0
  %519 = vmatprep.subr.mxu0 0.0
  %520 = vmatpush1.msra.mxu0 0.0
  %521 = vmatprep.subr.mxu0 0.0
  %522 = vmatpush1.msra.mxu0 0.0
  %523 = vmatprep.mubr.f32.mxu0 0.0
  %524 = vmatmul.mubr.f32.gmra.mrb[0].mxu0 %v448
  %v525 = vpop.f32.mrb[0].mxu0
  %v526 = vadd.f32 0.0, %v525
  %v527 = vpop.f32.mrb[0].mxu0
  %528 = vmatprep.mubr.f32.mxu0 0.0
  %529 = vmatmul.mubr.f32.gmra.mrb[0].mxu0 %v451
  %v530 = vpop.f32.mrb[0].mxu0
  %v531 = vadd.f32 0.0, %v530
  %v532 = vpop.f32.mrb[0].mxu0
  %533 = vmatprep.mubr.f32.mxu0 0.0
  %534 = vmatmul.mubr.f32.gmra.mrb[0].mxu0 %v454
  %v535 = vpop.f32.mrb[0].mxu0
  %v536 = vadd.f32 0.0, %v535
  %v537 = vpop.f32.mrb[0].mxu0
  %538 = vmatprep.mubr.f32.mxu0 0.0
  %539 = vmatmul.mubr.f32.gmra.mrb[0].mxu0 %v457
  %v540 = vpop.f32.mrb[0].mxu0
  %v541 = vadd.f32 0.0, %v540
  %v542 = vpop.f32.mrb[0].mxu0
  %543 = vdwg.mxu0
  %544 = vrot.lane.b32.xlu0 %v332, 126
  %v545 = vpop.permute.xlu0 %544
  %546 = vrot.lane.b32.xlu0 %v337, 126
  %v547 = vpop.permute.xlu0 %546
  %v551 = vsel %vm64, %v245, 0
  %v554 = vsel %vm64, %v246, 0
  %v557 = vsel %vm64, %v247, 0
  %v560 = vsel %vm64, %v248, 0
  %562 = vmatprep.subr.mxu0 0.0
  %563 = vmatpush1.msra.mxu0 %v545
  %564 = vmatprep.subr.mxu0 0.0
  %565 = vmatpush1.msra.mxu0 %v547
  %566 = vmatprep.subr.mxu0 0.0
  %567 = vmatpush1.msra.mxu0 0.0
  %568 = vmatprep.subr.mxu0 0.0
  %569 = vmatpush1.msra.mxu0 0.0
  %570 = vmatprep.subr.mxu0 0.0
  %571 = vmatpush1.msra.mxu0 0.0
  %572 = vmatprep.subr.mxu0 0.0
  %573 = vmatpush1.msra.mxu0 0.0
  %574 = vmatprep.subr.mxu0 0.0
  %575 = vmatpush1.msra.mxu0 0.0
  %576 = vmatprep.subr.mxu0 0.0
  %577 = vmatpush1.msra.mxu0 0.0
  %578 = vmatprep.subr.mxu0 0.0
  %579 = vmatpush1.msra.mxu0 0.0
  %580 = vmatprep.subr.mxu0 0.0
  %581 = vmatpush1.msra.mxu0 0.0
  %582 = vmatprep.subr.mxu0 0.0
  %583 = vmatpush1.msra.mxu0 0.0
  %584 = vmatprep.subr.mxu0 0.0
  %585 = vmatpush1.msra.mxu0 0.0
  %586 = vmatprep.subr.mxu0 0.0
  %587 = vmatpush1.msra.mxu0 0.0
  %588 = vmatprep.subr.mxu0 0.0
  %589 = vmatpush1.msra.mxu0 0.0
  %590 = vmatprep.subr.mxu0 0.0
  %591 = vmatpush1.msra.mxu0 0.0
  %592 = vmatprep.subr.mxu0 0.0
  %593 = vmatpush1.msra.mxu0 0.0
  %594 = vmatprep.subr.mxu0 0.0
  %595 = vmatpush1.msra.mxu0 0.0
  %596 = vmatprep.subr.mxu0 0.0
  %597 = vmatpush1.msra.mxu0 0.0
  %598 = vmatprep.subr.mxu0 0.0
  %599 = vmatpush1.msra.mxu0 0.0
  %600 = vmatprep.subr.mxu0 0.0
  %601 = vmatpush1.msra.mxu0 0.0
  %602 = vmatprep.subr.mxu0 0.0
  %603 = vmatpush1.msra.mxu0 0.0
  %604 = vmatprep.subr.mxu0 0.0
  %605 = vmatpush1.msra.mxu0 0.0
  %606 = vmatprep.subr.mxu0 0.0
  %607 = vmatpush1.msra.mxu0 0.0
  %608 = vmatprep.subr.mxu0 0.0
  %609 = vmatpush1.msra.mxu0 0.0
  %610 = vmatprep.subr.mxu0 0.0
  %611 = vmatpush1.msra.mxu0 0.0
  %612 = vmatprep.subr.mxu0 0.0
  %613 = vmatpush1.msra.mxu0 0.0
  %614 = vmatprep.subr.mxu0 0.0
  %615 = vmatpush1.msra.mxu0 0.0
  %616 = vmatprep.subr.mxu0 0.0
  %617 = vmatpush1.msra.mxu0 0.0
  %618 = vmatprep.subr.mxu0 0.0
  %619 = vmatpush1.msra.mxu0 0.0
  %620 = vmatprep.subr.mxu0 0.0
  %621 = vmatpush1.msra.mxu0 0.0
  %622 = vmatprep.subr.mxu0 0.0
  %623 = vmatpush1.msra.mxu0 0.0
  %624 = vmatprep.subr.mxu0 0.0
  %625 = vmatpush1.msra.mxu0 0.0
  %626 = vmatprep.mubr.f32.mxu0 0.0
  %627 = vmatmul.mubr.f32.gmra.mrb[0].mxu0 %v551
  %v628 = vpop.f32.mrb[0].mxu0
  %v629 = vadd.f32 %v526, %v628
  %v630 = vpop.f32.mrb[0].mxu0
  %631 = vmatprep.mubr.f32.mxu0 0.0
  %632 = vmatmul.mubr.f32.gmra.mrb[0].mxu0 %v554
  %v633 = vpop.f32.mrb[0].mxu0
  %v634 = vadd.f32 %v531, %v633
  %v635 = vpop.f32.mrb[0].mxu0
  %636 = vmatprep.mubr.f32.mxu0 0.0
  %637 = vmatmul.mubr.f32.gmra.mrb[0].mxu0 %v557
  %v638 = vpop.f32.mrb[0].mxu0
  %v639 = vadd.f32 %v536, %v638
  %v640 = vpop.f32.mrb[0].mxu0
  %641 = vmatprep.mubr.f32.mxu0 0.0
  %642 = vmatmul.mubr.f32.gmra.mrb[0].mxu0 %v560
  %v643 = vpop.f32.mrb[0].mxu0
  %v644 = vadd.f32 %v541, %v643
  %v645 = vpop.f32.mrb[0].mxu0
  %646 = vdwg.mxu0
  %v647 = vadd.f32 %v629, %v421
  %v648 = vadd.f32 %v634, %v426
  %v649 = vadd.f32 %v639, %v431
  %v650 = vadd.f32 %v644, %v436
  %vm651 = vcmp.gt.f32.partialorder %v647, 0.0
  %vm652 = vcmp.gt.f32.partialorder %v648, 0.0
  %vm653 = vcmp.gt.f32.partialorder %v649, 0.0
  %vm654 = vcmp.gt.f32.partialorder %v650, 0.0
  %v655 = vmul.f32 %v647, 0.01
  %v656 = vmul.f32 %v648, 0.01
  %v657 = vmul.f32 %v649, 0.01
  %v658 = vmul.f32 %v650, 0.01
  %v659 = vsel %vm651, %v647, %v655
  %v660 = vsel %vm652, %v648, %v656
  %v661 = vsel %vm653, %v649, %v657
  %v662 = vsel %vm654, %v650, %v658
  %664 = vset.pattern.permute.xlu0 0
  %665 = vperm.xlu0 %664, %v659
  %v666 = vpop.permute.xlu0 %665
  %669 = vset.pattern.permute.xlu0 0
  %670 = vperm.xlu0 %669, %v660
  %v671 = vpop.permute.xlu0 %670
  %674 = vset.pattern.permute.xlu0 0
  %675 = vperm.xlu0 %674, %v661
  %v676 = vpop.permute.xlu0 %675
  %679 = vset.pattern.permute.xlu0 0
  %680 = vperm.xlu0 %679, %v662
  %v681 = vpop.permute.xlu0 %680
  %v683 = vmul.f32 %v666, %v245
  %v684 = vmul.f32 %v671, %v246
  %v685 = vmul.f32 %v676, %v247
  %v686 = vmul.f32 %v681, %v248
  %v688 = vsel %vm157, %v253, 0
  %v691 = vsel %vm157, %v254, 0
  %693 = vmatprep.subr.mxu0 0.0
  %694 = vmatpush1.msra.mxu0 %v683
  %695 = vmatprep.subr.mxu0 0.0
  %696 = vmatpush1.msra.mxu0 %v684
  %697 = vmatprep.subr.mxu0 0.0
  %698 = vmatpush1.msra.mxu0 %v685
  %699 = vmatprep.subr.mxu0 0.0
  %700 = vmatpush1.msra.mxu0 %v686
  %701 = vmatprep.subr.mxu0 0.0
  %702 = vmatpush1.msra.mxu0 0.0
  %703 = vmatprep.subr.mxu0 0.0
  %704 = vmatpush1.msra.mxu0 0.0
  %705 = vmatprep.subr.mxu0 0.0
  %706 = vmatpush1.msra.mxu0 0.0
  %707 = vmatprep.subr.mxu0 0.0
  %708 = vmatpush1.msra.mxu0 0.0
  %709 = vmatprep.subr.mxu0 0.0
  %710 = vmatpush1.msra.mxu0 0.0
  %711 = vmatprep.subr.mxu0 0.0
  %712 = vmatpush1.msra.mxu0 0.0
  %713 = vmatprep.subr.mxu0 0.0
  %714 = vmatpush1.msra.mxu0 0.0
  %715 = vmatprep.subr.mxu0 0.0
  %716 = vmatpush1.msra.mxu0 0.0
  %717 = vmatprep.subr.mxu0 0.0
  %718 = vmatpush1.msra.mxu0 0.0
  %719 = vmatprep.subr.mxu0 0.0
  %720 = vmatpush1.msra.mxu0 0.0
  %721 = vmatprep.subr.mxu0 0.0
  %722 = vmatpush1.msra.mxu0 0.0
  %723 = vmatprep.subr.mxu0 0.0
  %724 = vmatpush1.msra.mxu0 0.0
  %725 = vmatprep.subr.mxu0 0.0
  %726 = vmatpush1.msra.mxu0 0.0
  %727 = vmatprep.subr.mxu0 0.0
  %728 = vmatpush1.msra.mxu0 0.0
  %729 = vmatprep.subr.mxu0 0.0
  %730 = vmatpush1.msra.mxu0 0.0
  %731 = vmatprep.subr.mxu0 0.0
  %732 = vmatpush1.msra.mxu0 0.0
  %733 = vmatprep.subr.mxu0 0.0
  %734 = vmatpush1.msra.mxu0 0.0
  %735 = vmatprep.subr.mxu0 0.0
  %736 = vmatpush1.msra.mxu0 0.0
  %737 = vmatprep.subr.mxu0 0.0
  %738 = vmatpush1.msra.mxu0 0.0
  %739 = vmatprep.subr.mxu0 0.0
  %740 = vmatpush1.msra.mxu0 0.0
  %741 = vmatprep.subr.mxu0 0.0
  %742 = vmatpush1.msra.mxu0 0.0
  %743 = vmatprep.subr.mxu0 0.0
  %744 = vmatpush1.msra.mxu0 0.0
  %745 = vmatprep.subr.mxu0 0.0
  %746 = vmatpush1.msra.mxu0 0.0
  %747 = vmatprep.subr.mxu0 0.0
  %748 = vmatpush1.msra.mxu0 0.0
  %749 = vmatprep.subr.mxu0 0.0
  %750 = vmatpush1.msra.mxu0 0.0
  %751 = vmatprep.subr.mxu0 0.0
  %752 = vmatpush1.msra.mxu0 0.0
  %753 = vmatprep.subr.mxu0 0.0
  %754 = vmatpush1.msra.mxu0 0.0
  %755 = vmatprep.subr.mxu0 0.0
  %756 = vmatpush1.msra.mxu0 0.0
  %757 = vmatprep.mubr.f32.mxu0 0.0
  %758 = vmatmul.mubr.f32.gmra.mrb[0].mxu0 %v688
  %v759 = vpop.f32.mrb[0].mxu0
  %v760 = vadd.f32 0.0, %v759
  %v761 = vpop.f32.mrb[0].mxu0
  %762 = vmatprep.mubr.f32.mxu0 0.0
  %763 = vmatmul.mubr.f32.gmra.mrb[0].mxu0 %v691
  %v764 = vpop.f32.mrb[0].mxu0
  %v765 = vadd.f32 0.0, %v764
  %v766 = vpop.f32.mrb[0].mxu0
  %767 = vdwg.mxu0
  %vm768 = vcmp.gt.f32.partialorder %v239, 0.0
  %vm769 = vcmp.gt.f32.partialorder %v240, 0.0
  %v770 = vsel %vm768, %v760, -1e+30
  %v771 = vsel %vm769, %v765, -1e+30
  %v772 = vsel %vm64, %v770, -inf
  %773 = vmax.xlane.f32.xlu0 %v772
  %v774 = vpop.xlane.xlu0 %773
  %v775 = vsel %vm64, %v771, -inf
  %776 = vmax.xlane.f32.xlu0 %v775
  %v777 = vpop.xlane.xlu0 %776
  %v778 = vsub.f32 %v770, %v774
  %v779 = vsub.f32 %v771, %v777
  %v780 = vmul.f32 %v778, 1.442695
  %v781 = vpow.pop %v780
  %v782 = vmul.f32 %v779, 1.442695
  %v783 = vpow.pop %v782
  %v784 = vsel %vm64, %v781, 0.0
  %785 = vadd.xlane.f32.xlu0 %v784
  %v786 = vpop.xlane.xlu0 %785
  %v787 = vsel %vm64, %v783, 0.0
  %788 = vadd.xlane.f32.xlu0 %v787
  %v789 = vpop.xlane.xlu0 %788
  %v790 = vrcp.pop %v786
  %v791 = vmul.f32 %v781, %v790
  %v792 = vrcp.pop %v789
  %v793 = vmul.f32 %v783, %v792
  %v795 = vsel %vm64, %v791, 0
  %v798 = vsel %vm64, %v793, 0
  %800 = vmatprep.subr.mxu0 0.0
  %801 = vmatpush1.msra.mxu0 %v332
  %802 = vmatprep.subr.mxu0 0.0
  %803 = vmatpush1.msra.mxu0 %v337
  %804 = vmatprep.subr.mxu0 0.0
  %805 = vmatpush1.msra.mxu0 0.0
  %806 = vmatprep.subr.mxu0 0.0
  %807 = vmatpush1.msra.mxu0 0.0
  %808 = vmatprep.subr.mxu0 0.0
  %809 = vmatpush1.msra.mxu0 0.0
  %810 = vmatprep.subr.mxu0 0.0
  %811 = vmatpush1.msra.mxu0 0.0
  %812 = vmatprep.subr.mxu0 0.0
  %813 = vmatpush1.msra.mxu0 0.0
  %814 = vmatprep.subr.mxu0 0.0
  %815 = vmatpush1.msra.mxu0 0.0
  %816 = vmatprep.subr.mxu0 0.0
  %817 = vmatpush1.msra.mxu0 0.0
  %818 = vmatprep.subr.mxu0 0.0
  %819 = vmatpush1.msra.mxu0 0.0
  %820 = vmatprep.subr.mxu0 0.0
  %821 = vmatpush1.msra.mxu0 0.0
  %822 = vmatprep.subr.mxu0 0.0
  %823 = vmatpush1.msra.mxu0 0.0
  %824 = vmatprep.subr.mxu0 0.0
  %825 = vmatpush1.msra.mxu0 0.0
  %826 = vmatprep.subr.mxu0 0.0
  %827 = vmatpush1.msra.mxu0 0.0
  %828 = vmatprep.subr.mxu0 0.0
  %829 = vmatpush1.msra.mxu0 0.0
  %830 = vmatprep.subr.mxu0 0.0
  %831 = vmatpush1.msra.mxu0 0.0
  %832 = vmatprep.subr.mxu0 0.0
  %833 = vmatpush1.msra.mxu0 0.0
  %834 = vmatprep.subr.mxu0 0.0
  %835 = vmatpush1.msra.mxu0 0.0
  %836 = vmatprep.subr.mxu0 0.0
  %837 = vmatpush1.msra.mxu0 0.0
  %838 = vmatprep.subr.mxu0 0.0
  %839 = vmatpush1.msra.mxu0 0.0
  %840 = vmatprep.subr.mxu0 0.0
  %841 = vmatpush1.msra.mxu0 0.0
  %842 = vmatprep.subr.mxu0 0.0
  %843 = vmatpush1.msra.mxu0 0.0
  %844 = vmatprep.subr.mxu0 0.0
  %845 = vmatpush1.msra.mxu0 0.0
  %846 = vmatprep.subr.mxu0 0.0
  %847 = vmatpush1.msra.mxu0 0.0
  %848 = vmatprep.subr.mxu0 0.0
  %849 = vmatpush1.msra.mxu0 0.0
  %850 = vmatprep.subr.mxu0 0.0
  %851 = vmatpush1.msra.mxu0 0.0
  %852 = vmatprep.subr.mxu0 0.0
  %853 = vmatpush1.msra.mxu0 0.0
  %854 = vmatprep.subr.mxu0 0.0
  %855 = vmatpush1.msra.mxu0 0.0
  %856 = vmatprep.subr.mxu0 0.0
  %857 = vmatpush1.msra.mxu0 0.0
  %858 = vmatprep.subr.mxu0 0.0
  %859 = vmatpush1.msra.mxu0 0.0
  %860 = vmatprep.subr.mxu0 0.0
  %861 = vmatpush1.msra.mxu0 0.0
  %862 = vmatprep.subr.mxu0 0.0
  %863 = vmatpush1.msra.mxu0 0.0
  %864 = vmatprep.mubr.f32.mxu0 0.0
  %865 = vmatmul.mubr.f32.gmra.mrb[0].mxu0 %v795
  %v866 = vpop.f32.mrb[0].mxu0
  %v867 = vadd.f32 0.0, %v866
  %v868 = vpop.f32.mrb[0].mxu0
  %869 = vmatprep.mubr.f32.mxu0 0.0
  %870 = vmatmul.mubr.f32.gmra.mrb[0].mxu0 %v798
  %v871 = vpop.f32.mrb[0].mxu0
  %v872 = vadd.f32 0.0, %v871
  %v873 = vpop.f32.mrb[0].mxu0
  %874 = vdwg.mxu0
  %vm875 = vcmask 7168
  %v876 = vsel %vm875, %v867, 0.0
  %v877 = vsel %vm875, %v872, 0.0
  %v878 = vadd.f32 %v876, %v877
  %v879 = vrot.slane %v878, 4
  %v880 = vadd.f32 %v878, %v879
  %v881 = vrot.slane %v880, 2
  %v882 = vadd.f32 %v880, %v881
  %v883 = vrot.slane %v882, 1
  %v884 = vadd.f32 %v882, %v883
  %v885 = vadd.f32 %v884, 0.0
  %886 = vset.pattern.permute.xlu0 1
  %887 = vperm.xlu0 %886, %v659
  %v888 = vpop.permute.xlu0 %887
  %890 = vset.pattern.permute.xlu0 1
  %891 = vperm.xlu0 %890, %v660
  %v892 = vpop.permute.xlu0 %891
  %894 = vset.pattern.permute.xlu0 1
  %895 = vperm.xlu0 %894, %v661
  %v896 = vpop.permute.xlu0 %895
  %898 = vset.pattern.permute.xlu0 1
  %899 = vperm.xlu0 %898, %v662
  %v900 = vpop.permute.xlu0 %899
  %v902 = vmul.f32 %v888, %v245
  %v903 = vmul.f32 %v892, %v246
  %v904 = vmul.f32 %v896, %v247
  %v905 = vmul.f32 %v900, %v248
  %906 = vmatprep.subr.mxu0 0.0
  %907 = vmatpush1.msra.mxu0 %v902
  %908 = vmatprep.subr.mxu0 0.0
  %909 = vmatpush1.msra.mxu0 %v903
  %910 = vmatprep.subr.mxu0 0.0
  %911 = vmatpush1.msra.mxu0 %v904
  %912 = vmatprep.subr.mxu0 0.0
  %913 = vmatpush1.msra.mxu0 %v905
  %914 = vmatprep.subr.mxu0 0.0
  %915 = vmatpush1.msra.mxu0 0.0
  %916 = vmatprep.subr.mxu0 0.0
  %917 = vmatpush1.msra.mxu0 0.0
  %918 = vmatprep.subr.mxu0 0.0
  %919 = vmatpush1.msra.mxu0 0.0
  %920 = vmatprep.subr.mxu0 0.0
  %921 = vmatpush1.msra.mxu0 0.0
  %922 = vmatprep.subr.mxu0 0.0
  %923 = vmatpush1.msra.mxu0 0.0
  %924 = vmatprep.subr.mxu0 0.0
  %925 = vmatpush1.msra.mxu0 0.0
  %926 = vmatprep.subr.mxu0 0.0
  %927 = vmatpush1.msra.mxu0 0.0
  %928 = vmatprep.subr.mxu0 0.0
  %929 = vmatpush1.msra.mxu0 0.0
  %930 = vmatprep.subr.mxu0 0.0
  %931 = vmatpush1.msra.mxu0 0.0
  %932 = vmatprep.subr.mxu0 0.0
  %933 = vmatpush1.msra.mxu0 0.0
  %934 = vmatprep.subr.mxu0 0.0
  %935 = vmatpush1.msra.mxu0 0.0
  %936 = vmatprep.subr.mxu0 0.0
  %937 = vmatpush1.msra.mxu0 0.0
  %938 = vmatprep.subr.mxu0 0.0
  %939 = vmatpush1.msra.mxu0 0.0
  %940 = vmatprep.subr.mxu0 0.0
  %941 = vmatpush1.msra.mxu0 0.0
  %942 = vmatprep.subr.mxu0 0.0
  %943 = vmatpush1.msra.mxu0 0.0
  %944 = vmatprep.subr.mxu0 0.0
  %945 = vmatpush1.msra.mxu0 0.0
  %946 = vmatprep.subr.mxu0 0.0
  %947 = vmatpush1.msra.mxu0 0.0
  %948 = vmatprep.subr.mxu0 0.0
  %949 = vmatpush1.msra.mxu0 0.0
  %950 = vmatprep.subr.mxu0 0.0
  %951 = vmatpush1.msra.mxu0 0.0
  %952 = vmatprep.subr.mxu0 0.0
  %953 = vmatpush1.msra.mxu0 0.0
  %954 = vmatprep.subr.mxu0 0.0
  %955 = vmatpush1.msra.mxu0 0.0
  %956 = vmatprep.subr.mxu0 0.0
  %957 = vmatpush1.msra.mxu0 0.0
  %958 = vmatprep.subr.mxu0 0.0
  %959 = vmatpush1.msra.mxu0 0.0
  %960 = vmatprep.subr.mxu0 0.0
  %961 = vmatpush1.msra.mxu0 0.0
  %962 = vmatprep.subr.mxu0 0.0
  %963 = vmatpush1.msra.mxu0 0.0
  %964 = vmatprep.subr.mxu0 0.0
  %965 = vmatpush1.msra.mxu0 0.0
  %966 = vmatprep.subr.mxu0 0.0
  %967 = vmatpush1.msra.mxu0 0.0
  %968 = vmatprep.subr.mxu0 0.0
  %969 = vmatpush1.msra.mxu0 0.0
  %970 = vmatprep.mubr.f32.mxu0 0.0
  %971 = vmatmul.mubr.f32.gmra.mrb[0].mxu0 %v688
  %v972 = vpop.f32.mrb[0].mxu0
  %v973 = vadd.f32 0.0, %v972
  %v974 = vpop.f32.mrb[0].mxu0
  %975 = vmatprep.mubr.f32.mxu0 0.0
  %976 = vmatmul.mubr.f32.gmra.mrb[0].mxu0 %v691
  %v977 = vpop.f32.mrb[0].mxu0
  %v978 = vadd.f32 0.0, %v977
  %v979 = vpop.f32.mrb[0].mxu0
  %980 = vdwg.mxu0
  %v981 = vsel %vm768, %v973, -1e+30
  %v982 = vsel %vm769, %v978, -1e+30
  %v983 = vsel %vm64, %v981, -inf
  %984 = vmax.xlane.f32.xlu0 %v983
  %v985 = vpop.xlane.xlu0 %984
  %v986 = vsel %vm64, %v982, -inf
  %987 = vmax.xlane.f32.xlu0 %v986
  %v988 = vpop.xlane.xlu0 %987
  %v989 = vsub.f32 %v981, %v985
  %v990 = vsub.f32 %v982, %v988
  %v991 = vmul.f32 %v989, 1.442695
  %v992 = vpow.pop %v991
  %v993 = vmul.f32 %v990, 1.442695
  %v994 = vpow.pop %v993
  %v995 = vsel %vm64, %v992, 0.0
  %996 = vadd.xlane.f32.xlu0 %v995
  %v997 = vpop.xlane.xlu0 %996
  %v998 = vsel %vm64, %v994, 0.0
  %999 = vadd.xlane.f32.xlu0 %v998
  %v1000 = vpop.xlane.xlu0 %999
  %v1001 = vrcp.pop %v997
  %v1002 = vmul.f32 %v992, %v1001
  %v1003 = vrcp.pop %v1000
  %v1004 = vmul.f32 %v994, %v1003
  %1005 = vrot.lane.b32.xlu0 %v332, 127
  %v1006 = vpop.permute.xlu0 %1005
  %1007 = vrot.lane.b32.xlu0 %v337, 127
  %v1008 = vpop.permute.xlu0 %1007
  %v1012 = vsel %vm64, %v1002, 0
  %v1015 = vsel %vm64, %v1004, 0
  %1017 = vmatprep.subr.mxu0 0.0
  %1018 = vmatpush1.msra.mxu0 %v1006
  %1019 = vmatprep.subr.mxu0 0.0
  %1020 = vmatpush1.msra.mxu0 %v1008
  %1021 = vmatprep.subr.mxu0 0.0
  %1022 = vmatpush1.msra.mxu0 0.0
  %1023 = vmatprep.subr.mxu0 0.0
  %1024 = vmatpush1.msra.mxu0 0.0
  %1025 = vmatprep.subr.mxu0 0.0
  %1026 = vmatpush1.msra.mxu0 0.0
  %1027 = vmatprep.subr.mxu0 0.0
  %1028 = vmatpush1.msra.mxu0 0.0
  %1029 = vmatprep.subr.mxu0 0.0
  %1030 = vmatpush1.msra.mxu0 0.0
  %1031 = vmatprep.subr.mxu0 0.0
  %1032 = vmatpush1.msra.mxu0 0.0
  %1033 = vmatprep.subr.mxu0 0.0
  %1034 = vmatpush1.msra.mxu0 0.0
  %1035 = vmatprep.subr.mxu0 0.0
  %1036 = vmatpush1.msra.mxu0 0.0
  %1037 = vmatprep.subr.mxu0 0.0
  %1038 = vmatpush1.msra.mxu0 0.0
  %1039 = vmatprep.subr.mxu0 0.0
  %1040 = vmatpush1.msra.mxu0 0.0
  %1041 = vmatprep.subr.mxu0 0.0
  %1042 = vmatpush1.msra.mxu0 0.0
  %1043 = vmatprep.subr.mxu0 0.0
  %1044 = vmatpush1.msra.mxu0 0.0
  %1045 = vmatprep.subr.mxu0 0.0
  %1046 = vmatpush1.msra.mxu0 0.0
  %1047 = vmatprep.subr.mxu0 0.0
  %1048 = vmatpush1.msra.mxu0 0.0
  %1049 = vmatprep.subr.mxu0 0.0
  %1050 = vmatpush1.msra.mxu0 0.0
  %1051 = vmatprep.subr.mxu0 0.0
  %1052 = vmatpush1.msra.mxu0 0.0
  %1053 = vmatprep.subr.mxu0 0.0
  %1054 = vmatpush1.msra.mxu0 0.0
  %1055 = vmatprep.subr.mxu0 0.0
  %1056 = vmatpush1.msra.mxu0 0.0
  %1057 = vmatprep.subr.mxu0 0.0
  %1058 = vmatpush1.msra.mxu0 0.0
  %1059 = vmatprep.subr.mxu0 0.0
  %1060 = vmatpush1.msra.mxu0 0.0
  %1061 = vmatprep.subr.mxu0 0.0
  %1062 = vmatpush1.msra.mxu0 0.0
  %1063 = vmatprep.subr.mxu0 0.0
  %1064 = vmatpush1.msra.mxu0 0.0
  %1065 = vmatprep.subr.mxu0 0.0
  %1066 = vmatpush1.msra.mxu0 0.0
  %1067 = vmatprep.subr.mxu0 0.0
  %1068 = vmatpush1.msra.mxu0 0.0
  %1069 = vmatprep.subr.mxu0 0.0
  %1070 = vmatpush1.msra.mxu0 0.0
  %1071 = vmatprep.subr.mxu0 0.0
  %1072 = vmatpush1.msra.mxu0 0.0
  %1073 = vmatprep.subr.mxu0 0.0
  %1074 = vmatpush1.msra.mxu0 0.0
  %1075 = vmatprep.subr.mxu0 0.0
  %1076 = vmatpush1.msra.mxu0 0.0
  %1077 = vmatprep.subr.mxu0 0.0
  %1078 = vmatpush1.msra.mxu0 0.0
  %1079 = vmatprep.subr.mxu0 0.0
  %1080 = vmatpush1.msra.mxu0 0.0
  %1081 = vmatprep.mubr.f32.mxu0 0.0
  %1082 = vmatmul.mubr.f32.gmra.mrb[0].mxu0 %v1012
  %v1083 = vpop.f32.mrb[0].mxu0
  %v1084 = vadd.f32 0.0, %v1083
  %v1085 = vpop.f32.mrb[0].mxu0
  %1086 = vmatprep.mubr.f32.mxu0 0.0
  %1087 = vmatmul.mubr.f32.gmra.mrb[0].mxu0 %v1015
  %v1088 = vpop.f32.mrb[0].mxu0
  %v1089 = vadd.f32 0.0, %v1088
  %v1090 = vpop.f32.mrb[0].mxu0
  %1091 = vdwg.mxu0
  %v1092 = vsel %vm875, %v1084, 0.0
  %v1093 = vsel %vm875, %v1089, 0.0
  %v1094 = vadd.f32 %v1092, %v1093
  %v1095 = vrot.slane %v1094, 4
  %v1096 = vadd.f32 %v1094, %v1095
  %v1097 = vrot.slane %v1096, 2
  %v1098 = vadd.f32 %v1096, %v1097
  %v1099 = vrot.slane %v1098, 1
  %v1100 = vadd.f32 %v1098, %v1099
  %v1101 = vadd.f32 %v885, %v1100
  %v1102 = vmul.f32 %v1101, 0.0009765625
  %vm1103 = vcmp.gt.f32.partialorder %v1102, 0.0
  %v1104 = vmul.f32 %v1102, 1.442695
  %v1105 = vpow.pop %v1104
  %v1106 = vsub.f32 %v1105, 1.0
  %v1107 = vsel %vm1103, %v1102, %v1106
  %1109 = vset.pattern.permute.xlu0 0
  %1110 = vperm.xlu0 %1109, %v1107
  %v1111 = vpop.permute.xlu0 %1110
  %v1113 = vadd.f32 %v231, %v1111
  %v1114 = vadd.f32 %v236, %v1111
  %s1115 = scalar_lea.vmem %s5, 32
  %v1116 = vld [vmem:[%s1115] sm:$0xff]
  %v1117 = vld [vmem:[%s1115 + $0x8] sm:$0xff]
  %v1118 = vld [vmem:[%s1115 + $0x10] sm:$0xff]
  %v1119 = vld [vmem:[%s1115 + $0x18] sm:$0xff]
  %v1121 = vsel %vm157, %v1113, 0
  %v1124 = vsel %vm157, %v1114, 0
  %1126 = vmatprep.subr.mxu0 0.0
  %1127 = vmatpush1.msra.mxu0 %v1116
  %1128 = vmatprep.subr.mxu0 0.0
  %1129 = vmatpush1.msra.mxu0 %v1117
  %1130 = vmatprep.subr.mxu0 0.0
  %1131 = vmatpush1.msra.mxu0 %v1118
  %1132 = vmatprep.subr.mxu0 0.0
  %1133 = vmatpush1.msra.mxu0 %v1119
  %1134 = vmatprep.subr.mxu0 0.0
  %1135 = vmatpush1.msra.mxu0 0.0
  %1136 = vmatprep.subr.mxu0 0.0
  %1137 = vmatpush1.msra.mxu0 0.0
  %1138 = vmatprep.subr.mxu0 0.0
  %1139 = vmatpush1.msra.mxu0 0.0
  %1140 = vmatprep.subr.mxu0 0.0
  %1141 = vmatpush1.msra.mxu0 0.0
  %1142 = vmatprep.subr.mxu0 0.0
  %1143 = vmatpush1.msra.mxu0 0.0
  %1144 = vmatprep.subr.mxu0 0.0
  %1145 = vmatpush1.msra.mxu0 0.0
  %1146 = vmatprep.subr.mxu0 0.0
  %1147 = vmatpush1.msra.mxu0 0.0
  %1148 = vmatprep.subr.mxu0 0.0
  %1149 = vmatpush1.msra.mxu0 0.0
  %1150 = vmatprep.subr.mxu0 0.0
  %1151 = vmatpush1.msra.mxu0 0.0
  %1152 = vmatprep.subr.mxu0 0.0
  %1153 = vmatpush1.msra.mxu0 0.0
  %1154 = vmatprep.subr.mxu0 0.0
  %1155 = vmatpush1.msra.mxu0 0.0
  %1156 = vmatprep.subr.mxu0 0.0
  %1157 = vmatpush1.msra.mxu0 0.0
  %1158 = vmatprep.subr.mxu0 0.0
  %1159 = vmatpush1.msra.mxu0 0.0
  %1160 = vmatprep.subr.mxu0 0.0
  %1161 = vmatpush1.msra.mxu0 0.0
  %1162 = vmatprep.subr.mxu0 0.0
  %1163 = vmatpush1.msra.mxu0 0.0
  %1164 = vmatprep.subr.mxu0 0.0
  %1165 = vmatpush1.msra.mxu0 0.0
  %1166 = vmatprep.subr.mxu0 0.0
  %1167 = vmatpush1.msra.mxu0 0.0
  %1168 = vmatprep.subr.mxu0 0.0
  %1169 = vmatpush1.msra.mxu0 0.0
  %1170 = vmatprep.subr.mxu0 0.0
  %1171 = vmatpush1.msra.mxu0 0.0
  %1172 = vmatprep.subr.mxu0 0.0
  %1173 = vmatpush1.msra.mxu0 0.0
  %1174 = vmatprep.subr.mxu0 0.0
  %1175 = vmatpush1.msra.mxu0 0.0
  %1176 = vmatprep.subr.mxu0 0.0
  %1177 = vmatpush1.msra.mxu0 0.0
  %1178 = vmatprep.subr.mxu0 0.0
  %1179 = vmatpush1.msra.mxu0 0.0
  %1180 = vmatprep.subr.mxu0 0.0
  %1181 = vmatpush1.msra.mxu0 0.0
  %1182 = vmatprep.subr.mxu0 0.0
  %1183 = vmatpush1.msra.mxu0 0.0
  %1184 = vmatprep.subr.mxu0 0.0
  %1185 = vmatpush1.msra.mxu0 0.0
  %1186 = vmatprep.subr.mxu0 0.0
  %1187 = vmatpush1.msra.mxu0 0.0
  %1188 = vmatprep.subr.mxu0 0.0
  %1189 = vmatpush1.msra.mxu0 0.0
  %1190 = vmatprep.mubr.f32.mxu0 0.0
  %1191 = vmatmul.mubr.f32.gmra.mrb[0].mxu0 %v1121
  %v1192 = vpop.f32.mrb[0].mxu0
  %v1193 = vadd.f32 0.0, %v1192
  %v1194 = vpop.f32.mrb[0].mxu0
  %1195 = vmatprep.mubr.f32.mxu0 0.0
  %1196 = vmatmul.mubr.f32.gmra.mrb[0].mxu0 %v1124
  %v1197 = vpop.f32.mrb[0].mxu0
  %v1198 = vadd.f32 0.0, %v1197
  %v1199 = vpop.f32.mrb[0].mxu0
  %1200 = vdwg.mxu0
  %s1201 = scalar_lea.vmem %s6, 8
  %v1202 = vld [vmem:[%s1201] sm:$0xff]
  %1203 = vmatprep.subr.mxu0 0.0
  %1204 = vmatpush1.msra.mxu0 %v1202
  %1205 = vmatprep.subr.mxu0 0.0
  %1206 = vmatpush1.msra.mxu0 0.0
  %1207 = vmatprep.subr.mxu0 0.0
  %1208 = vmatpush1.msra.mxu0 0.0
  %1209 = vmatprep.subr.mxu0 0.0
  %1210 = vmatpush1.msra.mxu0 0.0
  %1211 = vmatprep.subr.mxu0 0.0
  %1212 = vmatpush1.msra.mxu0 0.0
  %1213 = vmatprep.subr.mxu0 0.0
  %1214 = vmatpush1.msra.mxu0 0.0
  %1215 = vmatprep.subr.mxu0 0.0
  %1216 = vmatpush1.msra.mxu0 0.0
  %1217 = vmatprep.subr.mxu0 0.0
  %1218 = vmatpush1.msra.mxu0 0.0
  %1219 = vmatprep.subr.mxu0 0.0
  %1220 = vmatpush1.msra.mxu0 0.0
  %1221 = vmatprep.subr.mxu0 0.0
  %1222 = vmatpush1.msra.mxu0 0.0
  %1223 = vmatprep.subr.mxu0 0.0
  %1224 = vmatpush1.msra.mxu0 0.0
  %1225 = vmatprep.subr.mxu0 0.0
  %1226 = vmatpush1.msra.mxu0 0.0
  %1227 = vmatprep.subr.mxu0 0.0
  %1228 = vmatpush1.msra.mxu0 0.0
  %1229 = vmatprep.subr.mxu0 0.0
  %1230 = vmatpush1.msra.mxu0 0.0
  %1231 = vmatprep.subr.mxu0 0.0
  %1232 = vmatpush1.msra.mxu0 0.0
  %1233 = vmatprep.subr.mxu0 0.0
  %1234 = vmatpush1.msra.mxu0 0.0
  %1235 = vmatprep.subr.mxu0 0.0
  %1236 = vmatpush1.msra.mxu0 0.0
  %1237 = vmatprep.subr.mxu0 0.0
  %1238 = vmatpush1.msra.mxu0 0.0
  %1239 = vmatprep.subr.mxu0 0.0
  %1240 = vmatpush1.msra.mxu0 0.0
  %1241 = vmatprep.subr.mxu0 0.0
  %1242 = vmatpush1.msra.mxu0 0.0
  %1243 = vmatprep.subr.mxu0 0.0
  %1244 = vmatpush1.msra.mxu0 0.0
  %1245 = vmatprep.subr.mxu0 0.0
  %1246 = vmatpush1.msra.mxu0 0.0
  %1247 = vmatprep.subr.mxu0 0.0
  %1248 = vmatpush1.msra.mxu0 0.0
  %1249 = vmatprep.subr.mxu0 0.0
  %1250 = vmatpush1.msra.mxu0 0.0
  %1251 = vmatprep.subr.mxu0 0.0
  %1252 = vmatpush1.msra.mxu0 0.0
  %1253 = vmatprep.subr.mxu0 0.0
  %1254 = vmatpush1.msra.mxu0 0.0
  %1255 = vmatprep.subr.mxu0 0.0
  %1256 = vmatpush1.msra.mxu0 0.0
  %1257 = vmatprep.subr.mxu0 0.0
  %1258 = vmatpush1.msra.mxu0 0.0
  %1259 = vmatprep.subr.mxu0 0.0
  %1260 = vmatpush1.msra.mxu0 0.0
  %1261 = vmatprep.subr.mxu0 0.0
  %1262 = vmatpush1.msra.mxu0 0.0
  %1263 = vmatprep.subr.mxu0 0.0
  %1264 = vmatpush1.msra.mxu0 0.0
  %1265 = vmatprep.subr.mxu0 0.0
  %1266 = vmatpush1.msra.mxu0 0.0
  %1267 = vmatprep.mubr.f32.mxu0 0.0
  %1268 = vmatmul.mubr.f32.gmra.mrb[0].mxu0 %v343
  %v1269 = vpop.f32.mrb[0].mxu0
  %v1270 = vadd.f32 0.0, %v1269
  %v1271 = vpop.f32.mrb[0].mxu0
  %1272 = vmatprep.mubr.f32.mxu0 0.0
  %1273 = vmatmul.mubr.f32.gmra.mrb[0].mxu0 %v346
  %v1274 = vpop.f32.mrb[0].mxu0
  %v1275 = vadd.f32 0.0, %v1274
  %v1276 = vpop.f32.mrb[0].mxu0
  %1277 = vmatprep.mubr.f32.mxu0 0.0
  %1278 = vmatmul.mubr.f32.gmra.mrb[0].mxu0 %v349
  %v1279 = vpop.f32.mrb[0].mxu0
  %v1280 = vadd.f32 0.0, %v1279
  %v1281 = vpop.f32.mrb[0].mxu0
  %1282 = vmatprep.mubr.f32.mxu0 0.0
  %1283 = vmatmul.mubr.f32.gmra.mrb[0].mxu0 %v352
  %v1284 = vpop.f32.mrb[0].mxu0
  %v1285 = vadd.f32 0.0, %v1284
  %v1286 = vpop.f32.mrb[0].mxu0
  %1287 = vdwg.mxu0
  %1290 = vrot.lane.b32.xlu0 %v1193, 124
  %v1291 = vpop.permute.xlu0 %1290
  %1292 = vrot.lane.b32.xlu0 %v1198, 124
  %v1293 = vpop.permute.xlu0 %1292
  %1296 = vmatprep.subr.mxu0 0.0
  %1297 = vmatpush1.msra.mxu0 %v1291
  %1298 = vmatprep.subr.mxu0 0.0
  %1299 = vmatpush1.msra.mxu0 %v1293
  %1300 = vmatprep.subr.mxu0 0.0
  %1301 = vmatpush1.msra.mxu0 0.0
  %1302 = vmatprep.subr.mxu0 0.0
  %1303 = vmatpush1.msra.mxu0 0.0
  %1304 = vmatprep.subr.mxu0 0.0
  %1305 = vmatpush1.msra.mxu0 0.0
  %1306 = vmatprep.subr.mxu0 0.0
  %1307 = vmatpush1.msra.mxu0 0.0
  %1308 = vmatprep.subr.mxu0 0.0
  %1309 = vmatpush1.msra.mxu0 0.0
  %1310 = vmatprep.subr.mxu0 0.0
  %1311 = vmatpush1.msra.mxu0 0.0
  %1312 = vmatprep.subr.mxu0 0.0
  %1313 = vmatpush1.msra.mxu0 0.0
  %1314 = vmatprep.subr.mxu0 0.0
  %1315 = vmatpush1.msra.mxu0 0.0
  %1316 = vmatprep.subr.mxu0 0.0
  %1317 = vmatpush1.msra.mxu0 0.0
  %1318 = vmatprep.subr.mxu0 0.0
  %1319 = vmatpush1.msra.mxu0 0.0
  %1320 = vmatprep.subr.mxu0 0.0
  %1321 = vmatpush1.msra.mxu0 0.0
  %1322 = vmatprep.subr.mxu0 0.0
  %1323 = vmatpush1.msra.mxu0 0.0
  %1324 = vmatprep.subr.mxu0 0.0
  %1325 = vmatpush1.msra.mxu0 0.0
  %1326 = vmatprep.subr.mxu0 0.0
  %1327 = vmatpush1.msra.mxu0 0.0
  %1328 = vmatprep.subr.mxu0 0.0
  %1329 = vmatpush1.msra.mxu0 0.0
  %1330 = vmatprep.subr.mxu0 0.0
  %1331 = vmatpush1.msra.mxu0 0.0
  %1332 = vmatprep.subr.mxu0 0.0
  %1333 = vmatpush1.msra.mxu0 0.0
  %1334 = vmatprep.subr.mxu0 0.0
  %1335 = vmatpush1.msra.mxu0 0.0
  %1336 = vmatprep.subr.mxu0 0.0
  %1337 = vmatpush1.msra.mxu0 0.0
  %1338 = vmatprep.subr.mxu0 0.0
  %1339 = vmatpush1.msra.mxu0 0.0
  %1340 = vmatprep.subr.mxu0 0.0
  %1341 = vmatpush1.msra.mxu0 0.0
  %1342 = vmatprep.subr.mxu0 0.0
  %1343 = vmatpush1.msra.mxu0 0.0
  %1344 = vmatprep.subr.mxu0 0.0
  %1345 = vmatpush1.msra.mxu0 0.0
  %1346 = vmatprep.subr.mxu0 0.0
  %1347 = vmatpush1.msra.mxu0 0.0
  %1348 = vmatprep.subr.mxu0 0.0
  %1349 = vmatpush1.msra.mxu0 0.0
  %1350 = vmatprep.subr.mxu0 0.0
  %1351 = vmatpush1.msra.mxu0 0.0
  %1352 = vmatprep.subr.mxu0 0.0
  %1353 = vmatpush1.msra.mxu0 0.0
  %1354 = vmatprep.subr.mxu0 0.0
  %1355 = vmatpush1.msra.mxu0 0.0
  %1356 = vmatprep.subr.mxu0 0.0
  %1357 = vmatpush1.msra.mxu0 0.0
  %1358 = vmatprep.subr.mxu0 0.0
  %1359 = vmatpush1.msra.mxu0 0.0
  %1360 = vmatprep.mubr.f32.mxu0 0.0
  %1361 = vmatmul.mubr.f32.gmra.mrb[0].mxu0 %v448
  %v1362 = vpop.f32.mrb[0].mxu0
  %v1363 = vadd.f32 0.0, %v1362
  %v1364 = vpop.f32.mrb[0].mxu0
  %1365 = vmatprep.mubr.f32.mxu0 0.0
  %1366 = vmatmul.mubr.f32.gmra.mrb[0].mxu0 %v451
  %v1367 = vpop.f32.mrb[0].mxu0
  %v1368 = vadd.f32 0.0, %v1367
  %v1369 = vpop.f32.mrb[0].mxu0
  %1370 = vmatprep.mubr.f32.mxu0 0.0
  %1371 = vmatmul.mubr.f32.gmra.mrb[0].mxu0 %v454
  %v1372 = vpop.f32.mrb[0].mxu0
  %v1373 = vadd.f32 0.0, %v1372
  %v1374 = vpop.f32.mrb[0].mxu0
  %1375 = vmatprep.mubr.f32.mxu0 0.0
  %1376 = vmatmul.mubr.f32.gmra.mrb[0].mxu0 %v457
  %v1377 = vpop.f32.mrb[0].mxu0
  %v1378 = vadd.f32 0.0, %v1377
  %v1379 = vpop.f32.mrb[0].mxu0
  %1380 = vdwg.mxu0
  %1381 = vrot.lane.b32.xlu0 %v1193, 126
  %v1382 = vpop.permute.xlu0 %1381
  %1383 = vrot.lane.b32.xlu0 %v1198, 126
  %v1384 = vpop.permute.xlu0 %1383
  %1387 = vmatprep.subr.mxu0 0.0
  %1388 = vmatpush1.msra.mxu0 %v1382
  %1389 = vmatprep.subr.mxu0 0.0
  %1390 = vmatpush1.msra.mxu0 %v1384
  %1391 = vmatprep.subr.mxu0 0.0
  %1392 = vmatpush1.msra.mxu0 0.0
  %1393 = vmatprep.subr.mxu0 0.0
  %1394 = vmatpush1.msra.mxu0 0.0
  %1395 = vmatprep.subr.mxu0 0.0
  %1396 = vmatpush1.msra.mxu0 0.0
  %1397 = vmatprep.subr.mxu0 0.0
  %1398 = vmatpush1.msra.mxu0 0.0
  %1399 = vmatprep.subr.mxu0 0.0
  %1400 = vmatpush1.msra.mxu0 0.0
  %1401 = vmatprep.subr.mxu0 0.0
  %1402 = vmatpush1.msra.mxu0 0.0
  %1403 = vmatprep.subr.mxu0 0.0
  %1404 = vmatpush1.msra.mxu0 0.0
  %1405 = vmatprep.subr.mxu0 0.0
  %1406 = vmatpush1.msra.mxu0 0.0
  %1407 = vmatprep.subr.mxu0 0.0
  %1408 = vmatpush1.msra.mxu0 0.0
  %1409 = vmatprep.subr.mxu0 0.0
  %1410 = vmatpush1.msra.mxu0 0.0
  %1411 = vmatprep.subr.mxu0 0.0
  %1412 = vmatpush1.msra.mxu0 0.0
  %1413 = vmatprep.subr.mxu0 0.0
  %1414 = vmatpush1.msra.mxu0 0.0
  %1415 = vmatprep.subr.mxu0 0.0
  %1416 = vmatpush1.msra.mxu0 0.0
  %1417 = vmatprep.subr.mxu0 0.0
  %1418 = vmatpush1.msra.mxu0 0.0
  %1419 = vmatprep.subr.mxu0 0.0
  %1420 = vmatpush1.msra.mxu0 0.0
  %1421 = vmatprep.subr.mxu0 0.0
  %1422 = vmatpush1.msra.mxu0 0.0
  %1423 = vmatprep.subr.mxu0 0.0
  %1424 = vmatpush1.msra.mxu0 0.0
  %1425 = vmatprep.subr.mxu0 0.0
  %1426 = vmatpush1.msra.mxu0 0.0
  %1427 = vmatprep.subr.mxu0 0.0
  %1428 = vmatpush1.msra.mxu0 0.0
  %1429 = vmatprep.subr.mxu0 0.0
  %1430 = vmatpush1.msra.mxu0 0.0
  %1431 = vmatprep.subr.mxu0 0.0
  %1432 = vmatpush1.msra.mxu0 0.0
  %1433 = vmatprep.subr.mxu0 0.0
  %1434 = vmatpush1.msra.mxu0 0.0
  %1435 = vmatprep.subr.mxu0 0.0
  %1436 = vmatpush1.msra.mxu0 0.0
  %1437 = vmatprep.subr.mxu0 0.0
  %1438 = vmatpush1.msra.mxu0 0.0
  %1439 = vmatprep.subr.mxu0 0.0
  %1440 = vmatpush1.msra.mxu0 0.0
  %1441 = vmatprep.subr.mxu0 0.0
  %1442 = vmatpush1.msra.mxu0 0.0
  %1443 = vmatprep.subr.mxu0 0.0
  %1444 = vmatpush1.msra.mxu0 0.0
  %1445 = vmatprep.subr.mxu0 0.0
  %1446 = vmatpush1.msra.mxu0 0.0
  %1447 = vmatprep.subr.mxu0 0.0
  %1448 = vmatpush1.msra.mxu0 0.0
  %1449 = vmatprep.subr.mxu0 0.0
  %1450 = vmatpush1.msra.mxu0 0.0
  %1451 = vmatprep.mubr.f32.mxu0 0.0
  %1452 = vmatmul.mubr.f32.gmra.mrb[0].mxu0 %v551
  %v1453 = vpop.f32.mrb[0].mxu0
  %v1454 = vadd.f32 %v1363, %v1453
  %v1455 = vpop.f32.mrb[0].mxu0
  %1456 = vmatprep.mubr.f32.mxu0 0.0
  %1457 = vmatmul.mubr.f32.gmra.mrb[0].mxu0 %v554
  %v1458 = vpop.f32.mrb[0].mxu0
  %v1459 = vadd.f32 %v1368, %v1458
  %v1460 = vpop.f32.mrb[0].mxu0
  %1461 = vmatprep.mubr.f32.mxu0 0.0
  %1462 = vmatmul.mubr.f32.gmra.mrb[0].mxu0 %v557
  %v1463 = vpop.f32.mrb[0].mxu0
  %v1464 = vadd.f32 %v1373, %v1463
  %v1465 = vpop.f32.mrb[0].mxu0
  %1466 = vmatprep.mubr.f32.mxu0 0.0
  %1467 = vmatmul.mubr.f32.gmra.mrb[0].mxu0 %v560
  %v1468 = vpop.f32.mrb[0].mxu0
  %v1469 = vadd.f32 %v1378, %v1468
  %v1470 = vpop.f32.mrb[0].mxu0
  %1471 = vdwg.mxu0
  %v1472 = vadd.f32 %v1454, %v1270
  %v1473 = vadd.f32 %v1459, %v1275
  %v1474 = vadd.f32 %v1464, %v1280
  %v1475 = vadd.f32 %v1469, %v1285
  %vm1476 = vcmp.gt.f32.partialorder %v1472, 0.0
  %vm1477 = vcmp.gt.f32.partialorder %v1473, 0.0
  %vm1478 = vcmp.gt.f32.partialorder %v1474, 0.0
  %vm1479 = vcmp.gt.f32.partialorder %v1475, 0.0
  %v1480 = vmul.f32 %v1472, 0.01
  %v1481 = vmul.f32 %v1473, 0.01
  %v1482 = vmul.f32 %v1474, 0.01
  %v1483 = vmul.f32 %v1475, 0.01
  %v1484 = vsel %vm1476, %v1472, %v1480
  %v1485 = vsel %vm1477, %v1473, %v1481
  %v1486 = vsel %vm1478, %v1474, %v1482
  %v1487 = vsel %vm1479, %v1475, %v1483
  %1489 = vset.pattern.permute.xlu0 0
  %1490 = vperm.xlu0 %1489, %v1484
  %v1491 = vpop.permute.xlu0 %1490
  %1494 = vset.pattern.permute.xlu0 0
  %1495 = vperm.xlu0 %1494, %v1485
  %v1496 = vpop.permute.xlu0 %1495
  %1499 = vset.pattern.permute.xlu0 0
  %1500 = vperm.xlu0 %1499, %v1486
  %v1501 = vpop.permute.xlu0 %1500
  %1504 = vset.pattern.permute.xlu0 0
  %1505 = vperm.xlu0 %1504, %v1487
  %v1506 = vpop.permute.xlu0 %1505
  %v1508 = vmul.f32 %v1491, %v245
  %v1509 = vmul.f32 %v1496, %v246
  %v1510 = vmul.f32 %v1501, %v247
  %v1511 = vmul.f32 %v1506, %v248
  %1512 = vmatprep.subr.mxu0 0.0
  %1513 = vmatpush1.msra.mxu0 %v1508
  %1514 = vmatprep.subr.mxu0 0.0
  %1515 = vmatpush1.msra.mxu0 %v1509
  %1516 = vmatprep.subr.mxu0 0.0
  %1517 = vmatpush1.msra.mxu0 %v1510
  %1518 = vmatprep.subr.mxu0 0.0
  %1519 = vmatpush1.msra.mxu0 %v1511
  %1520 = vmatprep.subr.mxu0 0.0
  %1521 = vmatpush1.msra.mxu0 0.0
  %1522 = vmatprep.subr.mxu0 0.0
  %1523 = vmatpush1.msra.mxu0 0.0
  %1524 = vmatprep.subr.mxu0 0.0
  %1525 = vmatpush1.msra.mxu0 0.0
  %1526 = vmatprep.subr.mxu0 0.0
  %1527 = vmatpush1.msra.mxu0 0.0
  %1528 = vmatprep.subr.mxu0 0.0
  %1529 = vmatpush1.msra.mxu0 0.0
  %1530 = vmatprep.subr.mxu0 0.0
  %1531 = vmatpush1.msra.mxu0 0.0
  %1532 = vmatprep.subr.mxu0 0.0
  %1533 = vmatpush1.msra.mxu0 0.0
  %1534 = vmatprep.subr.mxu0 0.0
  %1535 = vmatpush1.msra.mxu0 0.0
  %1536 = vmatprep.subr.mxu0 0.0
  %1537 = vmatpush1.msra.mxu0 0.0
  %1538 = vmatprep.subr.mxu0 0.0
  %1539 = vmatpush1.msra.mxu0 0.0
  %1540 = vmatprep.subr.mxu0 0.0
  %1541 = vmatpush1.msra.mxu0 0.0
  %1542 = vmatprep.subr.mxu0 0.0
  %1543 = vmatpush1.msra.mxu0 0.0
  %1544 = vmatprep.subr.mxu0 0.0
  %1545 = vmatpush1.msra.mxu0 0.0
  %1546 = vmatprep.subr.mxu0 0.0
  %1547 = vmatpush1.msra.mxu0 0.0
  %1548 = vmatprep.subr.mxu0 0.0
  %1549 = vmatpush1.msra.mxu0 0.0
  %1550 = vmatprep.subr.mxu0 0.0
  %1551 = vmatpush1.msra.mxu0 0.0
  %1552 = vmatprep.subr.mxu0 0.0
  %1553 = vmatpush1.msra.mxu0 0.0
  %1554 = vmatprep.subr.mxu0 0.0
  %1555 = vmatpush1.msra.mxu0 0.0
  %1556 = vmatprep.subr.mxu0 0.0
  %1557 = vmatpush1.msra.mxu0 0.0
  %1558 = vmatprep.subr.mxu0 0.0
  %1559 = vmatpush1.msra.mxu0 0.0
  %1560 = vmatprep.subr.mxu0 0.0
  %1561 = vmatpush1.msra.mxu0 0.0
  %1562 = vmatprep.subr.mxu0 0.0
  %1563 = vmatpush1.msra.mxu0 0.0
  %1564 = vmatprep.subr.mxu0 0.0
  %1565 = vmatpush1.msra.mxu0 0.0
  %1566 = vmatprep.subr.mxu0 0.0
  %1567 = vmatpush1.msra.mxu0 0.0
  %1568 = vmatprep.subr.mxu0 0.0
  %1569 = vmatpush1.msra.mxu0 0.0
  %1570 = vmatprep.subr.mxu0 0.0
  %1571 = vmatpush1.msra.mxu0 0.0
  %1572 = vmatprep.subr.mxu0 0.0
  %1573 = vmatpush1.msra.mxu0 0.0
  %1574 = vmatprep.subr.mxu0 0.0
  %1575 = vmatpush1.msra.mxu0 0.0
  %1576 = vmatprep.mubr.f32.mxu0 0.0
  %1577 = vmatmul.mubr.f32.gmra.mrb[0].mxu0 %v688
  %v1578 = vpop.f32.mrb[0].mxu0
  %v1579 = vadd.f32 0.0, %v1578
  %v1580 = vpop.f32.mrb[0].mxu0
  %1581 = vmatprep.mubr.f32.mxu0 0.0
  %1582 = vmatmul.mubr.f32.gmra.mrb[0].mxu0 %v691
  %v1583 = vpop.f32.mrb[0].mxu0
  %v1584 = vadd.f32 0.0, %v1583
  %v1585 = vpop.f32.mrb[0].mxu0
  %1586 = vdwg.mxu0
  %v1587 = vsel %vm768, %v1579, -1e+30
  %v1588 = vsel %vm769, %v1584, -1e+30
  %v1589 = vsel %vm64, %v1587, -inf
  %1590 = vmax.xlane.f32.xlu0 %v1589
  %v1591 = vpop.xlane.xlu0 %1590
  %v1592 = vsel %vm64, %v1588, -inf
  %1593 = vmax.xlane.f32.xlu0 %v1592
  %v1594 = vpop.xlane.xlu0 %1593
  %v1595 = vsub.f32 %v1587, %v1591
  %v1596 = vsub.f32 %v1588, %v1594
  %v1597 = vmul.f32 %v1595, 1.442695
  %v1598 = vpow.pop %v1597
  %v1599 = vmul.f32 %v1596, 1.442695
  %v1600 = vpow.pop %v1599
  %v1601 = vsel %vm64, %v1598, 0.0
  %1602 = vadd.xlane.f32.xlu0 %v1601
  %v1603 = vpop.xlane.xlu0 %1602
  %v1604 = vsel %vm64, %v1600, 0.0
  %1605 = vadd.xlane.f32.xlu0 %v1604
  %v1606 = vpop.xlane.xlu0 %1605
  %v1607 = vrcp.pop %v1603
  %v1608 = vmul.f32 %v1598, %v1607
  %v1609 = vrcp.pop %v1606
  %v1610 = vmul.f32 %v1600, %v1609
  %v1612 = vsel %vm64, %v1608, 0
  %v1615 = vsel %vm64, %v1610, 0
  %1617 = vmatprep.subr.mxu0 0.0
  %1618 = vmatpush1.msra.mxu0 %v1193
  %1619 = vmatprep.subr.mxu0 0.0
  %1620 = vmatpush1.msra.mxu0 %v1198
  %1621 = vmatprep.subr.mxu0 0.0
  %1622 = vmatpush1.msra.mxu0 0.0
  %1623 = vmatprep.subr.mxu0 0.0
  %1624 = vmatpush1.msra.mxu0 0.0
  %1625 = vmatprep.subr.mxu0 0.0
  %1626 = vmatpush1.msra.mxu0 0.0
  %1627 = vmatprep.subr.mxu0 0.0
  %1628 = vmatpush1.msra.mxu0 0.0
  %1629 = vmatprep.subr.mxu0 0.0
  %1630 = vmatpush1.msra.mxu0 0.0
  %1631 = vmatprep.subr.mxu0 0.0
  %1632 = vmatpush1.msra.mxu0 0.0
  %1633 = vmatprep.subr.mxu0 0.0
  %1634 = vmatpush1.msra.mxu0 0.0
  %1635 = vmatprep.subr.mxu0 0.0
  %1636 = vmatpush1.msra.mxu0 0.0
  %1637 = vmatprep.subr.mxu0 0.0
  %1638 = vmatpush1.msra.mxu0 0.0
  %1639 = vmatprep.subr.mxu0 0.0
  %1640 = vmatpush1.msra.mxu0 0.0
  %1641 = vmatprep.subr.mxu0 0.0
  %1642 = vmatpush1.msra.mxu0 0.0
  %1643 = vmatprep.subr.mxu0 0.0
  %1644 = vmatpush1.msra.mxu0 0.0
  %1645 = vmatprep.subr.mxu0 0.0
  %1646 = vmatpush1.msra.mxu0 0.0
  %1647 = vmatprep.subr.mxu0 0.0
  %1648 = vmatpush1.msra.mxu0 0.0
  %1649 = vmatprep.subr.mxu0 0.0
  %1650 = vmatpush1.msra.mxu0 0.0
  %1651 = vmatprep.subr.mxu0 0.0
  %1652 = vmatpush1.msra.mxu0 0.0
  %1653 = vmatprep.subr.mxu0 0.0
  %1654 = vmatpush1.msra.mxu0 0.0
  %1655 = vmatprep.subr.mxu0 0.0
  %1656 = vmatpush1.msra.mxu0 0.0
  %1657 = vmatprep.subr.mxu0 0.0
  %1658 = vmatpush1.msra.mxu0 0.0
  %1659 = vmatprep.subr.mxu0 0.0
  %1660 = vmatpush1.msra.mxu0 0.0
  %1661 = vmatprep.subr.mxu0 0.0
  %1662 = vmatpush1.msra.mxu0 0.0
  %1663 = vmatprep.subr.mxu0 0.0
  %1664 = vmatpush1.msra.mxu0 0.0
  %1665 = vmatprep.subr.mxu0 0.0
  %1666 = vmatpush1.msra.mxu0 0.0
  %1667 = vmatprep.subr.mxu0 0.0
  %1668 = vmatpush1.msra.mxu0 0.0
  %1669 = vmatprep.subr.mxu0 0.0
  %1670 = vmatpush1.msra.mxu0 0.0
  %1671 = vmatprep.subr.mxu0 0.0
  %1672 = vmatpush1.msra.mxu0 0.0
  %1673 = vmatprep.subr.mxu0 0.0
  %1674 = vmatpush1.msra.mxu0 0.0
  %1675 = vmatprep.subr.mxu0 0.0
  %1676 = vmatpush1.msra.mxu0 0.0
  %1677 = vmatprep.subr.mxu0 0.0
  %1678 = vmatpush1.msra.mxu0 0.0
  %1679 = vmatprep.subr.mxu0 0.0
  %1680 = vmatpush1.msra.mxu0 0.0
  %1681 = vmatprep.mubr.f32.mxu0 0.0
  %1682 = vmatmul.mubr.f32.gmra.mrb[0].mxu0 %v1612
  %v1683 = vpop.f32.mrb[0].mxu0
  %v1684 = vadd.f32 0.0, %v1683
  %v1685 = vpop.f32.mrb[0].mxu0
  %1686 = vmatprep.mubr.f32.mxu0 0.0
  %1687 = vmatmul.mubr.f32.gmra.mrb[0].mxu0 %v1615
  %v1688 = vpop.f32.mrb[0].mxu0
  %v1689 = vadd.f32 0.0, %v1688
  %v1690 = vpop.f32.mrb[0].mxu0
  %1691 = vdwg.mxu0
  %v1692 = vsel %vm875, %v1684, 0.0
  %v1693 = vsel %vm875, %v1689, 0.0
  %v1694 = vadd.f32 %v1692, %v1693
  %v1695 = vrot.slane %v1694, 4
  %v1696 = vadd.f32 %v1694, %v1695
  %v1697 = vrot.slane %v1696, 2
  %v1698 = vadd.f32 %v1696, %v1697
  %v1699 = vrot.slane %v1698, 1
  %v1700 = vadd.f32 %v1698, %v1699
  %v1701 = vadd.f32 %v1700, 0.0
  %1702 = vset.pattern.permute.xlu0 1
  %1703 = vperm.xlu0 %1702, %v1484
  %v1704 = vpop.permute.xlu0 %1703
  %1706 = vset.pattern.permute.xlu0 1
  %1707 = vperm.xlu0 %1706, %v1485
  %v1708 = vpop.permute.xlu0 %1707
  %1710 = vset.pattern.permute.xlu0 1
  %1711 = vperm.xlu0 %1710, %v1486
  %v1712 = vpop.permute.xlu0 %1711
  %1714 = vset.pattern.permute.xlu0 1
  %1715 = vperm.xlu0 %1714, %v1487
  %v1716 = vpop.permute.xlu0 %1715
  %v1718 = vmul.f32 %v1704, %v245
  %v1719 = vmul.f32 %v1708, %v246
  %v1720 = vmul.f32 %v1712, %v247
  %v1721 = vmul.f32 %v1716, %v248
  %1722 = vmatprep.subr.mxu0 0.0
  %1723 = vmatpush1.msra.mxu0 %v1718
  %1724 = vmatprep.subr.mxu0 0.0
  %1725 = vmatpush1.msra.mxu0 %v1719
  %1726 = vmatprep.subr.mxu0 0.0
  %1727 = vmatpush1.msra.mxu0 %v1720
  %1728 = vmatprep.subr.mxu0 0.0
  %1729 = vmatpush1.msra.mxu0 %v1721
  %1730 = vmatprep.subr.mxu0 0.0
  %1731 = vmatpush1.msra.mxu0 0.0
  %1732 = vmatprep.subr.mxu0 0.0
  %1733 = vmatpush1.msra.mxu0 0.0
  %1734 = vmatprep.subr.mxu0 0.0
  %1735 = vmatpush1.msra.mxu0 0.0
  %1736 = vmatprep.subr.mxu0 0.0
  %1737 = vmatpush1.msra.mxu0 0.0
  %1738 = vmatprep.subr.mxu0 0.0
  %1739 = vmatpush1.msra.mxu0 0.0
  %1740 = vmatprep.subr.mxu0 0.0
  %1741 = vmatpush1.msra.mxu0 0.0
  %1742 = vmatprep.subr.mxu0 0.0
  %1743 = vmatpush1.msra.mxu0 0.0
  %1744 = vmatprep.subr.mxu0 0.0
  %1745 = vmatpush1.msra.mxu0 0.0
  %1746 = vmatprep.subr.mxu0 0.0
  %1747 = vmatpush1.msra.mxu0 0.0
  %1748 = vmatprep.subr.mxu0 0.0
  %1749 = vmatpush1.msra.mxu0 0.0
  %1750 = vmatprep.subr.mxu0 0.0
  %1751 = vmatpush1.msra.mxu0 0.0
  %1752 = vmatprep.subr.mxu0 0.0
  %1753 = vmatpush1.msra.mxu0 0.0
  %1754 = vmatprep.subr.mxu0 0.0
  %1755 = vmatpush1.msra.mxu0 0.0
  %1756 = vmatprep.subr.mxu0 0.0
  %1757 = vmatpush1.msra.mxu0 0.0
  %1758 = vmatprep.subr.mxu0 0.0
  %1759 = vmatpush1.msra.mxu0 0.0
  %1760 = vmatprep.subr.mxu0 0.0
  %1761 = vmatpush1.msra.mxu0 0.0
  %1762 = vmatprep.subr.mxu0 0.0
  %1763 = vmatpush1.msra.mxu0 0.0
  %1764 = vmatprep.subr.mxu0 0.0
  %1765 = vmatpush1.msra.mxu0 0.0
  %1766 = vmatprep.subr.mxu0 0.0
  %1767 = vmatpush1.msra.mxu0 0.0
  %1768 = vmatprep.subr.mxu0 0.0
  %1769 = vmatpush1.msra.mxu0 0.0
  %1770 = vmatprep.subr.mxu0 0.0
  %1771 = vmatpush1.msra.mxu0 0.0
  %1772 = vmatprep.subr.mxu0 0.0
  %1773 = vmatpush1.msra.mxu0 0.0
  %1774 = vmatprep.subr.mxu0 0.0
  %1775 = vmatpush1.msra.mxu0 0.0
  %1776 = vmatprep.subr.mxu0 0.0
  %1777 = vmatpush1.msra.mxu0 0.0
  %1778 = vmatprep.subr.mxu0 0.0
  %1779 = vmatpush1.msra.mxu0 0.0
  %1780 = vmatprep.subr.mxu0 0.0
  %1781 = vmatpush1.msra.mxu0 0.0
  %1782 = vmatprep.subr.mxu0 0.0
  %1783 = vmatpush1.msra.mxu0 0.0
  %1784 = vmatprep.subr.mxu0 0.0
  %1785 = vmatpush1.msra.mxu0 0.0
  %1786 = vmatprep.mubr.f32.mxu0 0.0
  %1787 = vmatmul.mubr.f32.gmra.mrb[0].mxu0 %v688
  %v1788 = vpop.f32.mrb[0].mxu0
  %v1789 = vadd.f32 0.0, %v1788
  %v1790 = vpop.f32.mrb[0].mxu0
  %1791 = vmatprep.mubr.f32.mxu0 0.0
  %1792 = vmatmul.mubr.f32.gmra.mrb[0].mxu0 %v691
  %v1793 = vpop.f32.mrb[0].mxu0
  %v1794 = vadd.f32 0.0, %v1793
  %v1795 = vpop.f32.mrb[0].mxu0
  %1796 = vdwg.mxu0
  %v1797 = vsel %vm768, %v1789, -1e+30
  %v1798 = vsel %vm769, %v1794, -1e+30
  %v1799 = vsel %vm64, %v1797, -inf
  %1800 = vmax.xlane.f32.xlu0 %v1799
  %v1801 = vpop.xlane.xlu0 %1800
  %v1802 = vsel %vm64, %v1798, -inf
  %1803 = vmax.xlane.f32.xlu0 %v1802
  %v1804 = vpop.xlane.xlu0 %1803
  %v1805 = vsub.f32 %v1797, %v1801
  %v1806 = vsub.f32 %v1798, %v1804
  %v1807 = vmul.f32 %v1805, 1.442695
  %v1808 = vpow.pop %v1807
  %v1809 = vmul.f32 %v1806, 1.442695
  %v1810 = vpow.pop %v1809
  %v1811 = vsel %vm64, %v1808, 0.0
  %1812 = vadd.xlane.f32.xlu0 %v1811
  %v1813 = vpop.xlane.xlu0 %1812
  %v1814 = vsel %vm64, %v1810, 0.0
  %1815 = vadd.xlane.f32.xlu0 %v1814
  %v1816 = vpop.xlane.xlu0 %1815
  %v1817 = vrcp.pop %v1813
  %v1818 = vmul.f32 %v1808, %v1817
  %v1819 = vrcp.pop %v1816
  %v1820 = vmul.f32 %v1810, %v1819
  %1821 = vrot.lane.b32.xlu0 %v1193, 127
  %v1822 = vpop.permute.xlu0 %1821
  %1823 = vrot.lane.b32.xlu0 %v1198, 127
  %v1824 = vpop.permute.xlu0 %1823
  %v1828 = vsel %vm64, %v1818, 0
  %v1831 = vsel %vm64, %v1820, 0
  %1833 = vmatprep.subr.mxu0 0.0
  %1834 = vmatpush1.msra.mxu0 %v1822
  %1835 = vmatprep.subr.mxu0 0.0
  %1836 = vmatpush1.msra.mxu0 %v1824
  %1837 = vmatprep.subr.mxu0 0.0
  %1838 = vmatpush1.msra.mxu0 0.0
  %1839 = vmatprep.subr.mxu0 0.0
  %1840 = vmatpush1.msra.mxu0 0.0
  %1841 = vmatprep.subr.mxu0 0.0
  %1842 = vmatpush1.msra.mxu0 0.0
  %1843 = vmatprep.subr.mxu0 0.0
  %1844 = vmatpush1.msra.mxu0 0.0
  %1845 = vmatprep.subr.mxu0 0.0
  %1846 = vmatpush1.msra.mxu0 0.0
  %1847 = vmatprep.subr.mxu0 0.0
  %1848 = vmatpush1.msra.mxu0 0.0
  %1849 = vmatprep.subr.mxu0 0.0
  %1850 = vmatpush1.msra.mxu0 0.0
  %1851 = vmatprep.subr.mxu0 0.0
  %1852 = vmatpush1.msra.mxu0 0.0
  %1853 = vmatprep.subr.mxu0 0.0
  %1854 = vmatpush1.msra.mxu0 0.0
  %1855 = vmatprep.subr.mxu0 0.0
  %1856 = vmatpush1.msra.mxu0 0.0
  %1857 = vmatprep.subr.mxu0 0.0
  %1858 = vmatpush1.msra.mxu0 0.0
  %1859 = vmatprep.subr.mxu0 0.0
  %1860 = vmatpush1.msra.mxu0 0.0
  %1861 = vmatprep.subr.mxu0 0.0
  %1862 = vmatpush1.msra.mxu0 0.0
  %1863 = vmatprep.subr.mxu0 0.0
  %1864 = vmatpush1.msra.mxu0 0.0
  %1865 = vmatprep.subr.mxu0 0.0
  %1866 = vmatpush1.msra.mxu0 0.0
  %1867 = vmatprep.subr.mxu0 0.0
  %1868 = vmatpush1.msra.mxu0 0.0
  %1869 = vmatprep.subr.mxu0 0.0
  %1870 = vmatpush1.msra.mxu0 0.0
  %1871 = vmatprep.subr.mxu0 0.0
  %1872 = vmatpush1.msra.mxu0 0.0
  %1873 = vmatprep.subr.mxu0 0.0
  %1874 = vmatpush1.msra.mxu0 0.0
  %1875 = vmatprep.subr.mxu0 0.0
  %1876 = vmatpush1.msra.mxu0 0.0
  %1877 = vmatprep.subr.mxu0 0.0
  %1878 = vmatpush1.msra.mxu0 0.0
  %1879 = vmatprep.subr.mxu0 0.0
  %1880 = vmatpush1.msra.mxu0 0.0
  %1881 = vmatprep.subr.mxu0 0.0
  %1882 = vmatpush1.msra.mxu0 0.0
  %1883 = vmatprep.subr.mxu0 0.0
  %1884 = vmatpush1.msra.mxu0 0.0
  %1885 = vmatprep.subr.mxu0 0.0
  %1886 = vmatpush1.msra.mxu0 0.0
  %1887 = vmatprep.subr.mxu0 0.0
  %1888 = vmatpush1.msra.mxu0 0.0
  %1889 = vmatprep.subr.mxu0 0.0
  %1890 = vmatpush1.msra.mxu0 0.0
  %1891 = vmatprep.subr.mxu0 0.0
  %1892 = vmatpush1.msra.mxu0 0.0
  %1893 = vmatprep.subr.mxu0 0.0
  %1894 = vmatpush1.msra.mxu0 0.0
  %1895 = vmatprep.subr.mxu0 0.0
  %1896 = vmatpush1.msra.mxu0 0.0
  %1897 = vmatprep.mubr.f32.mxu0 0.0
  %1898 = vmatmul.mubr.f32.gmra.mrb[0].mxu0 %v1828
  %v1899 = vpop.f32.mrb[0].mxu0
  %v1900 = vadd.f32 0.0, %v1899
  %v1901 = vpop.f32.mrb[0].mxu0
  %1902 = vmatprep.mubr.f32.mxu0 0.0
  %1903 = vmatmul.mubr.f32.gmra.mrb[0].mxu0 %v1831
  %v1904 = vpop.f32.mrb[0].mxu0
  %v1905 = vadd.f32 0.0, %v1904
  %v1906 = vpop.f32.mrb[0].mxu0
  %1907 = vdwg.mxu0
  %v1908 = vsel %vm875, %v1900, 0.0
  %v1909 = vsel %vm875, %v1905, 0.0
  %v1910 = vadd.f32 %v1908, %v1909
  %v1911 = vrot.slane %v1910, 4
  %v1912 = vadd.f32 %v1910, %v1911
  %v1913 = vrot.slane %v1912, 2
  %v1914 = vadd.f32 %v1912, %v1913
  %v1915 = vrot.slane %v1914, 1
  %v1916 = vadd.f32 %v1914, %v1915
  %v1917 = vadd.f32 %v1701, %v1916
  %v1918 = vmul.f32 %v1917, 0.0009765625
  %vm1919 = vcmp.gt.f32.partialorder %v1918, 0.0
  %v1920 = vmul.f32 %v1918, 1.442695
  %v1921 = vpow.pop %v1920
  %v1922 = vsub.f32 %v1921, 1.0
  %v1923 = vsel %vm1919, %v1918, %v1922
  %1925 = vset.pattern.permute.xlu0 0
  %1926 = vperm.xlu0 %1925, %v1923
  %v1927 = vpop.permute.xlu0 %1926
  %v1929 = vadd.f32 %v1113, %v1927
  %v1930 = vadd.f32 %v1114, %v1927
  %s1931 = scalar_lea.vmem %s5, 64
  %v1932 = vld [vmem:[%s1931] sm:$0xff]
  %v1933 = vld [vmem:[%s1931 + $0x8] sm:$0xff]
  %v1934 = vld [vmem:[%s1931 + $0x10] sm:$0xff]
  %v1935 = vld [vmem:[%s1931 + $0x18] sm:$0xff]
  %v1937 = vsel %vm157, %v1929, 0
  %v1940 = vsel %vm157, %v1930, 0
  %1942 = vmatprep.subr.mxu0 0.0
  %1943 = vmatpush1.msra.mxu0 %v1932
  %1944 = vmatprep.subr.mxu0 0.0
  %1945 = vmatpush1.msra.mxu0 %v1933
  %1946 = vmatprep.subr.mxu0 0.0
  %1947 = vmatpush1.msra.mxu0 %v1934
  %1948 = vmatprep.subr.mxu0 0.0
  %1949 = vmatpush1.msra.mxu0 %v1935
  %1950 = vmatprep.subr.mxu0 0.0
  %1951 = vmatpush1.msra.mxu0 0.0
  %1952 = vmatprep.subr.mxu0 0.0
  %1953 = vmatpush1.msra.mxu0 0.0
  %1954 = vmatprep.subr.mxu0 0.0
  %1955 = vmatpush1.msra.mxu0 0.0
  %1956 = vmatprep.subr.mxu0 0.0
  %1957 = vmatpush1.msra.mxu0 0.0
  %1958 = vmatprep.subr.mxu0 0.0
  %1959 = vmatpush1.msra.mxu0 0.0
  %1960 = vmatprep.subr.mxu0 0.0
  %1961 = vmatpush1.msra.mxu0 0.0
  %1962 = vmatprep.subr.mxu0 0.0
  %1963 = vmatpush1.msra.mxu0 0.0
  %1964 = vmatprep.subr.mxu0 0.0
  %1965 = vmatpush1.msra.mxu0 0.0
  %1966 = vmatprep.subr.mxu0 0.0
  %1967 = vmatpush1.msra.mxu0 0.0
  %1968 = vmatprep.subr.mxu0 0.0
  %1969 = vmatpush1.msra.mxu0 0.0
  %1970 = vmatprep.subr.mxu0 0.0
  %1971 = vmatpush1.msra.mxu0 0.0
  %1972 = vmatprep.subr.mxu0 0.0
  %1973 = vmatpush1.msra.mxu0 0.0
  %1974 = vmatprep.subr.mxu0 0.0
  %1975 = vmatpush1.msra.mxu0 0.0
  %1976 = vmatprep.subr.mxu0 0.0
  %1977 = vmatpush1.msra.mxu0 0.0
  %1978 = vmatprep.subr.mxu0 0.0
  %1979 = vmatpush1.msra.mxu0 0.0
  %1980 = vmatprep.subr.mxu0 0.0
  %1981 = vmatpush1.msra.mxu0 0.0
  %1982 = vmatprep.subr.mxu0 0.0
  %1983 = vmatpush1.msra.mxu0 0.0
  %1984 = vmatprep.subr.mxu0 0.0
  %1985 = vmatpush1.msra.mxu0 0.0
  %1986 = vmatprep.subr.mxu0 0.0
  %1987 = vmatpush1.msra.mxu0 0.0
  %1988 = vmatprep.subr.mxu0 0.0
  %1989 = vmatpush1.msra.mxu0 0.0
  %1990 = vmatprep.subr.mxu0 0.0
  %1991 = vmatpush1.msra.mxu0 0.0
  %1992 = vmatprep.subr.mxu0 0.0
  %1993 = vmatpush1.msra.mxu0 0.0
  %1994 = vmatprep.subr.mxu0 0.0
  %1995 = vmatpush1.msra.mxu0 0.0
  %1996 = vmatprep.subr.mxu0 0.0
  %1997 = vmatpush1.msra.mxu0 0.0
  %1998 = vmatprep.subr.mxu0 0.0
  %1999 = vmatpush1.msra.mxu0 0.0
  %2000 = vmatprep.subr.mxu0 0.0
  %2001 = vmatpush1.msra.mxu0 0.0
  %2002 = vmatprep.subr.mxu0 0.0
  %2003 = vmatpush1.msra.mxu0 0.0
  %2004 = vmatprep.subr.mxu0 0.0
  %2005 = vmatpush1.msra.mxu0 0.0
  %2006 = vmatprep.mubr.f32.mxu0 0.0
  %2007 = vmatmul.mubr.f32.gmra.mrb[0].mxu0 %v1937
  %v2008 = vpop.f32.mrb[0].mxu0
  %v2009 = vadd.f32 0.0, %v2008
  %v2010 = vpop.f32.mrb[0].mxu0
  %2011 = vmatprep.mubr.f32.mxu0 0.0
  %2012 = vmatmul.mubr.f32.gmra.mrb[0].mxu0 %v1940
  %v2013 = vpop.f32.mrb[0].mxu0
  %v2014 = vadd.f32 0.0, %v2013
  %v2015 = vpop.f32.mrb[0].mxu0
  %2016 = vdwg.mxu0
  %s2017 = scalar_lea.vmem %s6, 16
  %v2018 = vld [vmem:[%s2017] sm:$0xff]
  %2019 = vmatprep.subr.mxu0 0.0
  %2020 = vmatpush1.msra.mxu0 %v2018
  %2021 = vmatprep.subr.mxu0 0.0
  %2022 = vmatpush1.msra.mxu0 0.0
  %2023 = vmatprep.subr.mxu0 0.0
  %2024 = vmatpush1.msra.mxu0 0.0
  %2025 = vmatprep.subr.mxu0 0.0
  %2026 = vmatpush1.msra.mxu0 0.0
  %2027 = vmatprep.subr.mxu0 0.0
  %2028 = vmatpush1.msra.mxu0 0.0
  %2029 = vmatprep.subr.mxu0 0.0
  %2030 = vmatpush1.msra.mxu0 0.0
  %2031 = vmatprep.subr.mxu0 0.0
  %2032 = vmatpush1.msra.mxu0 0.0
  %2033 = vmatprep.subr.mxu0 0.0
  %2034 = vmatpush1.msra.mxu0 0.0
  %2035 = vmatprep.subr.mxu0 0.0
  %2036 = vmatpush1.msra.mxu0 0.0
  %2037 = vmatprep.subr.mxu0 0.0
  %2038 = vmatpush1.msra.mxu0 0.0
  %2039 = vmatprep.subr.mxu0 0.0
  %2040 = vmatpush1.msra.mxu0 0.0
  %2041 = vmatprep.subr.mxu0 0.0
  %2042 = vmatpush1.msra.mxu0 0.0
  %2043 = vmatprep.subr.mxu0 0.0
  %2044 = vmatpush1.msra.mxu0 0.0
  %2045 = vmatprep.subr.mxu0 0.0
  %2046 = vmatpush1.msra.mxu0 0.0
  %2047 = vmatprep.subr.mxu0 0.0
  %2048 = vmatpush1.msra.mxu0 0.0
  %2049 = vmatprep.subr.mxu0 0.0
  %2050 = vmatpush1.msra.mxu0 0.0
  %2051 = vmatprep.subr.mxu0 0.0
  %2052 = vmatpush1.msra.mxu0 0.0
  %2053 = vmatprep.subr.mxu0 0.0
  %2054 = vmatpush1.msra.mxu0 0.0
  %2055 = vmatprep.subr.mxu0 0.0
  %2056 = vmatpush1.msra.mxu0 0.0
  %2057 = vmatprep.subr.mxu0 0.0
  %2058 = vmatpush1.msra.mxu0 0.0
  %2059 = vmatprep.subr.mxu0 0.0
  %2060 = vmatpush1.msra.mxu0 0.0
  %2061 = vmatprep.subr.mxu0 0.0
  %2062 = vmatpush1.msra.mxu0 0.0
  %2063 = vmatprep.subr.mxu0 0.0
  %2064 = vmatpush1.msra.mxu0 0.0
  %2065 = vmatprep.subr.mxu0 0.0
  %2066 = vmatpush1.msra.mxu0 0.0
  %2067 = vmatprep.subr.mxu0 0.0
  %2068 = vmatpush1.msra.mxu0 0.0
  %2069 = vmatprep.subr.mxu0 0.0
  %2070 = vmatpush1.msra.mxu0 0.0
  %2071 = vmatprep.subr.mxu0 0.0
  %2072 = vmatpush1.msra.mxu0 0.0
  %2073 = vmatprep.subr.mxu0 0.0
  %2074 = vmatpush1.msra.mxu0 0.0
  %2075 = vmatprep.subr.mxu0 0.0
  %2076 = vmatpush1.msra.mxu0 0.0
  %2077 = vmatprep.subr.mxu0 0.0
  %2078 = vmatpush1.msra.mxu0 0.0
  %2079 = vmatprep.subr.mxu0 0.0
  %2080 = vmatpush1.msra.mxu0 0.0
  %2081 = vmatprep.subr.mxu0 0.0
  %2082 = vmatpush1.msra.mxu0 0.0
  %2083 = vmatprep.mubr.f32.mxu0 0.0
  %2084 = vmatmul.mubr.f32.gmra.mrb[0].mxu0 %v343
  %v2085 = vpop.f32.mrb[0].mxu0
  %v2086 = vadd.f32 0.0, %v2085
  %v2087 = vpop.f32.mrb[0].mxu0
  %2088 = vmatprep.mubr.f32.mxu0 0.0
  %2089 = vmatmul.mubr.f32.gmra.mrb[0].mxu0 %v346
  %v2090 = vpop.f32.mrb[0].mxu0
  %v2091 = vadd.f32 0.0, %v2090
  %v2092 = vpop.f32.mrb[0].mxu0
  %2093 = vmatprep.mubr.f32.mxu0 0.0
  %2094 = vmatmul.mubr.f32.gmra.mrb[0].mxu0 %v349
  %v2095 = vpop.f32.mrb[0].mxu0
  %v2096 = vadd.f32 0.0, %v2095
  %v2097 = vpop.f32.mrb[0].mxu0
  %2098 = vmatprep.mubr.f32.mxu0 0.0
  %2099 = vmatmul.mubr.f32.gmra.mrb[0].mxu0 %v352
  %v2100 = vpop.f32.mrb[0].mxu0
  %v2101 = vadd.f32 0.0, %v2100
  %v2102 = vpop.f32.mrb[0].mxu0
  %2103 = vdwg.mxu0
  %2106 = vrot.lane.b32.xlu0 %v2009, 124
  %v2107 = vpop.permute.xlu0 %2106
  %2108 = vrot.lane.b32.xlu0 %v2014, 124
  %v2109 = vpop.permute.xlu0 %2108
  %2112 = vmatprep.subr.mxu0 0.0
  %2113 = vmatpush1.msra.mxu0 %v2107
  %2114 = vmatprep.subr.mxu0 0.0
  %2115 = vmatpush1.msra.mxu0 %v2109
  %2116 = vmatprep.subr.mxu0 0.0
  %2117 = vmatpush1.msra.mxu0 0.0
  %2118 = vmatprep.subr.mxu0 0.0
  %2119 = vmatpush1.msra.mxu0 0.0
  %2120 = vmatprep.subr.mxu0 0.0
  %2121 = vmatpush1.msra.mxu0 0.0
  %2122 = vmatprep.subr.mxu0 0.0
  %2123 = vmatpush1.msra.mxu0 0.0
  %2124 = vmatprep.subr.mxu0 0.0
  %2125 = vmatpush1.msra.mxu0 0.0
  %2126 = vmatprep.subr.mxu0 0.0
  %2127 = vmatpush1.msra.mxu0 0.0
  %2128 = vmatprep.subr.mxu0 0.0
  %2129 = vmatpush1.msra.mxu0 0.0
  %2130 = vmatprep.subr.mxu0 0.0
  %2131 = vmatpush1.msra.mxu0 0.0
  %2132 = vmatprep.subr.mxu0 0.0
  %2133 = vmatpush1.msra.mxu0 0.0
  %2134 = vmatprep.subr.mxu0 0.0
  %2135 = vmatpush1.msra.mxu0 0.0
  %2136 = vmatprep.subr.mxu0 0.0
  %2137 = vmatpush1.msra.mxu0 0.0
  %2138 = vmatprep.subr.mxu0 0.0
  %2139 = vmatpush1.msra.mxu0 0.0
  %2140 = vmatprep.subr.mxu0 0.0
  %2141 = vmatpush1.msra.mxu0 0.0
  %2142 = vmatprep.subr.mxu0 0.0
  %2143 = vmatpush1.msra.mxu0 0.0
  %2144 = vmatprep.subr.mxu0 0.0
  %2145 = vmatpush1.msra.mxu0 0.0
  %2146 = vmatprep.subr.mxu0 0.0
  %2147 = vmatpush1.msra.mxu0 0.0
  %2148 = vmatprep.subr.mxu0 0.0
  %2149 = vmatpush1.msra.mxu0 0.0
  %2150 = vmatprep.subr.mxu0 0.0
  %2151 = vmatpush1.msra.mxu0 0.0
  %2152 = vmatprep.subr.mxu0 0.0
  %2153 = vmatpush1.msra.mxu0 0.0
  %2154 = vmatprep.subr.mxu0 0.0
  %2155 = vmatpush1.msra.mxu0 0.0
  %2156 = vmatprep.subr.mxu0 0.0
  %2157 = vmatpush1.msra.mxu0 0.0
  %2158 = vmatprep.subr.mxu0 0.0
  %2159 = vmatpush1.msra.mxu0 0.0
  %2160 = vmatprep.subr.mxu0 0.0
  %2161 = vmatpush1.msra.mxu0 0.0
  %2162 = vmatprep.subr.mxu0 0.0
  %2163 = vmatpush1.msra.mxu0 0.0
  %2164 = vmatprep.subr.mxu0 0.0
  %2165 = vmatpush1.msra.mxu0 0.0
  %2166 = vmatprep.subr.mxu0 0.0
  %2167 = vmatpush1.msra.mxu0 0.0
  %2168 = vmatprep.subr.mxu0 0.0
  %2169 = vmatpush1.msra.mxu0 0.0
  %2170 = vmatprep.subr.mxu0 0.0
  %2171 = vmatpush1.msra.mxu0 0.0
  %2172 = vmatprep.subr.mxu0 0.0
  %2173 = vmatpush1.msra.mxu0 0.0
  %2174 = vmatprep.subr.mxu0 0.0
  %2175 = vmatpush1.msra.mxu0 0.0
  %2176 = vmatprep.mubr.f32.mxu0 0.0
  %2177 = vmatmul.mubr.f32.gmra.mrb[0].mxu0 %v448
  %v2178 = vpop.f32.mrb[0].mxu0
  %v2179 = vadd.f32 0.0, %v2178
  %v2180 = vpop.f32.mrb[0].mxu0
  %2181 = vmatprep.mubr.f32.mxu0 0.0
  %2182 = vmatmul.mubr.f32.gmra.mrb[0].mxu0 %v451
  %v2183 = vpop.f32.mrb[0].mxu0
  %v2184 = vadd.f32 0.0, %v2183
  %v2185 = vpop.f32.mrb[0].mxu0
  %2186 = vmatprep.mubr.f32.mxu0 0.0
  %2187 = vmatmul.mubr.f32.gmra.mrb[0].mxu0 %v454
  %v2188 = vpop.f32.mrb[0].mxu0
  %v2189 = vadd.f32 0.0, %v2188
  %v2190 = vpop.f32.mrb[0].mxu0
  %2191 = vmatprep.mubr.f32.mxu0 0.0
  %2192 = vmatmul.mubr.f32.gmra.mrb[0].mxu0 %v457
  %v2193 = vpop.f32.mrb[0].mxu0
  %v2194 = vadd.f32 0.0, %v2193
  %v2195 = vpop.f32.mrb[0].mxu0
  %2196 = vdwg.mxu0
  %2197 = vrot.lane.b32.xlu0 %v2009, 126
  %v2198 = vpop.permute.xlu0 %2197
  %2199 = vrot.lane.b32.xlu0 %v2014, 126
  %v2200 = vpop.permute.xlu0 %2199
  %2203 = vmatprep.subr.mxu0 0.0
  %2204 = vmatpush1.msra.mxu0 %v2198
  %2205 = vmatprep.subr.mxu0 0.0
  %2206 = vmatpush1.msra.mxu0 %v2200
  %2207 = vmatprep.subr.mxu0 0.0
  %2208 = vmatpush1.msra.mxu0 0.0
  %2209 = vmatprep.subr.mxu0 0.0
  %2210 = vmatpush1.msra.mxu0 0.0
  %2211 = vmatprep.subr.mxu0 0.0
  %2212 = vmatpush1.msra.mxu0 0.0
  %2213 = vmatprep.subr.mxu0 0.0
  %2214 = vmatpush1.msra.mxu0 0.0
  %2215 = vmatprep.subr.mxu0 0.0
  %2216 = vmatpush1.msra.mxu0 0.0
  %2217 = vmatprep.subr.mxu0 0.0
  %2218 = vmatpush1.msra.mxu0 0.0
  %2219 = vmatprep.subr.mxu0 0.0
  %2220 = vmatpush1.msra.mxu0 0.0
  %2221 = vmatprep.subr.mxu0 0.0
  %2222 = vmatpush1.msra.mxu0 0.0
  %2223 = vmatprep.subr.mxu0 0.0
  %2224 = vmatpush1.msra.mxu0 0.0
  %2225 = vmatprep.subr.mxu0 0.0
  %2226 = vmatpush1.msra.mxu0 0.0
  %2227 = vmatprep.subr.mxu0 0.0
  %2228 = vmatpush1.msra.mxu0 0.0
  %2229 = vmatprep.subr.mxu0 0.0
  %2230 = vmatpush1.msra.mxu0 0.0
  %2231 = vmatprep.subr.mxu0 0.0
  %2232 = vmatpush1.msra.mxu0 0.0
  %2233 = vmatprep.subr.mxu0 0.0
  %2234 = vmatpush1.msra.mxu0 0.0
  %2235 = vmatprep.subr.mxu0 0.0
  %2236 = vmatpush1.msra.mxu0 0.0
  %2237 = vmatprep.subr.mxu0 0.0
  %2238 = vmatpush1.msra.mxu0 0.0
  %2239 = vmatprep.subr.mxu0 0.0
  %2240 = vmatpush1.msra.mxu0 0.0
  %2241 = vmatprep.subr.mxu0 0.0
  %2242 = vmatpush1.msra.mxu0 0.0
  %2243 = vmatprep.subr.mxu0 0.0
  %2244 = vmatpush1.msra.mxu0 0.0
  %2245 = vmatprep.subr.mxu0 0.0
  %2246 = vmatpush1.msra.mxu0 0.0
  %2247 = vmatprep.subr.mxu0 0.0
  %2248 = vmatpush1.msra.mxu0 0.0
  %2249 = vmatprep.subr.mxu0 0.0
  %2250 = vmatpush1.msra.mxu0 0.0
  %2251 = vmatprep.subr.mxu0 0.0
  %2252 = vmatpush1.msra.mxu0 0.0
  %2253 = vmatprep.subr.mxu0 0.0
  %2254 = vmatpush1.msra.mxu0 0.0
  %2255 = vmatprep.subr.mxu0 0.0
  %2256 = vmatpush1.msra.mxu0 0.0
  %2257 = vmatprep.subr.mxu0 0.0
  %2258 = vmatpush1.msra.mxu0 0.0
  %2259 = vmatprep.subr.mxu0 0.0
  %2260 = vmatpush1.msra.mxu0 0.0
  %2261 = vmatprep.subr.mxu0 0.0
  %2262 = vmatpush1.msra.mxu0 0.0
  %2263 = vmatprep.subr.mxu0 0.0
  %2264 = vmatpush1.msra.mxu0 0.0
  %2265 = vmatprep.subr.mxu0 0.0
  %2266 = vmatpush1.msra.mxu0 0.0
  %2267 = vmatprep.mubr.f32.mxu0 0.0
  %2268 = vmatmul.mubr.f32.gmra.mrb[0].mxu0 %v551
  %v2269 = vpop.f32.mrb[0].mxu0
  %v2270 = vadd.f32 %v2179, %v2269
  %v2271 = vpop.f32.mrb[0].mxu0
  %2272 = vmatprep.mubr.f32.mxu0 0.0
  %2273 = vmatmul.mubr.f32.gmra.mrb[0].mxu0 %v554
  %v2274 = vpop.f32.mrb[0].mxu0
  %v2275 = vadd.f32 %v2184, %v2274
  %v2276 = vpop.f32.mrb[0].mxu0
  %2277 = vmatprep.mubr.f32.mxu0 0.0
  %2278 = vmatmul.mubr.f32.gmra.mrb[0].mxu0 %v557
  %v2279 = vpop.f32.mrb[0].mxu0
  %v2280 = vadd.f32 %v2189, %v2279
  %v2281 = vpop.f32.mrb[0].mxu0
  %2282 = vmatprep.mubr.f32.mxu0 0.0
  %2283 = vmatmul.mubr.f32.gmra.mrb[0].mxu0 %v560
  %v2284 = vpop.f32.mrb[0].mxu0
  %v2285 = vadd.f32 %v2194, %v2284
  %v2286 = vpop.f32.mrb[0].mxu0
  %2287 = vdwg.mxu0
  %v2288 = vadd.f32 %v2270, %v2086
  %v2289 = vadd.f32 %v2275, %v2091
  %v2290 = vadd.f32 %v2280, %v2096
  %v2291 = vadd.f32 %v2285, %v2101
  %vm2292 = vcmp.gt.f32.partialorder %v2288, 0.0
  %vm2293 = vcmp.gt.f32.partialorder %v2289, 0.0
  %vm2294 = vcmp.gt.f32.partialorder %v2290, 0.0
  %vm2295 = vcmp.gt.f32.partialorder %v2291, 0.0
  %v2296 = vmul.f32 %v2288, 0.01
  %v2297 = vmul.f32 %v2289, 0.01
  %v2298 = vmul.f32 %v2290, 0.01
  %v2299 = vmul.f32 %v2291, 0.01
  %v2300 = vsel %vm2292, %v2288, %v2296
  %v2301 = vsel %vm2293, %v2289, %v2297
  %v2302 = vsel %vm2294, %v2290, %v2298
  %v2303 = vsel %vm2295, %v2291, %v2299
  %2305 = vset.pattern.permute.xlu0 0
  %2306 = vperm.xlu0 %2305, %v2300
  %v2307 = vpop.permute.xlu0 %2306
  %2310 = vset.pattern.permute.xlu0 0
  %2311 = vperm.xlu0 %2310, %v2301
  %v2312 = vpop.permute.xlu0 %2311
  %2315 = vset.pattern.permute.xlu0 0
  %2316 = vperm.xlu0 %2315, %v2302
  %v2317 = vpop.permute.xlu0 %2316
  %2320 = vset.pattern.permute.xlu0 0
  %2321 = vperm.xlu0 %2320, %v2303
  %v2322 = vpop.permute.xlu0 %2321
  %v2324 = vmul.f32 %v2307, %v245
  %v2325 = vmul.f32 %v2312, %v246
  %v2326 = vmul.f32 %v2317, %v247
  %v2327 = vmul.f32 %v2322, %v248
  %2328 = vmatprep.subr.mxu0 0.0
  %2329 = vmatpush1.msra.mxu0 %v2324
  %2330 = vmatprep.subr.mxu0 0.0
  %2331 = vmatpush1.msra.mxu0 %v2325
  %2332 = vmatprep.subr.mxu0 0.0
  %2333 = vmatpush1.msra.mxu0 %v2326
  %2334 = vmatprep.subr.mxu0 0.0
  %2335 = vmatpush1.msra.mxu0 %v2327
  %2336 = vmatprep.subr.mxu0 0.0
  %2337 = vmatpush1.msra.mxu0 0.0
  %2338 = vmatprep.subr.mxu0 0.0
  %2339 = vmatpush1.msra.mxu0 0.0
  %2340 = vmatprep.subr.mxu0 0.0
  %2341 = vmatpush1.msra.mxu0 0.0
  %2342 = vmatprep.subr.mxu0 0.0
  %2343 = vmatpush1.msra.mxu0 0.0
  %2344 = vmatprep.subr.mxu0 0.0
  %2345 = vmatpush1.msra.mxu0 0.0
  %2346 = vmatprep.subr.mxu0 0.0
  %2347 = vmatpush1.msra.mxu0 0.0
  %2348 = vmatprep.subr.mxu0 0.0
  %2349 = vmatpush1.msra.mxu0 0.0
  %2350 = vmatprep.subr.mxu0 0.0
  %2351 = vmatpush1.msra.mxu0 0.0
  %2352 = vmatprep.subr.mxu0 0.0
  %2353 = vmatpush1.msra.mxu0 0.0
  %2354 = vmatprep.subr.mxu0 0.0
  %2355 = vmatpush1.msra.mxu0 0.0
  %2356 = vmatprep.subr.mxu0 0.0
  %2357 = vmatpush1.msra.mxu0 0.0
  %2358 = vmatprep.subr.mxu0 0.0
  %2359 = vmatpush1.msra.mxu0 0.0
  %2360 = vmatprep.subr.mxu0 0.0
  %2361 = vmatpush1.msra.mxu0 0.0
  %2362 = vmatprep.subr.mxu0 0.0
  %2363 = vmatpush1.msra.mxu0 0.0
  %2364 = vmatprep.subr.mxu0 0.0
  %2365 = vmatpush1.msra.mxu0 0.0
  %2366 = vmatprep.subr.mxu0 0.0
  %2367 = vmatpush1.msra.mxu0 0.0
  %2368 = vmatprep.subr.mxu0 0.0
  %2369 = vmatpush1.msra.mxu0 0.0
  %2370 = vmatprep.subr.mxu0 0.0
  %2371 = vmatpush1.msra.mxu0 0.0
  %2372 = vmatprep.subr.mxu0 0.0
  %2373 = vmatpush1.msra.mxu0 0.0
  %2374 = vmatprep.subr.mxu0 0.0
  %2375 = vmatpush1.msra.mxu0 0.0
  %2376 = vmatprep.subr.mxu0 0.0
  %2377 = vmatpush1.msra.mxu0 0.0
  %2378 = vmatprep.subr.mxu0 0.0
  %2379 = vmatpush1.msra.mxu0 0.0
  %2380 = vmatprep.subr.mxu0 0.0
  %2381 = vmatpush1.msra.mxu0 0.0
  %2382 = vmatprep.subr.mxu0 0.0
  %2383 = vmatpush1.msra.mxu0 0.0
  %2384 = vmatprep.subr.mxu0 0.0
  %2385 = vmatpush1.msra.mxu0 0.0
  %2386 = vmatprep.subr.mxu0 0.0
  %2387 = vmatpush1.msra.mxu0 0.0
  %2388 = vmatprep.subr.mxu0 0.0
  %2389 = vmatpush1.msra.mxu0 0.0
  %2390 = vmatprep.subr.mxu0 0.0
  %2391 = vmatpush1.msra.mxu0 0.0
  %2392 = vmatprep.mubr.f32.mxu0 0.0
  %2393 = vmatmul.mubr.f32.gmra.mrb[0].mxu0 %v688
  %v2394 = vpop.f32.mrb[0].mxu0
  %v2395 = vadd.f32 0.0, %v2394
  %v2396 = vpop.f32.mrb[0].mxu0
  %2397 = vmatprep.mubr.f32.mxu0 0.0
  %2398 = vmatmul.mubr.f32.gmra.mrb[0].mxu0 %v691
  %v2399 = vpop.f32.mrb[0].mxu0
  %v2400 = vadd.f32 0.0, %v2399
  %v2401 = vpop.f32.mrb[0].mxu0
  %2402 = vdwg.mxu0
  %v2403 = vsel %vm768, %v2395, -1e+30
  %v2404 = vsel %vm769, %v2400, -1e+30
  %v2405 = vsel %vm64, %v2403, -inf
  %2406 = vmax.xlane.f32.xlu0 %v2405
  %v2407 = vpop.xlane.xlu0 %2406
  %v2408 = vsel %vm64, %v2404, -inf
  %2409 = vmax.xlane.f32.xlu0 %v2408
  %v2410 = vpop.xlane.xlu0 %2409
  %v2411 = vsub.f32 %v2403, %v2407
  %v2412 = vsub.f32 %v2404, %v2410
  %v2413 = vmul.f32 %v2411, 1.442695
  %v2414 = vpow.pop %v2413
  %v2415 = vmul.f32 %v2412, 1.442695
  %v2416 = vpow.pop %v2415
  %v2417 = vsel %vm64, %v2414, 0.0
  %2418 = vadd.xlane.f32.xlu0 %v2417
  %v2419 = vpop.xlane.xlu0 %2418
  %v2420 = vsel %vm64, %v2416, 0.0
  %2421 = vadd.xlane.f32.xlu0 %v2420
  %v2422 = vpop.xlane.xlu0 %2421
  %v2423 = vrcp.pop %v2419
  %v2424 = vmul.f32 %v2414, %v2423
  %v2425 = vrcp.pop %v2422
  %v2426 = vmul.f32 %v2416, %v2425
  %v2428 = vsel %vm64, %v2424, 0
  %v2431 = vsel %vm64, %v2426, 0
  %2433 = vmatprep.subr.mxu0 0.0
  %2434 = vmatpush1.msra.mxu0 %v2009
  %2435 = vmatprep.subr.mxu0 0.0
  %2436 = vmatpush1.msra.mxu0 %v2014
  %2437 = vmatprep.subr.mxu0 0.0
  %2438 = vmatpush1.msra.mxu0 0.0
  %2439 = vmatprep.subr.mxu0 0.0
  %2440 = vmatpush1.msra.mxu0 0.0
  %2441 = vmatprep.subr.mxu0 0.0
  %2442 = vmatpush1.msra.mxu0 0.0
  %2443 = vmatprep.subr.mxu0 0.0
  %2444 = vmatpush1.msra.mxu0 0.0
  %2445 = vmatprep.subr.mxu0 0.0
  %2446 = vmatpush1.msra.mxu0 0.0
  %2447 = vmatprep.subr.mxu0 0.0
  %2448 = vmatpush1.msra.mxu0 0.0
  %2449 = vmatprep.subr.mxu0 0.0
  %2450 = vmatpush1.msra.mxu0 0.0
  %2451 = vmatprep.subr.mxu0 0.0
  %2452 = vmatpush1.msra.mxu0 0.0
  %2453 = vmatprep.subr.mxu0 0.0
  %2454 = vmatpush1.msra.mxu0 0.0
  %2455 = vmatprep.subr.mxu0 0.0
  %2456 = vmatpush1.msra.mxu0 0.0
  %2457 = vmatprep.subr.mxu0 0.0
  %2458 = vmatpush1.msra.mxu0 0.0
  %2459 = vmatprep.subr.mxu0 0.0
  %2460 = vmatpush1.msra.mxu0 0.0
  %2461 = vmatprep.subr.mxu0 0.0
  %2462 = vmatpush1.msra.mxu0 0.0
  %2463 = vmatprep.subr.mxu0 0.0
  %2464 = vmatpush1.msra.mxu0 0.0
  %2465 = vmatprep.subr.mxu0 0.0
  %2466 = vmatpush1.msra.mxu0 0.0
  %2467 = vmatprep.subr.mxu0 0.0
  %2468 = vmatpush1.msra.mxu0 0.0
  %2469 = vmatprep.subr.mxu0 0.0
  %2470 = vmatpush1.msra.mxu0 0.0
  %2471 = vmatprep.subr.mxu0 0.0
  %2472 = vmatpush1.msra.mxu0 0.0
  %2473 = vmatprep.subr.mxu0 0.0
  %2474 = vmatpush1.msra.mxu0 0.0
  %2475 = vmatprep.subr.mxu0 0.0
  %2476 = vmatpush1.msra.mxu0 0.0
  %2477 = vmatprep.subr.mxu0 0.0
  %2478 = vmatpush1.msra.mxu0 0.0
  %2479 = vmatprep.subr.mxu0 0.0
  %2480 = vmatpush1.msra.mxu0 0.0
  %2481 = vmatprep.subr.mxu0 0.0
  %2482 = vmatpush1.msra.mxu0 0.0
  %2483 = vmatprep.subr.mxu0 0.0
  %2484 = vmatpush1.msra.mxu0 0.0
  %2485 = vmatprep.subr.mxu0 0.0
  %2486 = vmatpush1.msra.mxu0 0.0
  %2487 = vmatprep.subr.mxu0 0.0
  %2488 = vmatpush1.msra.mxu0 0.0
  %2489 = vmatprep.subr.mxu0 0.0
  %2490 = vmatpush1.msra.mxu0 0.0
  %2491 = vmatprep.subr.mxu0 0.0
  %2492 = vmatpush1.msra.mxu0 0.0
  %2493 = vmatprep.subr.mxu0 0.0
  %2494 = vmatpush1.msra.mxu0 0.0
  %2495 = vmatprep.subr.mxu0 0.0
  %2496 = vmatpush1.msra.mxu0 0.0
  %2497 = vmatprep.mubr.f32.mxu0 0.0
  %2498 = vmatmul.mubr.f32.gmra.mrb[0].mxu0 %v2428
  %v2499 = vpop.f32.mrb[0].mxu0
  %v2500 = vadd.f32 0.0, %v2499
  %v2501 = vpop.f32.mrb[0].mxu0
  %2502 = vmatprep.mubr.f32.mxu0 0.0
  %2503 = vmatmul.mubr.f32.gmra.mrb[0].mxu0 %v2431
  %v2504 = vpop.f32.mrb[0].mxu0
  %v2505 = vadd.f32 0.0, %v2504
  %v2506 = vpop.f32.mrb[0].mxu0
  %2507 = vdwg.mxu0
  %v2508 = vsel %vm875, %v2500, 0.0
  %v2509 = vsel %vm875, %v2505, 0.0
  %v2510 = vadd.f32 %v2508, %v2509
  %v2511 = vrot.slane %v2510, 4
  %v2512 = vadd.f32 %v2510, %v2511
  %v2513 = vrot.slane %v2512, 2
  %v2514 = vadd.f32 %v2512, %v2513
  %v2515 = vrot.slane %v2514, 1
  %v2516 = vadd.f32 %v2514, %v2515
  %v2517 = vadd.f32 %v2516, 0.0
  %2518 = vset.pattern.permute.xlu0 1
  %2519 = vperm.xlu0 %2518, %v2300
  %v2520 = vpop.permute.xlu0 %2519
  %2522 = vset.pattern.permute.xlu0 1
  %2523 = vperm.xlu0 %2522, %v2301
  %v2524 = vpop.permute.xlu0 %2523
  %2526 = vset.pattern.permute.xlu0 1
  %2527 = vperm.xlu0 %2526, %v2302
  %v2528 = vpop.permute.xlu0 %2527
  %2530 = vset.pattern.permute.xlu0 1
  %2531 = vperm.xlu0 %2530, %v2303
  %v2532 = vpop.permute.xlu0 %2531
  %v2534 = vmul.f32 %v2520, %v245
  %v2535 = vmul.f32 %v2524, %v246
  %v2536 = vmul.f32 %v2528, %v247
  %v2537 = vmul.f32 %v2532, %v248
  %2538 = vmatprep.subr.mxu0 0.0
  %2539 = vmatpush1.msra.mxu0 %v2534
  %2540 = vmatprep.subr.mxu0 0.0
  %2541 = vmatpush1.msra.mxu0 %v2535
  %2542 = vmatprep.subr.mxu0 0.0
  %2543 = vmatpush1.msra.mxu0 %v2536
  %2544 = vmatprep.subr.mxu0 0.0
  %2545 = vmatpush1.msra.mxu0 %v2537
  %2546 = vmatprep.subr.mxu0 0.0
  %2547 = vmatpush1.msra.mxu0 0.0
  %2548 = vmatprep.subr.mxu0 0.0
  %2549 = vmatpush1.msra.mxu0 0.0
  %2550 = vmatprep.subr.mxu0 0.0
  %2551 = vmatpush1.msra.mxu0 0.0
  %2552 = vmatprep.subr.mxu0 0.0
  %2553 = vmatpush1.msra.mxu0 0.0
  %2554 = vmatprep.subr.mxu0 0.0
  %2555 = vmatpush1.msra.mxu0 0.0
  %2556 = vmatprep.subr.mxu0 0.0
  %2557 = vmatpush1.msra.mxu0 0.0
  %2558 = vmatprep.subr.mxu0 0.0
  %2559 = vmatpush1.msra.mxu0 0.0
  %2560 = vmatprep.subr.mxu0 0.0
  %2561 = vmatpush1.msra.mxu0 0.0
  %2562 = vmatprep.subr.mxu0 0.0
  %2563 = vmatpush1.msra.mxu0 0.0
  %2564 = vmatprep.subr.mxu0 0.0
  %2565 = vmatpush1.msra.mxu0 0.0
  %2566 = vmatprep.subr.mxu0 0.0
  %2567 = vmatpush1.msra.mxu0 0.0
  %2568 = vmatprep.subr.mxu0 0.0
  %2569 = vmatpush1.msra.mxu0 0.0
  %2570 = vmatprep.subr.mxu0 0.0
  %2571 = vmatpush1.msra.mxu0 0.0
  %2572 = vmatprep.subr.mxu0 0.0
  %2573 = vmatpush1.msra.mxu0 0.0
  %2574 = vmatprep.subr.mxu0 0.0
  %2575 = vmatpush1.msra.mxu0 0.0
  %2576 = vmatprep.subr.mxu0 0.0
  %2577 = vmatpush1.msra.mxu0 0.0
  %2578 = vmatprep.subr.mxu0 0.0
  %2579 = vmatpush1.msra.mxu0 0.0
  %2580 = vmatprep.subr.mxu0 0.0
  %2581 = vmatpush1.msra.mxu0 0.0
  %2582 = vmatprep.subr.mxu0 0.0
  %2583 = vmatpush1.msra.mxu0 0.0
  %2584 = vmatprep.subr.mxu0 0.0
  %2585 = vmatpush1.msra.mxu0 0.0
  %2586 = vmatprep.subr.mxu0 0.0
  %2587 = vmatpush1.msra.mxu0 0.0
  %2588 = vmatprep.subr.mxu0 0.0
  %2589 = vmatpush1.msra.mxu0 0.0
  %2590 = vmatprep.subr.mxu0 0.0
  %2591 = vmatpush1.msra.mxu0 0.0
  %2592 = vmatprep.subr.mxu0 0.0
  %2593 = vmatpush1.msra.mxu0 0.0
  %2594 = vmatprep.subr.mxu0 0.0
  %2595 = vmatpush1.msra.mxu0 0.0
  %2596 = vmatprep.subr.mxu0 0.0
  %2597 = vmatpush1.msra.mxu0 0.0
  %2598 = vmatprep.subr.mxu0 0.0
  %2599 = vmatpush1.msra.mxu0 0.0
  %2600 = vmatprep.subr.mxu0 0.0
  %2601 = vmatpush1.msra.mxu0 0.0
  %2602 = vmatprep.mubr.f32.mxu0 0.0
  %2603 = vmatmul.mubr.f32.gmra.mrb[0].mxu0 %v688
  %v2604 = vpop.f32.mrb[0].mxu0
  %v2605 = vadd.f32 0.0, %v2604
  %v2606 = vpop.f32.mrb[0].mxu0
  %2607 = vmatprep.mubr.f32.mxu0 0.0
  %2608 = vmatmul.mubr.f32.gmra.mrb[0].mxu0 %v691
  %v2609 = vpop.f32.mrb[0].mxu0
  %v2610 = vadd.f32 0.0, %v2609
  %v2611 = vpop.f32.mrb[0].mxu0
  %2612 = vdwg.mxu0
  %v2613 = vsel %vm768, %v2605, -1e+30
  %v2614 = vsel %vm769, %v2610, -1e+30
  %v2615 = vsel %vm64, %v2613, -inf
  %2616 = vmax.xlane.f32.xlu0 %v2615
  %v2617 = vpop.xlane.xlu0 %2616
  %v2618 = vsel %vm64, %v2614, -inf
  %2619 = vmax.xlane.f32.xlu0 %v2618
  %v2620 = vpop.xlane.xlu0 %2619
  %v2621 = vsub.f32 %v2613, %v2617
  %v2622 = vsub.f32 %v2614, %v2620
  %v2623 = vmul.f32 %v2621, 1.442695
  %v2624 = vpow.pop %v2623
  %v2625 = vmul.f32 %v2622, 1.442695
  %v2626 = vpow.pop %v2625
  %v2627 = vsel %vm64, %v2624, 0.0
  %2628 = vadd.xlane.f32.xlu0 %v2627
  %v2629 = vpop.xlane.xlu0 %2628
  %v2630 = vsel %vm64, %v2626, 0.0
  %2631 = vadd.xlane.f32.xlu0 %v2630
  %v2632 = vpop.xlane.xlu0 %2631
  %v2633 = vrcp.pop %v2629
  %v2634 = vmul.f32 %v2624, %v2633
  %v2635 = vrcp.pop %v2632
  %v2636 = vmul.f32 %v2626, %v2635
  %2637 = vrot.lane.b32.xlu0 %v2009, 127
  %v2638 = vpop.permute.xlu0 %2637
  %2639 = vrot.lane.b32.xlu0 %v2014, 127
  %v2640 = vpop.permute.xlu0 %2639
  %v2644 = vsel %vm64, %v2634, 0
  %v2647 = vsel %vm64, %v2636, 0
  %2649 = vmatprep.subr.mxu0 0.0
  %2650 = vmatpush1.msra.mxu0 %v2638
  %2651 = vmatprep.subr.mxu0 0.0
  %2652 = vmatpush1.msra.mxu0 %v2640
  %2653 = vmatprep.subr.mxu0 0.0
  %2654 = vmatpush1.msra.mxu0 0.0
  %2655 = vmatprep.subr.mxu0 0.0
  %2656 = vmatpush1.msra.mxu0 0.0
  %2657 = vmatprep.subr.mxu0 0.0
  %2658 = vmatpush1.msra.mxu0 0.0
  %2659 = vmatprep.subr.mxu0 0.0
  %2660 = vmatpush1.msra.mxu0 0.0
  %2661 = vmatprep.subr.mxu0 0.0
  %2662 = vmatpush1.msra.mxu0 0.0
  %2663 = vmatprep.subr.mxu0 0.0
  %2664 = vmatpush1.msra.mxu0 0.0
  %2665 = vmatprep.subr.mxu0 0.0
  %2666 = vmatpush1.msra.mxu0 0.0
  %2667 = vmatprep.subr.mxu0 0.0
  %2668 = vmatpush1.msra.mxu0 0.0
  %2669 = vmatprep.subr.mxu0 0.0
  %2670 = vmatpush1.msra.mxu0 0.0
  %2671 = vmatprep.subr.mxu0 0.0
  %2672 = vmatpush1.msra.mxu0 0.0
  %2673 = vmatprep.subr.mxu0 0.0
  %2674 = vmatpush1.msra.mxu0 0.0
  %2675 = vmatprep.subr.mxu0 0.0
  %2676 = vmatpush1.msra.mxu0 0.0
  %2677 = vmatprep.subr.mxu0 0.0
  %2678 = vmatpush1.msra.mxu0 0.0
  %2679 = vmatprep.subr.mxu0 0.0
  %2680 = vmatpush1.msra.mxu0 0.0
  %2681 = vmatprep.subr.mxu0 0.0
  %2682 = vmatpush1.msra.mxu0 0.0
  %2683 = vmatprep.subr.mxu0 0.0
  %2684 = vmatpush1.msra.mxu0 0.0
  %2685 = vmatprep.subr.mxu0 0.0
  %2686 = vmatpush1.msra.mxu0 0.0
  %2687 = vmatprep.subr.mxu0 0.0
  %2688 = vmatpush1.msra.mxu0 0.0
  %2689 = vmatprep.subr.mxu0 0.0
  %2690 = vmatpush1.msra.mxu0 0.0
  %2691 = vmatprep.subr.mxu0 0.0
  %2692 = vmatpush1.msra.mxu0 0.0
  %2693 = vmatprep.subr.mxu0 0.0
  %2694 = vmatpush1.msra.mxu0 0.0
  %2695 = vmatprep.subr.mxu0 0.0
  %2696 = vmatpush1.msra.mxu0 0.0
  %2697 = vmatprep.subr.mxu0 0.0
  %2698 = vmatpush1.msra.mxu0 0.0
  %2699 = vmatprep.subr.mxu0 0.0
  %2700 = vmatpush1.msra.mxu0 0.0
  %2701 = vmatprep.subr.mxu0 0.0
  %2702 = vmatpush1.msra.mxu0 0.0
  %2703 = vmatprep.subr.mxu0 0.0
  %2704 = vmatpush1.msra.mxu0 0.0
  %2705 = vmatprep.subr.mxu0 0.0
  %2706 = vmatpush1.msra.mxu0 0.0
  %2707 = vmatprep.subr.mxu0 0.0
  %2708 = vmatpush1.msra.mxu0 0.0
  %2709 = vmatprep.subr.mxu0 0.0
  %2710 = vmatpush1.msra.mxu0 0.0
  %2711 = vmatprep.subr.mxu0 0.0
  %2712 = vmatpush1.msra.mxu0 0.0
  %2713 = vmatprep.mubr.f32.mxu0 0.0
  %2714 = vmatmul.mubr.f32.gmra.mrb[0].mxu0 %v2644
  %v2715 = vpop.f32.mrb[0].mxu0
  %v2716 = vadd.f32 0.0, %v2715
  %v2717 = vpop.f32.mrb[0].mxu0
  %2718 = vmatprep.mubr.f32.mxu0 0.0
  %2719 = vmatmul.mubr.f32.gmra.mrb[0].mxu0 %v2647
  %v2720 = vpop.f32.mrb[0].mxu0
  %v2721 = vadd.f32 0.0, %v2720
  %v2722 = vpop.f32.mrb[0].mxu0
  %2723 = vdwg.mxu0
  %v2724 = vsel %vm875, %v2716, 0.0
  %v2725 = vsel %vm875, %v2721, 0.0
  %v2726 = vadd.f32 %v2724, %v2725
  %v2727 = vrot.slane %v2726, 4
  %v2728 = vadd.f32 %v2726, %v2727
  %v2729 = vrot.slane %v2728, 2
  %v2730 = vadd.f32 %v2728, %v2729
  %v2731 = vrot.slane %v2730, 1
  %v2732 = vadd.f32 %v2730, %v2731
  %v2733 = vadd.f32 %v2517, %v2732
  %v2734 = vmul.f32 %v2733, 0.0009765625
  %vm2735 = vcmp.gt.f32.partialorder %v2734, 0.0
  %v2736 = vmul.f32 %v2734, 1.442695
  %v2737 = vpow.pop %v2736
  %v2738 = vsub.f32 %v2737, 1.0
  %v2739 = vsel %vm2735, %v2734, %v2738
  %2741 = vset.pattern.permute.xlu0 0
  %2742 = vperm.xlu0 %2741, %v2739
  %v2743 = vpop.permute.xlu0 %2742
  %v2745 = vadd.f32 %v1929, %v2743
  %v2746 = vadd.f32 %v1930, %v2743
  %v2747 = vld [vmem:[%s12] sm:$0xff]
  %v2748 = vld [vmem:[%s12 + $0x8] sm:$0xff]
  %v2749 = vld [vmem:[%s12 + $0x10] sm:$0xff]
  %v2750 = vld [vmem:[%s12 + $0x18] sm:$0xff]
  %v2751 = vld [vmem:[%s13] sm:$0x1]
  %v2753 = vlaneseq
  %v2754 = vshrl.u32 %v2753, 7
  %v2755 = vsub.s32 0, %v2754
  %v2756 = vrot.slane %v2751, %v2755
  %v2759 = vsel %vm157, %v2745, 0
  %v2762 = vsel %vm157, %v2746, 0
  %2764 = vmatprep.subr.mxu0 0.0
  %2765 = vmatpush1.msra.mxu0 %v2747
  %2766 = vmatprep.subr.mxu0 0.0
  %2767 = vmatpush1.msra.mxu0 %v2748
  %2768 = vmatprep.subr.mxu0 0.0
  %2769 = vmatpush1.msra.mxu0 %v2749
  %2770 = vmatprep.subr.mxu0 0.0
  %2771 = vmatpush1.msra.mxu0 %v2750
  %2772 = vmatprep.subr.mxu0 0.0
  %2773 = vmatpush1.msra.mxu0 0.0
  %2774 = vmatprep.subr.mxu0 0.0
  %2775 = vmatpush1.msra.mxu0 0.0
  %2776 = vmatprep.subr.mxu0 0.0
  %2777 = vmatpush1.msra.mxu0 0.0
  %2778 = vmatprep.subr.mxu0 0.0
  %2779 = vmatpush1.msra.mxu0 0.0
  %2780 = vmatprep.subr.mxu0 0.0
  %2781 = vmatpush1.msra.mxu0 0.0
  %2782 = vmatprep.subr.mxu0 0.0
  %2783 = vmatpush1.msra.mxu0 0.0
  %2784 = vmatprep.subr.mxu0 0.0
  %2785 = vmatpush1.msra.mxu0 0.0
  %2786 = vmatprep.subr.mxu0 0.0
  %2787 = vmatpush1.msra.mxu0 0.0
  %2788 = vmatprep.subr.mxu0 0.0
  %2789 = vmatpush1.msra.mxu0 0.0
  %2790 = vmatprep.subr.mxu0 0.0
  %2791 = vmatpush1.msra.mxu0 0.0
  %2792 = vmatprep.subr.mxu0 0.0
  %2793 = vmatpush1.msra.mxu0 0.0
  %2794 = vmatprep.subr.mxu0 0.0
  %2795 = vmatpush1.msra.mxu0 0.0
  %2796 = vmatprep.subr.mxu0 0.0
  %2797 = vmatpush1.msra.mxu0 0.0
  %2798 = vmatprep.subr.mxu0 0.0
  %2799 = vmatpush1.msra.mxu0 0.0
  %2800 = vmatprep.subr.mxu0 0.0
  %2801 = vmatpush1.msra.mxu0 0.0
  %2802 = vmatprep.subr.mxu0 0.0
  %2803 = vmatpush1.msra.mxu0 0.0
  %2804 = vmatprep.subr.mxu0 0.0
  %2805 = vmatpush1.msra.mxu0 0.0
  %2806 = vmatprep.subr.mxu0 0.0
  %2807 = vmatpush1.msra.mxu0 0.0
  %2808 = vmatprep.subr.mxu0 0.0
  %2809 = vmatpush1.msra.mxu0 0.0
  %2810 = vmatprep.subr.mxu0 0.0
  %2811 = vmatpush1.msra.mxu0 0.0
  %2812 = vmatprep.subr.mxu0 0.0
  %2813 = vmatpush1.msra.mxu0 0.0
  %2814 = vmatprep.subr.mxu0 0.0
  %2815 = vmatpush1.msra.mxu0 0.0
  %2816 = vmatprep.subr.mxu0 0.0
  %2817 = vmatpush1.msra.mxu0 0.0
  %2818 = vmatprep.subr.mxu0 0.0
  %2819 = vmatpush1.msra.mxu0 0.0
  %2820 = vmatprep.subr.mxu0 0.0
  %2821 = vmatpush1.msra.mxu0 0.0
  %2822 = vmatprep.subr.mxu0 0.0
  %2823 = vmatpush1.msra.mxu0 0.0
  %2824 = vmatprep.subr.mxu0 0.0
  %2825 = vmatpush1.msra.mxu0 0.0
  %2826 = vmatprep.subr.mxu0 0.0
  %2827 = vmatpush1.msra.mxu0 0.0
  %2828 = vmatprep.mubr.f32.mxu0 0.0
  %2829 = vmatmul.mubr.f32.gmra.mrb[0].mxu0 %v2759
  %v2830 = vpop.f32.mrb[0].mxu0
  %v2831 = vadd.f32 %v2756, %v2830
  %v2832 = vpop.f32.mrb[0].mxu0
  %2833 = vmatprep.mubr.f32.mxu0 0.0
  %2834 = vmatmul.mubr.f32.gmra.mrb[0].mxu0 %v2762
  %v2835 = vpop.f32.mrb[0].mxu0
  %v2836 = vadd.f32 %v2756, %v2835
  %v2837 = vpop.f32.mrb[0].mxu0
  %2838 = vdwg.mxu0
  %v2839 = vld [vmem:[%s14] sm:$0xff]
  %v2840 = vld [vmem:[%s14 + $0x8] sm:$0xff]
  %v2841 = vld [vmem:[%s14 + $0x10] sm:$0xff]
  %v2842 = vld [vmem:[%s14 + $0x18] sm:$0xff]
  %v2843 = vld [vmem:[%s15] sm:$0x1]
  %v2845 = vlaneseq
  %v2846 = vshrl.u32 %v2845, 7
  %v2847 = vsub.s32 0, %v2846
  %v2848 = vrot.slane %v2843, %v2847
  %v2851 = vsel %vm157, %v2831, 0
  %v2854 = vsel %vm157, %v2836, 0
  %2856 = vmatprep.subr.mxu0 0.0
  %2857 = vmatpush1.msra.mxu0 %v2839
  %2858 = vmatprep.subr.mxu0 0.0
  %2859 = vmatpush1.msra.mxu0 %v2840
  %2860 = vmatprep.subr.mxu0 0.0
  %2861 = vmatpush1.msra.mxu0 %v2841
  %2862 = vmatprep.subr.mxu0 0.0
  %2863 = vmatpush1.msra.mxu0 %v2842
  %2864 = vmatprep.subr.mxu0 0.0
  %2865 = vmatpush1.msra.mxu0 0.0
  %2866 = vmatprep.subr.mxu0 0.0
  %2867 = vmatpush1.msra.mxu0 0.0
  %2868 = vmatprep.subr.mxu0 0.0
  %2869 = vmatpush1.msra.mxu0 0.0
  %2870 = vmatprep.subr.mxu0 0.0
  %2871 = vmatpush1.msra.mxu0 0.0
  %2872 = vmatprep.subr.mxu0 0.0
  %2873 = vmatpush1.msra.mxu0 0.0
  %2874 = vmatprep.subr.mxu0 0.0
  %2875 = vmatpush1.msra.mxu0 0.0
  %2876 = vmatprep.subr.mxu0 0.0
  %2877 = vmatpush1.msra.mxu0 0.0
  %2878 = vmatprep.subr.mxu0 0.0
  %2879 = vmatpush1.msra.mxu0 0.0
  %2880 = vmatprep.subr.mxu0 0.0
  %2881 = vmatpush1.msra.mxu0 0.0
  %2882 = vmatprep.subr.mxu0 0.0
  %2883 = vmatpush1.msra.mxu0 0.0
  %2884 = vmatprep.subr.mxu0 0.0
  %2885 = vmatpush1.msra.mxu0 0.0
  %2886 = vmatprep.subr.mxu0 0.0
  %2887 = vmatpush1.msra.mxu0 0.0
  %2888 = vmatprep.subr.mxu0 0.0
  %2889 = vmatpush1.msra.mxu0 0.0
  %2890 = vmatprep.subr.mxu0 0.0
  %2891 = vmatpush1.msra.mxu0 0.0
  %2892 = vmatprep.subr.mxu0 0.0
  %2893 = vmatpush1.msra.mxu0 0.0
  %2894 = vmatprep.subr.mxu0 0.0
  %2895 = vmatpush1.msra.mxu0 0.0
  %2896 = vmatprep.subr.mxu0 0.0
  %2897 = vmatpush1.msra.mxu0 0.0
  %2898 = vmatprep.subr.mxu0 0.0
  %2899 = vmatpush1.msra.mxu0 0.0
  %2900 = vmatprep.subr.mxu0 0.0
  %2901 = vmatpush1.msra.mxu0 0.0
  %2902 = vmatprep.subr.mxu0 0.0
  %2903 = vmatpush1.msra.mxu0 0.0
  %2904 = vmatprep.subr.mxu0 0.0
  %2905 = vmatpush1.msra.mxu0 0.0
  %2906 = vmatprep.subr.mxu0 0.0
  %2907 = vmatpush1.msra.mxu0 0.0
  %2908 = vmatprep.subr.mxu0 0.0
  %2909 = vmatpush1.msra.mxu0 0.0
  %2910 = vmatprep.subr.mxu0 0.0
  %2911 = vmatpush1.msra.mxu0 0.0
  %2912 = vmatprep.subr.mxu0 0.0
  %2913 = vmatpush1.msra.mxu0 0.0
  %2914 = vmatprep.subr.mxu0 0.0
  %2915 = vmatpush1.msra.mxu0 0.0
  %2916 = vmatprep.subr.mxu0 0.0
  %2917 = vmatpush1.msra.mxu0 0.0
  %2918 = vmatprep.subr.mxu0 0.0
  %2919 = vmatpush1.msra.mxu0 0.0
  %2920 = vmatprep.mubr.f32.mxu0 0.0
  %2921 = vmatmul.mubr.f32.gmra.mrb[0].mxu0 %v2851
  %v2922 = vpop.f32.mrb[0].mxu0
  %v2923 = vadd.f32 %v2848, %v2922
  %v2924 = vpop.f32.mrb[0].mxu0
  %2925 = vmatprep.mubr.f32.mxu0 0.0
  %2926 = vmatmul.mubr.f32.gmra.mrb[0].mxu0 %v2854
  %v2927 = vpop.f32.mrb[0].mxu0
  %v2928 = vadd.f32 %v2848, %v2927
  %v2929 = vpop.f32.mrb[0].mxu0
  %2930 = vdwg.mxu0
  %2931 = vst.msk [vmem:[%s16] sm:$0xff] %vm341, %v2923
  %2932 = vst.msk [vmem:[%s16 + $0x8] sm:$0xff] %vm341, %v2928
  // Predicated region
  $region66: #{gat_s_forward.1} parent=0 // pred_check
    _
  $region67: #{gat_s_forward.1} parent=0 // pred_check_branch
    %2934 = sbr.rel (0) target = $region69
  $region68: #{gat_s_forward.1} parent=0 // pred_region
    _
  $region69: #{gat_s_forward.1} parent=0 // pred_fallthru
    _
  // Predicated region
  $region70: #{gat_s_forward.1} parent=0 // pred_check
    _
  $region71: #{gat_s_forward.1} parent=0 // pred_check_branch
    %2936 = sbr.rel (0) target = $region73
  $region72: #{gat_s_forward.1} parent=0 // pred_region
    _
  $region73: #{gat_s_forward.1} parent=0 // pred_fallthru
    _

</llo_original>
